<compile_context>
chip_gen: v6e
topology: v6e:2x2x1
jax: 0.10.0
libtpu: 0.0.40
codegen_flags: <defaults>
</compile_context>

<pallas_src>
import functools
import math

import jax
import jax.numpy as jnp
from jax.experimental import pallas as pl
from jax.experimental.pallas import tpu as pltpu


# ----------------------------------------------------------------------------
# In-kernel helpers (traced inside kernel bodies)
# ----------------------------------------------------------------------------
def _conv1d_same(pad_ref, h3, w_ref, cb_ref, *, K, stride, Lout):
    """SAME-padded 1-D conv; stride applied directly through strided reads.

    pad_ref : VMEM scratch (N, Lin + p, Cin); its shape encodes the SAME padding.
    h3      : (N, Lin, Cin) conv input (value).
    w_ref   : (K, Cin, Cout) weights; cb_ref: (1, Cout) bias.
    Returns (N*Lout, Cout) float32 (batch folded into the matmul rows).
    """
    N, Lin, Cin = h3.shape
    Cout = w_ref.shape[-1]
    p = pad_ref.shape[1] - Lin          # total SAME padding (static)
    pad_l = p // 2                      # matches MyConv1dPadSame (pad_left = p//2)

    # Per-sample halo handling: zero the scratch, drop the batch into the middle.
    pad_ref[...] = jnp.zeros_like(pad_ref)
    pad_ref[:, pl.ds(pad_l, Lin), :] = h3

    acc = jnp.zeros((N * Lout, Cout), jnp.float32)
    for k in range(K):                  # K shifted matmuls accumulated on the MXU
        if stride == 1:
            xk = pad_ref[:, pl.ds(k, Lout), :]
        else:
            xk = pad_ref[:, pl.ds(k, Lout, stride=stride), :]
        acc = acc + jnp.dot(xk.reshape(N * Lout, Cin), w_ref[k],
                            preferred_element_type=jnp.float32)
    return acc + cb_ref[...]


# ----------------------------------------------------------------------------
# Fused Pallas kernels
# ----------------------------------------------------------------------------
def _stem_kernel(x_ref, w_ref, cb_ref, s_ref, b_ref, o_ref, pad_ref, *, K):
    # conv1d(SAME, stride 1) + eval-BN (scale/shift) + ReLU, fully fused.
    N, Lin, Cin = x_ref.shape
    _, Lout, Cout = o_ref.shape
    acc = _conv1d_same(pad_ref, x_ref[...], w_ref, cb_ref, K=K, stride=1, Lout=Lout)
    y = jnp.maximum(acc * s_ref[...] + b_ref[...], 0.0)
    o_ref[...] = y.reshape(N, Lout, Cout).astype(o_ref.dtype)


def _block_kernel(x_ref, s1_ref, b1_ref, w1_ref, cb1_ref,
                  s2_ref, b2_ref, w2_ref, cb2_ref,
                  o_ref, pad1_ref, pad2_ref, pid_ref=None, *,
                  K, stride, apply_preact, downsample):
    # Whole BasicBlock in one kernel (eval semantics).
    N, Lin, Cin = x_ref.shape
    _, Lout, Cout = o_ref.shape

    x = x_ref[...]
    x2 = x.reshape(N * Lin, Cin)

    # ---- pre-activation: eval-BN + ReLU (skipped on the first block) ----
    h2 = jnp.maximum(x2 * s1_ref[...] + b1_ref[...], 0.0) if apply_preact else x2
    # dropout (do1): identity in eval mode

    # ---- conv1 (SAME, stride s) + BN2 + ReLU ----
    acc = _conv1d_same(pad1_ref, h2.reshape(N, Lin, Cin), w1_ref, cb1_ref,
                       K=K, stride=stride, Lout=Lout)
    h2 = jnp.maximum(acc * s2_ref[...] + b2_ref[...], 0.0)
    # dropout (do2): identity in eval mode

    # ---- conv2 (SAME, stride 1) ----
    acc2 = _conv1d_same(pad2_ref, h2.reshape(N, Lout, Cout), w2_ref, cb2_ref,
                        K=K, stride=1, Lout=Lout)

    # ---- identity path: 'same' max-pool (zero pad, kernel = stride = s) ----
    if downsample and stride > 1:
        pp = pid_ref.shape[1] - Lin                       # = stride - 1
        pid_ref[...] = jnp.zeros_like(pid_ref)
        pid_ref[:, pl.ds(pp // 2, Lin), :] = x
        ident = pid_ref[:, pl.ds(0, Lout, stride=stride), :]
        for k in range(1, stride):
            ident = jnp.maximum(ident, pid_ref[:, pl.ds(k, Lout, stride=stride), :])
        ident2 = ident.reshape(N * Lout, Cin)
    else:
        ident2 = x2                                       # Lout == Lin here

    # ---- channel zero-pad folded into the residual add (static 0/1 projection) ----
    if Cout != Cin:
        ch1 = (Cout - Cin) // 2
        row = jax.lax.broadcasted_iota(jnp.int32, (Cin, Cout), 0)
        col = jax.lax.broadcasted_iota(jnp.int32, (Cin, Cout), 1)
        proj = (col == row + ch1).astype(jnp.float32)
        ident2 = jnp.dot(ident2, proj, preferred_element_type=jnp.float32)

    o_ref[...] = (acc2 + ident2).reshape(N, Lout, Cout).astype(o_ref.dtype)


def _head_kernel(x_ref, s_ref, b_ref, w_ref, db_ref, o_ref):
    # final BN + ReLU + mean over length + dense, fully fused.
    N, L, C = x_ref.shape
    y = jnp.maximum(x_ref[...].reshape(N * L, C) * s_ref[...] + b_ref[...], 0.0)
    inv_L = 1.0 / L
    for n in range(N):                                    # N is tiny & static
        m = jnp.sum(y[n * L:(n + 1) * L, :], axis=0, keepdims=True) * inv_L
        o_ref[pl.ds(n, 1), :] = (
            jnp.dot(m, w_ref[...], preferred_element_type=jnp.float32)
            + db_ref[...]).astype(o_ref.dtype)


# ----------------------------------------------------------------------------
# Wrappers (one pallas_call per fused stage; grid=(), everything VMEM-resident)
# ----------------------------------------------------------------------------
def _bn_or_identity(bn, use_bn, C):
    if use_bn:
        s, b = bn
    else:
        s = jnp.ones((C,), jnp.float32)
        b = jnp.zeros((C,), jnp.float32)
    return s.reshape(1, C), b.reshape(1, C)


def stem(x, w, cb, s, b, K):
    N, Lin, Cin = x.shape
    Cout = w.shape[-1]
    Lout = Lin                                    # stride 1 SAME
    p = max(0, (Lout - 1) + K - Lin)
    return pl.pallas_call(
        functools.partial(_stem_kernel, K=K),
        out_shape=jax.ShapeDtypeStruct((N, Lout, Cout), jnp.float32),
        scratch_shapes=[pltpu.VMEM((N, Lin + p, Cin), jnp.float32)],
    )(x, w, cb.reshape(1, Cout), s, b)


def fused_block(x, prm, blk, use_bn, K):
    N, Lin, Cin = x.shape
    Cout, stride = blk['out_ch'], blk['stride']
    Lout = -(-Lin // stride)
    p1 = max(0, (Lout - 1) * stride + K - Lin)    # conv1 SAME padding
    p2 = max(0, (Lout - 1) + K - Lout)            # conv2 SAME padding (stride 1)
    scratch = [pltpu.VMEM((N, Lin + p1, Cin), jnp.float32),
               pltpu.VMEM((N, Lout + p2, Cout), jnp.float32)]
    if blk['downsample'] and stride > 1:
        scratch.append(pltpu.VMEM((N, Lin + stride - 1, Cin), jnp.float32))

    s1, b1 = _bn_or_identity(prm['bn1'], use_bn, Cin)
    s2, b2 = _bn_or_identity(prm['bn2'], use_bn, Cout)

    kern = functools.partial(_block_kernel, K=K, stride=stride,
                             apply_preact=not blk['is_first'],
                             downsample=blk['downsample'])
    return pl.pallas_call(
        kern,
        out_shape=jax.ShapeDtypeStruct((N, Lout, Cout), jnp.float32),
        scratch_shapes=scratch,
    )(x, s1, b1,
      prm['conv1_w'], prm['conv1_b'].reshape(1, Cout),
      s2, b2,
      prm['conv2_w'], prm['conv2_b'].reshape(1, Cout))


def head(x, s, b, dense_w, dense_b):
    N, L, C = x.shape
    ncls = dense_w.shape[-1]
    return pl.pallas_call(
        _head_kernel,
        out_shape=jax.ShapeDtypeStruct((N, ncls), jnp.float32),
    )(x, s, b, dense_w, dense_b.reshape(1, ncls))


# ----------------------------------------------------------------------------
# Model configuration / parameters (mirrors ResNet1D.__init__)
# ----------------------------------------------------------------------------
def build_blocks(cfg):
    blocks = []
    for i in range(cfg['n_block']):
        is_first = (i == 0)
        downsample = (i % cfg['downsample_gap'] == 1)
        if is_first:
            in_ch = cfg['base_filters']
            out_ch = in_ch
        else:
            in_ch = int(cfg['base_filters'] * 2 ** ((i - 1) // cfg['increasefilter_gap']))
            if i % cfg['increasefilter_gap'] == 0 and i != 0:
                out_ch = in_ch * 2
            else:
                out_ch = in_ch
        blocks.append(dict(in_ch=in_ch, out_ch=out_ch, is_first=is_first,
                           downsample=downsample,
                           stride=cfg['stride'] if downsample else 1))
    return blocks


def init_params(key, cfg):
    keys = iter(jax.random.split(key, 256))
    K = cfg['kernel_size']
    eps = 1e-5

    def conv_init(cin, cout):
        bound = 1.0 / math.sqrt(cin * K)
        w = jax.random.uniform(next(keys), (cout, cin, K), jnp.float32, -bound, bound)
        b = jax.random.uniform(next(keys), (cout,), jnp.float32, -bound, bound)
        return jnp.transpose(w, (2, 1, 0)), b      # store as (K, Cin, Cout)

    def bn_init(c):
        gamma = 1.0 + 0.1 * jax.random.normal(next(keys), (c,), jnp.float32)
        beta = 0.1 * jax.random.normal(next(keys), (c,), jnp.float32)
        mean = 0.1 * jax.random.normal(next(keys), (c,), jnp.float32)
        var = jnp.ones((c,), jnp.float32)
        scale = gamma / jnp.sqrt(var + eps)
        shift = beta - mean * scale
        return scale, shift

    params = {}
    params['first_conv_w'], params['first_conv_b'] = conv_init(cfg['in_channels'],
                                                               cfg['base_filters'])
    params['first_bn'] = bn_init(cfg['base_filters'])

    params['blocks'] = []
    for blk in cfg['blocks']:
        p = {}
        p['bn1'] = bn_init(blk['in_ch'])
        p['conv1_w'], p['conv1_b'] = conv_init(blk['in_ch'], blk['out_ch'])
        p['bn2'] = bn_init(blk['out_ch'])
        p['conv2_w'], p['conv2_b'] = conv_init(blk['out_ch'], blk['out_ch'])
        params['blocks'].append(p)

    final_c = cfg['blocks'][-1]['out_ch']
    params['final_bn'] = bn_init(final_c)
    bound = 1.0 / math.sqrt(final_c)
    dw = jax.random.uniform(next(keys), (cfg['n_classes'], final_c), jnp.float32,
                            -bound, bound)
    db = jax.random.uniform(next(keys), (cfg['n_classes'],), jnp.float32, -bound, bound)
    params['dense_w'] = dw.T                       # (C, n_classes)
    params['dense_b'] = db
    return params


# ----------------------------------------------------------------------------
# Forward pass (mirrors ResNet1D.forward, eval semantics)
# ----------------------------------------------------------------------------
def resnet1d_forward(x_ncl, params, cfg):
    assert cfg['groups'] == 1      # TODO(synk): grouped conv not implemented
    K = cfg['kernel_size']
    x = jnp.transpose(x_ncl, (0, 2, 1)).astype(jnp.float32)   # NCL -> NLC

    s0, b0 = _bn_or_identity(params['first_bn'], cfg['use_bn'], cfg['base_filters'])
    out = stem(x, params['first_conv_w'], params['first_conv_b'], s0, b0, K)

    for blk, prm in zip(cfg['blocks'], params['blocks']):
        out = fused_block(out, prm, blk, cfg['use_bn'], K)

    sf, bf = _bn_or_identity(params['final_bn'], cfg['use_bn'], out.shape[-1])
    return head(out, sf, bf, params['dense_w'], params['dense_b'])


if __name__ == "__main__":
    cfg = dict(in_channels=4, base_filters=8, kernel_size=3, stride=2, groups=1,
               n_block=5, n_classes=5, downsample_gap=2, increasefilter_gap=4,
               use_bn=True, use_do=True)
    cfg['blocks'] = build_blocks(cfg)

    key = jax.random.PRNGKey(0)
    pkey, xkey = jax.random.split(key)
    params = init_params(pkey, cfg)

    # Input in PyTorch layout (n_samples, n_channel, n_length)
    x = jax.random.normal(xkey, (2, 4, 16), jnp.float32)

    fwd = jax.jit(lambda inp, prm: resnet1d_forward(inp, prm, cfg))
    logits = fwd(x, params)
    jax.block_until_ready(logits)
    assert logits.shape == (2, cfg['n_classes'])
    assert bool(jnp.all(jnp.isfinite(logits)))
    print("KERNEL_OK")
</pallas_src>

<mosaic_0001>
module attributes {stable_mosaic.version = 11 : i64} {
  func.func @_stem_kernel(%arg0: memref<2x16x4xf32, #tpu.memory_space<vmem>>, %arg1: memref<3x4x8xf32, #tpu.memory_space<vmem>>, %arg2: memref<1x8xf32, #tpu.memory_space<vmem>>, %arg3: memref<1x8xf32, #tpu.memory_space<vmem>>, %arg4: memref<1x8xf32, #tpu.memory_space<vmem>>, %arg5: memref<2x16x8xf32, #tpu.memory_space<vmem>>, %arg6: memref<2x18x4xf32, #tpu.memory_space<vmem>>) attributes {dimension_semantics = [], scalar_prefetch = 0 : i64, scratch_operands = 1 : i64, tpu.core_type = #tpu.core_type<tc>} {
    %c0 = arith.constant 0 : index
    %c0_0 = arith.constant 0 : index
    %c0_1 = arith.constant 0 : index
    %0 = vector.load %arg0[%c0, %c0_0, %c0_1] : memref<2x16x4xf32, #tpu.memory_space<vmem>>, vector<2x16x4xf32>
    %cst = arith.constant 0.000000e+00 : f32
    %1 = vector.broadcast %cst : f32 to vector<2x18x4xf32>
    %c0_2 = arith.constant 0 : index
    %c0_3 = arith.constant 0 : index
    %c0_4 = arith.constant 0 : index
    %2 = vector.load %arg6[%c0_2, %c0_3, %c0_4] : memref<2x18x4xf32, #tpu.memory_space<vmem>>, vector<2x18x4xf32>
    tpu.vector_store %arg6[%c0_2, %c0_3, %c0_4], %1 {strides = array<i32>} : memref<2x18x4xf32, #tpu.memory_space<vmem>>, vector<2x18x4xf32>,
    %c0_5 = arith.constant 0 : index
    %c1 = arith.constant 1 : index
    %c0_6 = arith.constant 0 : index
    %3 = vector.load %arg6[%c0_5, %c1, %c0_6] : memref<2x18x4xf32, #tpu.memory_space<vmem>>, vector<2x16x4xf32>
    tpu.vector_store %arg6[%c0_5, %c1, %c0_6], %0 {strides = array<i32>} : memref<2x18x4xf32, #tpu.memory_space<vmem>>, vector<2x16x4xf32>,
    %cst_7 = arith.constant 0.000000e+00 : f32
    %4 = vector.broadcast %cst_7 : f32 to vector<32x8xf32>
    %c0_8 = arith.constant 0 : index
    %c0_9 = arith.constant 0 : index
    %c0_10 = arith.constant 0 : index
    %5 = vector.load %arg6[%c0_8, %c0_9, %c0_10] : memref<2x18x4xf32, #tpu.memory_space<vmem>>, vector<2x16x4xf32>
    %6 = vector.shape_cast %5 : vector<2x16x4xf32> to vector<32x4xf32>
    %c0_11 = arith.constant 0 : index
    %c0_12 = arith.constant 0 : index
    %c0_13 = arith.constant 0 : index
    %7 = vector.load %arg1[%c0_11, %c0_12, %c0_13] : memref<3x4x8xf32, #tpu.memory_space<vmem>>, vector<1x4x8xf32>
    %8 = vector.shape_cast %7 : vector<1x4x8xf32> to vector<4x8xf32>
    %cst_14 = arith.constant dense<0.000000e+00> : vector<32x8xf32>
    %9 = tpu.matmul %6, %8, %cst_14 {dimension_numbers = #tpu.dot_dimension_numbers<[1], [0], [0], [1], [0, 0, 1, 1], [], []>} : vector<32x4xf32>, vector<4x8xf32>, vector<32x8xf32> -> vector<32x8xf32>
    %10 = arith.addf %4, %9 : vector<32x8xf32>
    %c0_15 = arith.constant 0 : index
    %c1_16 = arith.constant 1 : index
    %c0_17 = arith.constant 0 : index
    %11 = vector.load %arg6[%c0_15, %c1_16, %c0_17] : memref<2x18x4xf32, #tpu.memory_space<vmem>>, vector<2x16x4xf32>
    %12 = vector.shape_cast %11 : vector<2x16x4xf32> to vector<32x4xf32>
    %c1_18 = arith.constant 1 : index
    %c0_19 = arith.constant 0 : index
    %c0_20 = arith.constant 0 : index
    %13 = vector.load %arg1[%c1_18, %c0_19, %c0_20] : memref<3x4x8xf32, #tpu.memory_space<vmem>>, vector<1x4x8xf32>
    %14 = vector.shape_cast %13 : vector<1x4x8xf32> to vector<4x8xf32>
    %cst_21 = arith.constant dense<0.000000e+00> : vector<32x8xf32>
    %15 = tpu.matmul %12, %14, %cst_21 {dimension_numbers = #tpu.dot_dimension_numbers<[1], [0], [0], [1], [0, 0, 1, 1], [], []>} : vector<32x4xf32>, vector<4x8xf32>, vector<32x8xf32> -> vector<32x8xf32>
    %16 = arith.addf %10, %15 : vector<32x8xf32>
    %c0_22 = arith.constant 0 : index
    %c2 = arith.constant 2 : index
    %c0_23 = arith.constant 0 : index
    %17 = vector.load %arg6[%c0_22, %c2, %c0_23] : memref<2x18x4xf32, #tpu.memory_space<vmem>>, vector<2x16x4xf32>
    %18 = vector.shape_cast %17 : vector<2x16x4xf32> to vector<32x4xf32>
    %c2_24 = arith.constant 2 : index
    %c0_25 = arith.constant 0 : index
    %c0_26 = arith.constant 0 : index
    %19 = vector.load %arg1[%c2_24, %c0_25, %c0_26] : memref<3x4x8xf32, #tpu.memory_space<vmem>>, vector<1x4x8xf32>
    %20 = vector.shape_cast %19 : vector<1x4x8xf32> to vector<4x8xf32>
    %cst_27 = arith.constant dense<0.000000e+00> : vector<32x8xf32>
    %21 = tpu.matmul %18, %20, %cst_27 {dimension_numbers = #tpu.dot_dimension_numbers<[1], [0], [0], [1], [0, 0, 1, 1], [], []>} : vector<32x4xf32>, vector<4x8xf32>, vector<32x8xf32> -> vector<32x8xf32>
    %22 = arith.addf %16, %21 : vector<32x8xf32>
    %c0_28 = arith.constant 0 : index
    %c0_29 = arith.constant 0 : index
    %23 = vector.load %arg2[%c0_28, %c0_29] : memref<1x8xf32, #tpu.memory_space<vmem>>, vector<1x8xf32>
    %24 = vector.broadcast %23 : vector<1x8xf32> to vector<32x8xf32>
    %25 = arith.addf %22, %24 : vector<32x8xf32>
    %c0_30 = arith.constant 0 : index
    %c0_31 = arith.constant 0 : index
    %26 = vector.load %arg3[%c0_30, %c0_31] : memref<1x8xf32, #tpu.memory_space<vmem>>, vector<1x8xf32>
    %27 = vector.broadcast %26 : vector<1x8xf32> to vector<32x8xf32>
    %28 = arith.mulf %25, %27 : vector<32x8xf32>
    %c0_32 = arith.constant 0 : index
    %c0_33 = arith.constant 0 : index
    %29 = vector.load %arg4[%c0_32, %c0_33] : memref<1x8xf32, #tpu.memory_space<vmem>>, vector<1x8xf32>
    %30 = vector.broadcast %29 : vector<1x8xf32> to vector<32x8xf32>
    %31 = arith.addf %28, %30 : vector<32x8xf32>
    %cst_34 = arith.constant 0.000000e+00 : f32
    %32 = vector.broadcast %cst_34 : f32 to vector<32x8xf32>
    %33 = arith.maximumf %31, %32 : vector<32x8xf32>
    %34 = vector.shape_cast %33 : vector<32x8xf32> to vector<2x16x8xf32>
    %c0_35 = arith.constant 0 : index
    %c0_36 = arith.constant 0 : index
    %c0_37 = arith.constant 0 : index
    %35 = vector.load %arg5[%c0_35, %c0_36, %c0_37] : memref<2x16x8xf32, #tpu.memory_space<vmem>>, vector<2x16x8xf32>
    tpu.vector_store %arg5[%c0_35, %c0_36, %c0_37], %34 {strides = array<i32>} : memref<2x16x8xf32, #tpu.memory_space<vmem>>, vector<2x16x8xf32>,
    return
  }
}

module attributes {stable_mosaic.version = 11 : i64} {
  func.func @_block_kernel(%arg0: memref<2x16x8xf32, #tpu.memory_space<vmem>>, %arg1: memref<1x8xf32, #tpu.memory_space<vmem>>, %arg2: memref<1x8xf32, #tpu.memory_space<vmem>>, %arg3: memref<3x8x8xf32, #tpu.memory_space<vmem>>, %arg4: memref<1x8xf32, #tpu.memory_space<vmem>>, %arg5: memref<1x8xf32, #tpu.memory_space<vmem>>, %arg6: memref<1x8xf32, #tpu.memory_space<vmem>>, %arg7: memref<3x8x8xf32, #tpu.memory_space<vmem>>, %arg8: memref<1x8xf32, #tpu.memory_space<vmem>>, %arg9: memref<2x8x8xf32, #tpu.memory_space<vmem>>, %arg10: memref<2x17x8xf32, #tpu.memory_space<vmem>>, %arg11: memref<2x10x8xf32, #tpu.memory_space<vmem>>, %arg12: memref<2x17x8xf32, #tpu.memory_space<vmem>>) attributes {dimension_semantics = [], scalar_prefetch = 0 : i64, scratch_operands = 3 : i64, tpu.core_type = #tpu.core_type<tc>} {
    %c0 = arith.constant 0 : index
    %c0_0 = arith.constant 0 : index
    %c0_1 = arith.constant 0 : index
    %0 = vector.load %arg0[%c0, %c0_0, %c0_1] : memref<2x16x8xf32, #tpu.memory_space<vmem>>, vector<2x16x8xf32>
    %1 = vector.shape_cast %0 : vector<2x16x8xf32> to vector<32x8xf32>
    %c0_2 = arith.constant 0 : index
    %c0_3 = arith.constant 0 : index
    %2 = vector.load %arg1[%c0_2, %c0_3] : memref<1x8xf32, #tpu.memory_space<vmem>>, vector<1x8xf32>
    %3 = vector.broadcast %2 : vector<1x8xf32> to vector<32x8xf32>
    %4 = arith.mulf %1, %3 : vector<32x8xf32>
    %c0_4 = arith.constant 0 : index
    %c0_5 = arith.constant 0 : index
    %5 = vector.load %arg2[%c0_4, %c0_5] : memref<1x8xf32, #tpu.memory_space<vmem>>, vector<1x8xf32>
    %6 = vector.broadcast %5 : vector<1x8xf32> to vector<32x8xf32>
    %7 = arith.addf %4, %6 : vector<32x8xf32>
    %cst = arith.constant 0.000000e+00 : f32
    %8 = vector.broadcast %cst : f32 to vector<32x8xf32>
    %9 = arith.maximumf %7, %8 : vector<32x8xf32>
    %10 = vector.shape_cast %9 : vector<32x8xf32> to vector<2x16x8xf32>
    %cst_6 = arith.constant 0.000000e+00 : f32
    %11 = vector.broadcast %cst_6 : f32 to vector<2x17x8xf32>
    %c0_7 = arith.constant 0 : index
    %c0_8 = arith.constant 0 : index
    %c0_9 = arith.constant 0 : index
    %12 = vector.load %arg10[%c0_7, %c0_8, %c0_9] : memref<2x17x8xf32, #tpu.memory_space<vmem>>, vector<2x17x8xf32>
    tpu.vector_store %arg10[%c0_7, %c0_8, %c0_9], %11 {strides = array<i32>} : memref<2x17x8xf32, #tpu.memory_space<vmem>>, vector<2x17x8xf32>,
    %c0_10 = arith.constant 0 : index
    %c0_11 = arith.constant 0 : index
    %c0_12 = arith.constant 0 : index
    %13 = vector.load %arg10[%c0_10, %c0_11, %c0_12] : memref<2x17x8xf32, #tpu.memory_space<vmem>>, vector<2x16x8xf32>
    tpu.vector_store %arg10[%c0_10, %c0_11, %c0_12], %10 {strides = array<i32>} : memref<2x17x8xf32, #tpu.memory_space<vmem>>, vector<2x16x8xf32>,
    %cst_13 = arith.constant 0.000000e+00 : f32
    %14 = vector.broadcast %cst_13 : f32 to vector<16x8xf32>
    %c0_14 = arith.constant 0 : index
    %c0_15 = arith.constant 0 : index
    %c0_16 = arith.constant 0 : index
    %15 = tpu.strided_load %arg10[%c0_14, %c0_15, %c0_16] {strides = array<i32: 1, 2, 1>} : memref<2x17x8xf32, #tpu.memory_space<vmem>>, vector<2x8x8xf32>
    %16 = vector.shape_cast %15 : vector<2x8x8xf32> to vector<16x8xf32>
    %c0_17 = arith.constant 0 : index
    %c0_18 = arith.constant 0 : index
    %c0_19 = arith.constant 0 : index
    %17 = vector.load %arg3[%c0_17, %c0_18, %c0_19] : memref<3x8x8xf32, #tpu.memory_space<vmem>>, vector<1x8x8xf32>
    %18 = vector.shape_cast %17 : vector<1x8x8xf32> to vector<8x8xf32>
    %cst_20 = arith.constant dense<0.000000e+00> : vector<16x8xf32>
    %19 = tpu.matmul %16, %18, %cst_20 {dimension_numbers = #tpu.dot_dimension_numbers<[1], [0], [0], [1], [0, 0, 1, 1], [], []>} : vector<16x8xf32>, vector<8x8xf32>, vector<16x8xf32> -> vector<16x8xf32>
    %20 = arith.addf %14, %19 : vector<16x8xf32>
    %c0_21 = arith.constant 0 : index
    %c1 = arith.constant 1 : index
    %c0_22 = arith.constant 0 : index
    %21 = tpu.strided_load %arg10[%c0_21, %c1, %c0_22] {strides = array<i32: 1, 2, 1>} : memref<2x17x8xf32, #tpu.memory_space<vmem>>, vector<2x8x8xf32>
    %22 = vector.shape_cast %21 : vector<2x8x8xf32> to vector<16x8xf32>
    %c1_23 = arith.constant 1 : index
    %c0_24 = arith.constant 0 : index
    %c0_25 = arith.constant 0 : index
    %23 = vector.load %arg3[%c1_23, %c0_24, %c0_25] : memref<3x8x8xf32, #tpu.memory_space<vmem>>, vector<1x8x8xf32>
    %24 = vector.shape_cast %23 : vector<1x8x8xf32> to vector<8x8xf32>
    %cst_26 = arith.constant dense<0.000000e+00> : vector<16x8xf32>
    %25 = tpu.matmul %22, %24, %cst_26 {dimension_numbers = #tpu.dot_dimension_numbers<[1], [0], [0], [1], [0, 0, 1, 1], [], []>} : vector<16x8xf32>, vector<8x8xf32>, vector<16x8xf32> -> vector<16x8xf32>
    %26 = arith.addf %20, %25 : vector<16x8xf32>
    %c0_27 = arith.constant 0 : index
    %c2 = arith.constant 2 : index
    %c0_28 = arith.constant 0 : index
    %27 = tpu.strided_load %arg10[%c0_27, %c2, %c0_28] {strides = array<i32: 1, 2, 1>} : memref<2x17x8xf32, #tpu.memory_space<vmem>>, vector<2x8x8xf32>
    %28 = vector.shape_cast %27 : vector<2x8x8xf32> to vector<16x8xf32>
    %c2_29 = arith.constant 2 : index
    %c0_30 = arith.constant 0 : index
    %c0_31 = arith.constant 0 : index
    %29 = vector.load %arg3[%c2_29, %c0_30, %c0_31] : memref<3x8x8xf32, #tpu.memory_space<vmem>>, vector<1x8x8xf32>
    %30 = vector.shape_cast %29 : vector<1x8x8xf32> to vector<8x8xf32>
    %cst_32 = arith.constant dense<0.000000e+00> : vector<16x8xf32>
    %31 = tpu.matmul %28, %30, %cst_32 {dimension_numbers = #tpu.dot_dimension_numbers<[1], [0], [0], [1], [0, 0, 1, 1], [], []>} : vector<16x8xf32>, vector<8x8xf32>, vector<16x8xf32> -> vector<16x8xf32>
    %32 = arith.addf %26, %31 : vector<16x8xf32>
    %c0_33 = arith.constant 0 : index
    %c0_34 = arith.constant 0 : index
    %33 = vector.load %arg4[%c0_33, %c0_34] : memref<1x8xf32, #tpu.memory_space<vmem>>, vector<1x8xf32>
    %34 = vector.broadcast %33 : vector<1x8xf32> to vector<16x8xf32>
    %35 = arith.addf %32, %34 : vector<16x8xf32>
    %c0_35 = arith.constant 0 : index
    %c0_36 = arith.constant 0 : index
    %36 = vector.load %arg5[%c0_35, %c0_36] : memref<1x8xf32, #tpu.memory_space<vmem>>, vector<1x8xf32>
    %37 = vector.broadcast %36 : vector<1x8xf32> to vector<16x8xf32>
    %38 = arith.mulf %35, %37 : vector<16x8xf32>
    %c0_37 = arith.constant 0 : index
    %c0_38 = arith.constant 0 : index
    %39 = vector.load %arg6[%c0_37, %c0_38] : memref<1x8xf32, #tpu.memory_space<vmem>>, vector<1x8xf32>
    %40 = vector.broadcast %39 : vector<1x8xf32> to vector<16x8xf32>
    %41 = arith.addf %38, %40 : vector<16x8xf32>
    %cst_39 = arith.constant 0.000000e+00 : f32
    %42 = vector.broadcast %cst_39 : f32 to vector<16x8xf32>
    %43 = arith.maximumf %41, %42 : vector<16x8xf32>
    %44 = vector.shape_cast %43 : vector<16x8xf32> to vector<2x8x8xf32>
    %cst_40 = arith.constant 0.000000e+00 : f32
    %45 = vector.broadcast %cst_40 : f32 to vector<2x10x8xf32>
    %c0_41 = arith.constant 0 : index
    %c0_42 = arith.constant 0 : index
    %c0_43 = arith.constant 0 : index
    %46 = vector.load %arg11[%c0_41, %c0_42, %c0_43] : memref<2x10x8xf32, #tpu.memory_space<vmem>>, vector<2x10x8xf32>
    tpu.vector_store %arg11[%c0_41, %c0_42, %c0_43], %45 {strides = array<i32>} : memref<2x10x8xf32, #tpu.memory_space<vmem>>, vector<2x10x8xf32>,
    %c0_44 = arith.constant 0 : index
    %c1_45 = arith.constant 1 : index
    %c0_46 = arith.constant 0 : index
    %47 = vector.load %arg11[%c0_44, %c1_45, %c0_46] : memref<2x10x8xf32, #tpu.memory_space<vmem>>, vector<2x8x8xf32>
    tpu.vector_store %arg11[%c0_44, %c1_45, %c0_46], %44 {strides = array<i32>} : memref<2x10x8xf32, #tpu.memory_space<vmem>>, vector<2x8x8xf32>,
    %cst_47 = arith.constant 0.000000e+00 : f32
    %48 = vector.broadcast %cst_47 : f32 to vector<16x8xf32>
    %c0_48 = arith.constant 0 : index
    %c0_49 = arith.constant 0 : index
    %c0_50 = arith.constant 0 : index
    %49 = vector.load %arg11[%c0_48, %c0_49, %c0_50] : memref<2x10x8xf32, #tpu.memory_space<vmem>>, vector<2x8x8xf32>
    %50 = vector.shape_cast %49 : vector<2x8x8xf32> to vector<16x8xf32>
    %c0_51 = arith.constant 0 : index
    %c0_52 = arith.constant 0 : index
    %c0_53 = arith.constant 0 : index
    %51 = vector.load %arg7[%c0_51, %c0_52, %c0_53] : memref<3x8x8xf32, #tpu.memory_space<vmem>>, vector<1x8x8xf32>
    %52 = vector.shape_cast %51 : vector<1x8x8xf32> to vector<8x8xf32>
    %cst_54 = arith.constant dense<0.000000e+00> : vector<16x8xf32>
    %53 = tpu.matmul %50, %52, %cst_54 {dimension_numbers = #tpu.dot_dimension_numbers<[1], [0], [0], [1], [0, 0, 1, 1], [], []>} : vector<16x8xf32>, vector<8x8xf32>, vector<16x8xf32> -> vector<16x8xf32>
    %54 = arith.addf %48, %53 : vector<16x8xf32>
    %c0_55 = arith.constant 0 : index
    %c1_56 = arith.constant 1 : index
    %c0_57 = arith.constant 0 : index
    %55 = vector.load %arg11[%c0_55, %c1_56, %c0_57] : memref<2x10x8xf32, #tpu.memory_space<vmem>>, vector<2x8x8xf32>
    %56 = vector.shape_cast %55 : vector<2x8x8xf32> to vector<16x8xf32>
    %c1_58 = arith.constant 1 : index
    %c0_59 = arith.constant 0 : index
    %c0_60 = arith.constant 0 : index
    %57 = vector.load %arg7[%c1_58, %c0_59, %c0_60] : memref<3x8x8xf32, #tpu.memory_space<vmem>>, vector<1x8x8xf32>
    %58 = vector.shape_cast %57 : vector<1x8x8xf32> to vector<8x8xf32>
    %cst_61 = arith.constant dense<0.000000e+00> : vector<16x8xf32>
    %59 = tpu.matmul %56, %58, %cst_61 {dimension_numbers = #tpu.dot_dimension_numbers<[1], [0], [0], [1], [0, 0, 1, 1], [], []>} : vector<16x8xf32>, vector<8x8xf32>, vector<16x8xf32> -> vector<16x8xf32>
    %60 = arith.addf %54, %59 : vector<16x8xf32>
    %c0_62 = arith.constant 0 : index
    %c2_63 = arith.constant 2 : index
    %c0_64 = arith.constant 0 : index
    %61 = vector.load %arg11[%c0_62, %c2_63, %c0_64] : memref<2x10x8xf32, #tpu.memory_space<vmem>>, vector<2x8x8xf32>
    %62 = vector.shape_cast %61 : vector<2x8x8xf32> to vector<16x8xf32>
    %c2_65 = arith.constant 2 : index
    %c0_66 = arith.constant 0 : index
    %c0_67 = arith.constant 0 : index
    %63 = vector.load %arg7[%c2_65, %c0_66, %c0_67] : memref<3x8x8xf32, #tpu.memory_space<vmem>>, vector<1x8x8xf32>
    %64 = vector.shape_cast %63 : vector<1x8x8xf32> to vector<8x8xf32>
    %cst_68 = arith.constant dense<0.000000e+00> : vector<16x8xf32>
    %65 = tpu.matmul %62, %64, %cst_68 {dimension_numbers = #tpu.dot_dimension_numbers<[1], [0], [0], [1], [0, 0, 1, 1], [], []>} : vector<16x8xf32>, vector<8x8xf32>, vector<16x8xf32> -> vector<16x8xf32>
    %66 = arith.addf %60, %65 : vector<16x8xf32>
    %c0_69 = arith.constant 0 : index
    %c0_70 = arith.constant 0 : index
    %67 = vector.load %arg8[%c0_69, %c0_70] : memref<1x8xf32, #tpu.memory_space<vmem>>, vector<1x8xf32>
    %68 = vector.broadcast %67 : vector<1x8xf32> to vector<16x8xf32>
    %69 = arith.addf %66, %68 : vector<16x8xf32>
    %cst_71 = arith.constant 0.000000e+00 : f32
    %70 = vector.broadcast %cst_71 : f32 to vector<2x17x8xf32>
    %c0_72 = arith.constant 0 : index
    %c0_73 = arith.constant 0 : index
    %c0_74 = arith.constant 0 : index
    %71 = vector.load %arg12[%c0_72, %c0_73, %c0_74] : memref<2x17x8xf32, #tpu.memory_space<vmem>>, vector<2x17x8xf32>
    tpu.vector_store %arg12[%c0_72, %c0_73, %c0_74], %70 {strides = array<i32>} : memref<2x17x8xf32, #tpu.memory_space<vmem>>, vector<2x17x8xf32>,
    %c0_75 = arith.constant 0 : index
    %c0_76 = arith.constant 0 : index
    %c0_77 = arith.constant 0 : index
    %72 = vector.load %arg12[%c0_75, %c0_76, %c0_77] : memref<2x17x8xf32, #tpu.memory_space<vmem>>, vector<2x16x8xf32>
    tpu.vector_store %arg12[%c0_75, %c0_76, %c0_77], %0 {strides = array<i32>} : memref<2x17x8xf32, #tpu.memory_space<vmem>>, vector<2x16x8xf32>,
    %c0_78 = arith.constant 0 : index
    %c0_79 = arith.constant 0 : index
    %c0_80 = arith.constant 0 : index
    %73 = tpu.strided_load %arg12[%c0_78, %c0_79, %c0_80] {strides = array<i32: 1, 2, 1>} : memref<2x17x8xf32, #tpu.memory_space<vmem>>, vector<2x8x8xf32>
    %c0_81 = arith.constant 0 : index
    %c1_82 = arith.constant 1 : index
    %c0_83 = arith.constant 0 : index
    %74 = tpu.strided_load %arg12[%c0_81, %c1_82, %c0_83] {strides = array<i32: 1, 2, 1>} : memref<2x17x8xf32, #tpu.memory_space<vmem>>, vector<2x8x8xf32>
    %75 = arith.maximumf %73, %74 : vector<2x8x8xf32>
    %76 = vector.shape_cast %75 : vector<2x8x8xf32> to vector<16x8xf32>
    %77 = arith.addf %69, %76 : vector<16x8xf32>
    %78 = vector.shape_cast %77 : vector<16x8xf32> to vector<2x8x8xf32>
    %c0_84 = arith.constant 0 : index
    %c0_85 = arith.constant 0 : index
    %c0_86 = arith.constant 0 : index
    %79 = vector.load %arg9[%c0_84, %c0_85, %c0_86] : memref<2x8x8xf32, #tpu.memory_space<vmem>>, vector<2x8x8xf32>
    tpu.vector_store %arg9[%c0_84, %c0_85, %c0_86], %78 {strides = array<i32>} : memref<2x8x8xf32, #tpu.memory_space<vmem>>, vector<2x8x8xf32>,
    return
  }
}

module attributes {stable_mosaic.version = 11 : i64} {
  func.func @_block_kernel(%arg0: memref<2x16x8xf32, #tpu.memory_space<vmem>>, %arg1: memref<1x8xf32, #tpu.memory_space<vmem>>, %arg2: memref<1x8xf32, #tpu.memory_space<vmem>>, %arg3: memref<3x8x8xf32, #tpu.memory_space<vmem>>, %arg4: memref<1x8xf32, #tpu.memory_space<vmem>>, %arg5: memref<1x8xf32, #tpu.memory_space<vmem>>, %arg6: memref<1x8xf32, #tpu.memory_space<vmem>>, %arg7: memref<3x8x8xf32, #tpu.memory_space<vmem>>, %arg8: memref<1x8xf32, #tpu.memory_space<vmem>>, %arg9: memref<2x16x8xf32, #tpu.memory_space<vmem>>, %arg10: memref<2x18x8xf32, #tpu.memory_space<vmem>>, %arg11: memref<2x18x8xf32, #tpu.memory_space<vmem>>) attributes {dimension_semantics = [], scalar_prefetch = 0 : i64, scratch_operands = 2 : i64, tpu.core_type = #tpu.core_type<tc>} {
    %c0 = arith.constant 0 : index
    %c0_0 = arith.constant 0 : index
    %c0_1 = arith.constant 0 : index
    %0 = vector.load %arg0[%c0, %c0_0, %c0_1] : memref<2x16x8xf32, #tpu.memory_space<vmem>>, vector<2x16x8xf32>
    %1 = vector.shape_cast %0 : vector<2x16x8xf32> to vector<32x8xf32>
    %2 = vector.shape_cast %1 : vector<32x8xf32> to vector<2x16x8xf32>
    %cst = arith.constant 0.000000e+00 : f32
    %3 = vector.broadcast %cst : f32 to vector<2x18x8xf32>
    %c0_2 = arith.constant 0 : index
    %c0_3 = arith.constant 0 : index
    %c0_4 = arith.constant 0 : index
    %4 = vector.load %arg10[%c0_2, %c0_3, %c0_4] : memref<2x18x8xf32, #tpu.memory_space<vmem>>, vector<2x18x8xf32>
    tpu.vector_store %arg10[%c0_2, %c0_3, %c0_4], %3 {strides = array<i32>} : memref<2x18x8xf32, #tpu.memory_space<vmem>>, vector<2x18x8xf32>,
    %c0_5 = arith.constant 0 : index
    %c1 = arith.constant 1 : index
    %c0_6 = arith.constant 0 : index
    %5 = vector.load %arg10[%c0_5, %c1, %c0_6] : memref<2x18x8xf32, #tpu.memory_space<vmem>>, vector<2x16x8xf32>
    tpu.vector_store %arg10[%c0_5, %c1, %c0_6], %2 {strides = array<i32>} : memref<2x18x8xf32, #tpu.memory_space<vmem>>, vector<2x16x8xf32>,
    %cst_7 = arith.constant 0.000000e+00 : f32
    %6 = vector.broadcast %cst_7 : f32 to vector<32x8xf32>
    %c0_8 = arith.constant 0 : index
    %c0_9 = arith.constant 0 : index
    %c0_10 = arith.constant 0 : index
    %7 = vector.load %arg10[%c0_8, %c0_9, %c0_10] : memref<2x18x8xf32, #tpu.memory_space<vmem>>, vector<2x16x8xf32>
    %8 = vector.shape_cast %7 : vector<2x16x8xf32> to vector<32x8xf32>
    %c0_11 = arith.constant 0 : index
    %c0_12 = arith.constant 0 : index
    %c0_13 = arith.constant 0 : index
    %9 = vector.load %arg3[%c0_11, %c0_12, %c0_13] : memref<3x8x8xf32, #tpu.memory_space<vmem>>, vector<1x8x8xf32>
    %10 = vector.shape_cast %9 : vector<1x8x8xf32> to vector<8x8xf32>
    %cst_14 = arith.constant dense<0.000000e+00> : vector<32x8xf32>
    %11 = tpu.matmul %8, %10, %cst_14 {dimension_numbers = #tpu.dot_dimension_numbers<[1], [0], [0], [1], [0, 0, 1, 1], [], []>} : vector<32x8xf32>, vector<8x8xf32>, vector<32x8xf32> -> vector<32x8xf32>
    %12 = arith.addf %6, %11 : vector<32x8xf32>
    %c0_15 = arith.constant 0 : index
    %c1_16 = arith.constant 1 : index
    %c0_17 = arith.constant 0 : index
    %13 = vector.load %arg10[%c0_15, %c1_16, %c0_17] : memref<2x18x8xf32, #tpu.memory_space<vmem>>, vector<2x16x8xf32>
    %14 = vector.shape_cast %13 : vector<2x16x8xf32> to vector<32x8xf32>
    %c1_18 = arith.constant 1 : index
    %c0_19 = arith.constant 0 : index
    %c0_20 = arith.constant 0 : index
    %15 = vector.load %arg3[%c1_18, %c0_19, %c0_20] : memref<3x8x8xf32, #tpu.memory_space<vmem>>, vector<1x8x8xf32>
    %16 = vector.shape_cast %15 : vector<1x8x8xf32> to vector<8x8xf32>
    %cst_21 = arith.constant dense<0.000000e+00> : vector<32x8xf32>
    %17 = tpu.matmul %14, %16, %cst_21 {dimension_numbers = #tpu.dot_dimension_numbers<[1], [0], [0], [1], [0, 0, 1, 1], [], []>} : vector<32x8xf32>, vector<8x8xf32>, vector<32x8xf32> -> vector<32x8xf32>
    %18 = arith.addf %12, %17 : vector<32x8xf32>
    %c0_22 = arith.constant 0 : index
    %c2 = arith.constant 2 : index
    %c0_23 = arith.constant 0 : index
    %19 = vector.load %arg10[%c0_22, %c2, %c0_23] : memref<2x18x8xf32, #tpu.memory_space<vmem>>, vector<2x16x8xf32>
    %20 = vector.shape_cast %19 : vector<2x16x8xf32> to vector<32x8xf32>
    %c2_24 = arith.constant 2 : index
    %c0_25 = arith.constant 0 : index
    %c0_26 = arith.constant 0 : index
    %21 = vector.load %arg3[%c2_24, %c0_25, %c0_26] : memref<3x8x8xf32, #tpu.memory_space<vmem>>, vector<1x8x8xf32>
    %22 = vector.shape_cast %21 : vector<1x8x8xf32> to vector<8x8xf32>
    %cst_27 = arith.constant dense<0.000000e+00> : vector<32x8xf32>
    %23 = tpu.matmul %20, %22, %cst_27 {dimension_numbers = #tpu.dot_dimension_numbers<[1], [0], [0], [1], [0, 0, 1, 1], [], []>} : vector<32x8xf32>, vector<8x8xf32>, vector<32x8xf32> -> vector<32x8xf32>
    %24 = arith.addf %18, %23 : vector<32x8xf32>
    %c0_28 = arith.constant 0 : index
    %c0_29 = arith.constant 0 : index
    %25 = vector.load %arg4[%c0_28, %c0_29] : memref<1x8xf32, #tpu.memory_space<vmem>>, vector<1x8xf32>
    %26 = vector.broadcast %25 : vector<1x8xf32> to vector<32x8xf32>
    %27 = arith.addf %24, %26 : vector<32x8xf32>
    %c0_30 = arith.constant 0 : index
    %c0_31 = arith.constant 0 : index
    %28 = vector.load %arg5[%c0_30, %c0_31] : memref<1x8xf32, #tpu.memory_space<vmem>>, vector<1x8xf32>
    %29 = vector.broadcast %28 : vector<1x8xf32> to vector<32x8xf32>
    %30 = arith.mulf %27, %29 : vector<32x8xf32>
    %c0_32 = arith.constant 0 : index
    %c0_33 = arith.constant 0 : index
    %31 = vector.load %arg6[%c0_32, %c0_33] : memref<1x8xf32, #tpu.memory_space<vmem>>, vector<1x8xf32>
    %32 = vector.broadcast %31 : vector<1x8xf32> to vector<32x8xf32>
    %33 = arith.addf %30, %32 : vector<32x8xf32>
    %cst_34 = arith.constant 0.000000e+00 : f32
    %34 = vector.broadcast %cst_34 : f32 to vector<32x8xf32>
    %35 = arith.maximumf %33, %34 : vector<32x8xf32>
    %36 = vector.shape_cast %35 : vector<32x8xf32> to vector<2x16x8xf32>
    %cst_35 = arith.constant 0.000000e+00 : f32
    %37 = vector.broadcast %cst_35 : f32 to vector<2x18x8xf32>
    %c0_36 = arith.constant 0 : index
    %c0_37 = arith.constant 0 : index
    %c0_38 = arith.constant 0 : index
    %38 = vector.load %arg11[%c0_36, %c0_37, %c0_38] : memref<2x18x8xf32, #tpu.memory_space<vmem>>, vector<2x18x8xf32>
    tpu.vector_store %arg11[%c0_36, %c0_37, %c0_38], %37 {strides = array<i32>} : memref<2x18x8xf32, #tpu.memory_space<vmem>>, vector<2x18x8xf32>,
    %c0_39 = arith.constant 0 : index
    %c1_40 = arith.constant 1 : index
    %c0_41 = arith.constant 0 : index
    %39 = vector.load %arg11[%c0_39, %c1_40, %c0_41] : memref<2x18x8xf32, #tpu.memory_space<vmem>>, vector<2x16x8xf32>
    tpu.vector_store %arg11[%c0_39, %c1_40, %c0_41], %36 {strides = array<i32>} : memref<2x18x8xf32, #tpu.memory_space<vmem>>, vector<2x16x8xf32>,
    %cst_42 = arith.constant 0.000000e+00 : f32
    %40 = vector.broadcast %cst_42 : f32 to vector<32x8xf32>
    %c0_43 = arith.constant 0 : index
    %c0_44 = arith.constant 0 : index
    %c0_45 = arith.constant 0 : index
    %41 = vector.load %arg11[%c0_43, %c0_44, %c0_45] : memref<2x18x8xf32, #tpu.memory_space<vmem>>, vector<2x16x8xf32>
    %42 = vector.shape_cast %41 : vector<2x16x8xf32> to vector<32x8xf32>
    %c0_46 = arith.constant 0 : index
    %c0_47 = arith.constant 0 : index
    %c0_48 = arith.constant 0 : index
    %43 = vector.load %arg7[%c0_46, %c0_47, %c0_48] : memref<3x8x8xf32, #tpu.memory_space<vmem>>, vector<1x8x8xf32>
    %44 = vector.shape_cast %43 : vector<1x8x8xf32> to vector<8x8xf32>
    %cst_49 = arith.constant dense<0.000000e+00> : vector<32x8xf32>
    %45 = tpu.matmul %42, %44, %cst_49 {dimension_numbers = #tpu.dot_dimension_numbers<[1], [0], [0], [1], [0, 0, 1, 1], [], []>} : vector<32x8xf32>, vector<8x8xf32>, vector<32x8xf32> -> vector<32x8xf32>
    %46 = arith.addf %40, %45 : vector<32x8xf32>
    %c0_50 = arith.constant 0 : index
    %c1_51 = arith.constant 1 : index
    %c0_52 = arith.constant 0 : index
    %47 = vector.load %arg11[%c0_50, %c1_51, %c0_52] : memref<2x18x8xf32, #tpu.memory_space<vmem>>, vector<2x16x8xf32>
    %48 = vector.shape_cast %47 : vector<2x16x8xf32> to vector<32x8xf32>
    %c1_53 = arith.constant 1 : index
    %c0_54 = arith.constant 0 : index
    %c0_55 = arith.constant 0 : index
    %49 = vector.load %arg7[%c1_53, %c0_54, %c0_55] : memref<3x8x8xf32, #tpu.memory_space<vmem>>, vector<1x8x8xf32>
    %50 = vector.shape_cast %49 : vector<1x8x8xf32> to vector<8x8xf32>
    %cst_56 = arith.constant dense<0.000000e+00> : vector<32x8xf32>
    %51 = tpu.matmul %48, %50, %cst_56 {dimension_numbers = #tpu.dot_dimension_numbers<[1], [0], [0], [1], [0, 0, 1, 1], [], []>} : vector<32x8xf32>, vector<8x8xf32>, vector<32x8xf32> -> vector<32x8xf32>
    %52 = arith.addf %46, %51 : vector<32x8xf32>
    %c0_57 = arith.constant 0 : index
    %c2_58 = arith.constant 2 : index
    %c0_59 = arith.constant 0 : index
    %53 = vector.load %arg11[%c0_57, %c2_58, %c0_59] : memref<2x18x8xf32, #tpu.memory_space<vmem>>, vector<2x16x8xf32>
    %54 = vector.shape_cast %53 : vector<2x16x8xf32> to vector<32x8xf32>
    %c2_60 = arith.constant 2 : index
    %c0_61 = arith.constant 0 : index
    %c0_62 = arith.constant 0 : index
    %55 = vector.load %arg7[%c2_60, %c0_61, %c0_62] : memref<3x8x8xf32, #tpu.memory_space<vmem>>, vector<1x8x8xf32>
    %56 = vector.shape_cast %55 : vector<1x8x8xf32> to vector<8x8xf32>
    %cst_63 = arith.constant dense<0.000000e+00> : vector<32x8xf32>
    %57 = tpu.matmul %54, %56, %cst_63 {dimension_numbers = #tpu.dot_dimension_numbers<[1], [0], [0], [1], [0, 0, 1, 1], [], []>} : vector<32x8xf32>, vector<8x8xf32>, vector<32x8xf32> -> vector<32x8xf32>
    %58 = arith.addf %52, %57 : vector<32x8xf32>
    %c0_64 = arith.constant 0 : index
    %c0_65 = arith.constant 0 : index
    %59 = vector.load %arg8[%c0_64, %c0_65] : memref<1x8xf32, #tpu.memory_space<vmem>>, vector<1x8xf32>
    %60 = vector.broadcast %59 : vector<1x8xf32> to vector<32x8xf32>
    %61 = arith.addf %58, %60 : vector<32x8xf32>
    %62 = arith.addf %61, %1 : vector<32x8xf32>
    %63 = vector.shape_cast %62 : vector<32x8xf32> to vector<2x16x8xf32>
    %c0_66 = arith.constant 0 : index
    %c0_67 = arith.constant 0 : index
    %c0_68 = arith.constant 0 : index
    %64 = vector.load %arg9[%c0_66, %c0_67, %c0_68] : memref<2x16x8xf32, #tpu.memory_space<vmem>>, vector<2x16x8xf32>
    tpu.vector_store %arg9[%c0_66, %c0_67, %c0_68], %63 {strides = array<i32>} : memref<2x16x8xf32, #tpu.memory_space<vmem>>, vector<2x16x8xf32>,
    return
  }
}

module attributes {stable_mosaic.version = 11 : i64} {
  func.func @_block_kernel(%arg0: memref<2x8x8xf32, #tpu.memory_space<vmem>>, %arg1: memref<1x8xf32, #tpu.memory_space<vmem>>, %arg2: memref<1x8xf32, #tpu.memory_space<vmem>>, %arg3: memref<3x8x8xf32, #tpu.memory_space<vmem>>, %arg4: memref<1x8xf32, #tpu.memory_space<vmem>>, %arg5: memref<1x8xf32, #tpu.memory_space<vmem>>, %arg6: memref<1x8xf32, #tpu.memory_space<vmem>>, %arg7: memref<3x8x8xf32, #tpu.memory_space<vmem>>, %arg8: memref<1x8xf32, #tpu.memory_space<vmem>>, %arg9: memref<2x8x8xf32, #tpu.memory_space<vmem>>, %arg10: memref<2x10x8xf32, #tpu.memory_space<vmem>>, %arg11: memref<2x10x8xf32, #tpu.memory_space<vmem>>) attributes {dimension_semantics = [], scalar_prefetch = 0 : i64, scratch_operands = 2 : i64, tpu.core_type = #tpu.core_type<tc>} {
    %c0 = arith.constant 0 : index
    %c0_0 = arith.constant 0 : index
    %c0_1 = arith.constant 0 : index
    %0 = vector.load %arg0[%c0, %c0_0, %c0_1] : memref<2x8x8xf32, #tpu.memory_space<vmem>>, vector<2x8x8xf32>
    %1 = vector.shape_cast %0 : vector<2x8x8xf32> to vector<16x8xf32>
    %c0_2 = arith.constant 0 : index
    %c0_3 = arith.constant 0 : index
    %2 = vector.load %arg1[%c0_2, %c0_3] : memref<1x8xf32, #tpu.memory_space<vmem>>, vector<1x8xf32>
    %3 = vector.broadcast %2 : vector<1x8xf32> to vector<16x8xf32>
    %4 = arith.mulf %1, %3 : vector<16x8xf32>
    %c0_4 = arith.constant 0 : index
    %c0_5 = arith.constant 0 : index
    %5 = vector.load %arg2[%c0_4, %c0_5] : memref<1x8xf32, #tpu.memory_space<vmem>>, vector<1x8xf32>
    %6 = vector.broadcast %5 : vector<1x8xf32> to vector<16x8xf32>
    %7 = arith.addf %4, %6 : vector<16x8xf32>
    %cst = arith.constant 0.000000e+00 : f32
    %8 = vector.broadcast %cst : f32 to vector<16x8xf32>
    %9 = arith.maximumf %7, %8 : vector<16x8xf32>
    %10 = vector.shape_cast %9 : vector<16x8xf32> to vector<2x8x8xf32>
    %cst_6 = arith.constant 0.000000e+00 : f32
    %11 = vector.broadcast %cst_6 : f32 to vector<2x10x8xf32>
    %c0_7 = arith.constant 0 : index
    %c0_8 = arith.constant 0 : index
    %c0_9 = arith.constant 0 : index
    %12 = vector.load %arg10[%c0_7, %c0_8, %c0_9] : memref<2x10x8xf32, #tpu.memory_space<vmem>>, vector<2x10x8xf32>
    tpu.vector_store %arg10[%c0_7, %c0_8, %c0_9], %11 {strides = array<i32>} : memref<2x10x8xf32, #tpu.memory_space<vmem>>, vector<2x10x8xf32>,
    %c0_10 = arith.constant 0 : index
    %c1 = arith.constant 1 : index
    %c0_11 = arith.constant 0 : index
    %13 = vector.load %arg10[%c0_10, %c1, %c0_11] : memref<2x10x8xf32, #tpu.memory_space<vmem>>, vector<2x8x8xf32>
    tpu.vector_store %arg10[%c0_10, %c1, %c0_11], %10 {strides = array<i32>} : memref<2x10x8xf32, #tpu.memory_space<vmem>>, vector<2x8x8xf32>,
    %cst_12 = arith.constant 0.000000e+00 : f32
    %14 = vector.broadcast %cst_12 : f32 to vector<16x8xf32>
    %c0_13 = arith.constant 0 : index
    %c0_14 = arith.constant 0 : index
    %c0_15 = arith.constant 0 : index
    %15 = vector.load %arg10[%c0_13, %c0_14, %c0_15] : memref<2x10x8xf32, #tpu.memory_space<vmem>>, vector<2x8x8xf32>
    %16 = vector.shape_cast %15 : vector<2x8x8xf32> to vector<16x8xf32>
    %c0_16 = arith.constant 0 : index
    %c0_17 = arith.constant 0 : index
    %c0_18 = arith.constant 0 : index
    %17 = vector.load %arg3[%c0_16, %c0_17, %c0_18] : memref<3x8x8xf32, #tpu.memory_space<vmem>>, vector<1x8x8xf32>
    %18 = vector.shape_cast %17 : vector<1x8x8xf32> to vector<8x8xf32>
    %cst_19 = arith.constant dense<0.000000e+00> : vector<16x8xf32>
    %19 = tpu.matmul %16, %18, %cst_19 {dimension_numbers = #tpu.dot_dimension_numbers<[1], [0], [0], [1], [0, 0, 1, 1], [], []>} : vector<16x8xf32>, vector<8x8xf32>, vector<16x8xf32> -> vector<16x8xf32>
    %20 = arith.addf %14, %19 : vector<16x8xf32>
    %c0_20 = arith.constant 0 : index
    %c1_21 = arith.constant 1 : index
    %c0_22 = arith.constant 0 : index
    %21 = vector.load %arg10[%c0_20, %c1_21, %c0_22] : memref<2x10x8xf32, #tpu.memory_space<vmem>>, vector<2x8x8xf32>
    %22 = vector.shape_cast %21 : vector<2x8x8xf32> to vector<16x8xf32>
    %c1_23 = arith.constant 1 : index
    %c0_24 = arith.constant 0 : index
    %c0_25 = arith.constant 0 : index
    %23 = vector.load %arg3[%c1_23, %c0_24, %c0_25] : memref<3x8x8xf32, #tpu.memory_space<vmem>>, vector<1x8x8xf32>
    %24 = vector.shape_cast %23 : vector<1x8x8xf32> to vector<8x8xf32>
    %cst_26 = arith.constant dense<0.000000e+00> : vector<16x8xf32>
    %25 = tpu.matmul %22, %24, %cst_26 {dimension_numbers = #tpu.dot_dimension_numbers<[1], [0], [0], [1], [0, 0, 1, 1], [], []>} : vector<16x8xf32>, vector<8x8xf32>, vector<16x8xf32> -> vector<16x8xf32>
    %26 = arith.addf %20, %25 : vector<16x8xf32>
    %c0_27 = arith.constant 0 : index
    %c2 = arith.constant 2 : index
    %c0_28 = arith.constant 0 : index
    %27 = vector.load %arg10[%c0_27, %c2, %c0_28] : memref<2x10x8xf32, #tpu.memory_space<vmem>>, vector<2x8x8xf32>
    %28 = vector.shape_cast %27 : vector<2x8x8xf32> to vector<16x8xf32>
    %c2_29 = arith.constant 2 : index
    %c0_30 = arith.constant 0 : index
    %c0_31 = arith.constant 0 : index
    %29 = vector.load %arg3[%c2_29, %c0_30, %c0_31] : memref<3x8x8xf32, #tpu.memory_space<vmem>>, vector<1x8x8xf32>
    %30 = vector.shape_cast %29 : vector<1x8x8xf32> to vector<8x8xf32>
    %cst_32 = arith.constant dense<0.000000e+00> : vector<16x8xf32>
    %31 = tpu.matmul %28, %30, %cst_32 {dimension_numbers = #tpu.dot_dimension_numbers<[1], [0], [0], [1], [0, 0, 1, 1], [], []>} : vector<16x8xf32>, vector<8x8xf32>, vector<16x8xf32> -> vector<16x8xf32>
    %32 = arith.addf %26, %31 : vector<16x8xf32>
    %c0_33 = arith.constant 0 : index
    %c0_34 = arith.constant 0 : index
    %33 = vector.load %arg4[%c0_33, %c0_34] : memref<1x8xf32, #tpu.memory_space<vmem>>, vector<1x8xf32>
    %34 = vector.broadcast %33 : vector<1x8xf32> to vector<16x8xf32>
    %35 = arith.addf %32, %34 : vector<16x8xf32>
    %c0_35 = arith.constant 0 : index
    %c0_36 = arith.constant 0 : index
    %36 = vector.load %arg5[%c0_35, %c0_36] : memref<1x8xf32, #tpu.memory_space<vmem>>, vector<1x8xf32>
    %37 = vector.broadcast %36 : vector<1x8xf32> to vector<16x8xf32>
    %38 = arith.mulf %35, %37 : vector<16x8xf32>
    %c0_37 = arith.constant 0 : index
    %c0_38 = arith.constant 0 : index
    %39 = vector.load %arg6[%c0_37, %c0_38] : memref<1x8xf32, #tpu.memory_space<vmem>>, vector<1x8xf32>
    %40 = vector.broadcast %39 : vector<1x8xf32> to vector<16x8xf32>
    %41 = arith.addf %38, %40 : vector<16x8xf32>
    %cst_39 = arith.constant 0.000000e+00 : f32
    %42 = vector.broadcast %cst_39 : f32 to vector<16x8xf32>
    %43 = arith.maximumf %41, %42 : vector<16x8xf32>
    %44 = vector.shape_cast %43 : vector<16x8xf32> to vector<2x8x8xf32>
    %cst_40 = arith.constant 0.000000e+00 : f32
    %45 = vector.broadcast %cst_40 : f32 to vector<2x10x8xf32>
    %c0_41 = arith.constant 0 : index
    %c0_42 = arith.constant 0 : index
    %c0_43 = arith.constant 0 : index
    %46 = vector.load %arg11[%c0_41, %c0_42, %c0_43] : memref<2x10x8xf32, #tpu.memory_space<vmem>>, vector<2x10x8xf32>
    tpu.vector_store %arg11[%c0_41, %c0_42, %c0_43], %45 {strides = array<i32>} : memref<2x10x8xf32, #tpu.memory_space<vmem>>, vector<2x10x8xf32>,
    %c0_44 = arith.constant 0 : index
    %c1_45 = arith.constant 1 : index
    %c0_46 = arith.constant 0 : index
    %47 = vector.load %arg11[%c0_44, %c1_45, %c0_46] : memref<2x10x8xf32, #tpu.memory_space<vmem>>, vector<2x8x8xf32>
    tpu.vector_store %arg11[%c0_44, %c1_45, %c0_46], %44 {strides = array<i32>} : memref<2x10x8xf32, #tpu.memory_space<vmem>>, vector<2x8x8xf32>,
    %cst_47 = arith.constant 0.000000e+00 : f32
    %48 = vector.broadcast %cst_47 : f32 to vector<16x8xf32>
    %c0_48 = arith.constant 0 : index
    %c0_49 = arith.constant 0 : index
    %c0_50 = arith.constant 0 : index
    %49 = vector.load %arg11[%c0_48, %c0_49, %c0_50] : memref<2x10x8xf32, #tpu.memory_space<vmem>>, vector<2x8x8xf32>
    %50 = vector.shape_cast %49 : vector<2x8x8xf32> to vector<16x8xf32>
    %c0_51 = arith.constant 0 : index
    %c0_52 = arith.constant 0 : index
    %c0_53 = arith.constant 0 : index
    %51 = vector.load %arg7[%c0_51, %c0_52, %c0_53] : memref<3x8x8xf32, #tpu.memory_space<vmem>>, vector<1x8x8xf32>
    %52 = vector.shape_cast %51 : vector<1x8x8xf32> to vector<8x8xf32>
    %cst_54 = arith.constant dense<0.000000e+00> : vector<16x8xf32>
    %53 = tpu.matmul %50, %52, %cst_54 {dimension_numbers = #tpu.dot_dimension_numbers<[1], [0], [0], [1], [0, 0, 1, 1], [], []>} : vector<16x8xf32>, vector<8x8xf32>, vector<16x8xf32> -> vector<16x8xf32>
    %54 = arith.addf %48, %53 : vector<16x8xf32>
    %c0_55 = arith.constant 0 : index
    %c1_56 = arith.constant 1 : index
    %c0_57 = arith.constant 0 : index
    %55 = vector.load %arg11[%c0_55, %c1_56, %c0_57] : memref<2x10x8xf32, #tpu.memory_space<vmem>>, vector<2x8x8xf32>
    %56 = vector.shape_cast %55 : vector<2x8x8xf32> to vector<16x8xf32>
    %c1_58 = arith.constant 1 : index
    %c0_59 = arith.constant 0 : index
    %c0_60 = arith.constant 0 : index
    %57 = vector.load %arg7[%c1_58, %c0_59, %c0_60] : memref<3x8x8xf32, #tpu.memory_space<vmem>>, vector<1x8x8xf32>
    %58 = vector.shape_cast %57 : vector<1x8x8xf32> to vector<8x8xf32>
    %cst_61 = arith.constant dense<0.000000e+00> : vector<16x8xf32>
    %59 = tpu.matmul %56, %58, %cst_61 {dimension_numbers = #tpu.dot_dimension_numbers<[1], [0], [0], [1], [0, 0, 1, 1], [], []>} : vector<16x8xf32>, vector<8x8xf32>, vector<16x8xf32> -> vector<16x8xf32>
    %60 = arith.addf %54, %59 : vector<16x8xf32>
    %c0_62 = arith.constant 0 : index
    %c2_63 = arith.constant 2 : index
    %c0_64 = arith.constant 0 : index
    %61 = vector.load %arg11[%c0_62, %c2_63, %c0_64] : memref<2x10x8xf32, #tpu.memory_space<vmem>>, vector<2x8x8xf32>
    %62 = vector.shape_cast %61 : vector<2x8x8xf32> to vector<16x8xf32>
    %c2_65 = arith.constant 2 : index
    %c0_66 = arith.constant 0 : index
    %c0_67 = arith.constant 0 : index
    %63 = vector.load %arg7[%c2_65, %c0_66, %c0_67] : memref<3x8x8xf32, #tpu.memory_space<vmem>>, vector<1x8x8xf32>
    %64 = vector.shape_cast %63 : vector<1x8x8xf32> to vector<8x8xf32>
    %cst_68 = arith.constant dense<0.000000e+00> : vector<16x8xf32>
    %65 = tpu.matmul %62, %64, %cst_68 {dimension_numbers = #tpu.dot_dimension_numbers<[1], [0], [0], [1], [0, 0, 1, 1], [], []>} : vector<16x8xf32>, vector<8x8xf32>, vector<16x8xf32> -> vector<16x8xf32>
    %66 = arith.addf %60, %65 : vector<16x8xf32>
    %c0_69 = arith.constant 0 : index
    %c0_70 = arith.constant 0 : index
    %67 = vector.load %arg8[%c0_69, %c0_70] : memref<1x8xf32, #tpu.memory_space<vmem>>, vector<1x8xf32>
    %68 = vector.broadcast %67 : vector<1x8xf32> to vector<16x8xf32>
    %69 = arith.addf %66, %68 : vector<16x8xf32>
    %70 = arith.addf %69, %1 : vector<16x8xf32>
    %71 = vector.shape_cast %70 : vector<16x8xf32> to vector<2x8x8xf32>
    %c0_71 = arith.constant 0 : index
    %c0_72 = arith.constant 0 : index
    %c0_73 = arith.constant 0 : index
    %72 = vector.load %arg9[%c0_71, %c0_72, %c0_73] : memref<2x8x8xf32, #tpu.memory_space<vmem>>, vector<2x8x8xf32>
    tpu.vector_store %arg9[%c0_71, %c0_72, %c0_73], %71 {strides = array<i32>} : memref<2x8x8xf32, #tpu.memory_space<vmem>>, vector<2x8x8xf32>,
    return
  }
}

module attributes {stable_mosaic.version = 11 : i64} {
  func.func @_block_kernel(%arg0: memref<2x8x8xf32, #tpu.memory_space<vmem>>, %arg1: memref<1x8xf32, #tpu.memory_space<vmem>>, %arg2: memref<1x8xf32, #tpu.memory_space<vmem>>, %arg3: memref<3x8x8xf32, #tpu.memory_space<vmem>>, %arg4: memref<1x8xf32, #tpu.memory_space<vmem>>, %arg5: memref<1x8xf32, #tpu.memory_space<vmem>>, %arg6: memref<1x8xf32, #tpu.memory_space<vmem>>, %arg7: memref<3x8x8xf32, #tpu.memory_space<vmem>>, %arg8: memref<1x8xf32, #tpu.memory_space<vmem>>, %arg9: memref<2x4x8xf32, #tpu.memory_space<vmem>>, %arg10: memref<2x9x8xf32, #tpu.memory_space<vmem>>, %arg11: memref<2x6x8xf32, #tpu.memory_space<vmem>>, %arg12: memref<2x9x8xf32, #tpu.memory_space<vmem>>) attributes {dimension_semantics = [], scalar_prefetch = 0 : i64, scratch_operands = 3 : i64, tpu.core_type = #tpu.core_type<tc>} {
    %c0 = arith.constant 0 : index
    %c0_0 = arith.constant 0 : index
    %c0_1 = arith.constant 0 : index
    %0 = vector.load %arg0[%c0, %c0_0, %c0_1] : memref<2x8x8xf32, #tpu.memory_space<vmem>>, vector<2x8x8xf32>
    %1 = vector.shape_cast %0 : vector<2x8x8xf32> to vector<16x8xf32>
    %c0_2 = arith.constant 0 : index
    %c0_3 = arith.constant 0 : index
    %2 = vector.load %arg1[%c0_2, %c0_3] : memref<1x8xf32, #tpu.memory_space<vmem>>, vector<1x8xf32>
    %3 = vector.broadcast %2 : vector<1x8xf32> to vector<16x8xf32>
    %4 = arith.mulf %1, %3 : vector<16x8xf32>
    %c0_4 = arith.constant 0 : index
    %c0_5 = arith.constant 0 : index
    %5 = vector.load %arg2[%c0_4, %c0_5] : memref<1x8xf32, #tpu.memory_space<vmem>>, vector<1x8xf32>
    %6 = vector.broadcast %5 : vector<1x8xf32> to vector<16x8xf32>
    %7 = arith.addf %4, %6 : vector<16x8xf32>
    %cst = arith.constant 0.000000e+00 : f32
    %8 = vector.broadcast %cst : f32 to vector<16x8xf32>
    %9 = arith.maximumf %7, %8 : vector<16x8xf32>
    %10 = vector.shape_cast %9 : vector<16x8xf32> to vector<2x8x8xf32>
    %cst_6 = arith.constant 0.000000e+00 : f32
    %11 = vector.broadcast %cst_6 : f32 to vector<2x9x8xf32>
    %c0_7 = arith.constant 0 : index
    %c0_8 = arith.constant 0 : index
    %c0_9 = arith.constant 0 : index
    %12 = vector.load %arg10[%c0_7, %c0_8, %c0_9] : memref<2x9x8xf32, #tpu.memory_space<vmem>>, vector<2x9x8xf32>
    tpu.vector_store %arg10[%c0_7, %c0_8, %c0_9], %11 {strides = array<i32>} : memref<2x9x8xf32, #tpu.memory_space<vmem>>, vector<2x9x8xf32>,
    %c0_10 = arith.constant 0 : index
    %c0_11 = arith.constant 0 : index
    %c0_12 = arith.constant 0 : index
    %13 = vector.load %arg10[%c0_10, %c0_11, %c0_12] : memref<2x9x8xf32, #tpu.memory_space<vmem>>, vector<2x8x8xf32>
    tpu.vector_store %arg10[%c0_10, %c0_11, %c0_12], %10 {strides = array<i32>} : memref<2x9x8xf32, #tpu.memory_space<vmem>>, vector<2x8x8xf32>,
    %cst_13 = arith.constant 0.000000e+00 : f32
    %14 = vector.broadcast %cst_13 : f32 to vector<8x8xf32>
    %c0_14 = arith.constant 0 : index
    %c0_15 = arith.constant 0 : index
    %c0_16 = arith.constant 0 : index
    %15 = tpu.strided_load %arg10[%c0_14, %c0_15, %c0_16] {strides = array<i32: 1, 2, 1>} : memref<2x9x8xf32, #tpu.memory_space<vmem>>, vector<2x4x8xf32>
    %16 = vector.shape_cast %15 : vector<2x4x8xf32> to vector<8x8xf32>
    %c0_17 = arith.constant 0 : index
    %c0_18 = arith.constant 0 : index
    %c0_19 = arith.constant 0 : index
    %17 = vector.load %arg3[%c0_17, %c0_18, %c0_19] : memref<3x8x8xf32, #tpu.memory_space<vmem>>, vector<1x8x8xf32>
    %18 = vector.shape_cast %17 : vector<1x8x8xf32> to vector<8x8xf32>
    %cst_20 = arith.constant dense<0.000000e+00> : vector<8x8xf32>
    %19 = tpu.matmul %16, %18, %cst_20 {dimension_numbers = #tpu.dot_dimension_numbers<[1], [0], [0], [1], [0, 0, 1, 1], [], []>} : vector<8x8xf32>, vector<8x8xf32>, vector<8x8xf32> -> vector<8x8xf32>
    %20 = arith.addf %14, %19 : vector<8x8xf32>
    %c0_21 = arith.constant 0 : index
    %c1 = arith.constant 1 : index
    %c0_22 = arith.constant 0 : index
    %21 = tpu.strided_load %arg10[%c0_21, %c1, %c0_22] {strides = array<i32: 1, 2, 1>} : memref<2x9x8xf32, #tpu.memory_space<vmem>>, vector<2x4x8xf32>
    %22 = vector.shape_cast %21 : vector<2x4x8xf32> to vector<8x8xf32>
    %c1_23 = arith.constant 1 : index
    %c0_24 = arith.constant 0 : index
    %c0_25 = arith.constant 0 : index
    %23 = vector.load %arg3[%c1_23, %c0_24, %c0_25] : memref<3x8x8xf32, #tpu.memory_space<vmem>>, vector<1x8x8xf32>
    %24 = vector.shape_cast %23 : vector<1x8x8xf32> to vector<8x8xf32>
    %cst_26 = arith.constant dense<0.000000e+00> : vector<8x8xf32>
    %25 = tpu.matmul %22, %24, %cst_26 {dimension_numbers = #tpu.dot_dimension_numbers<[1], [0], [0], [1], [0, 0, 1, 1], [], []>} : vector<8x8xf32>, vector<8x8xf32>, vector<8x8xf32> -> vector<8x8xf32>
    %26 = arith.addf %20, %25 : vector<8x8xf32>
    %c0_27 = arith.constant 0 : index
    %c2 = arith.constant 2 : index
    %c0_28 = arith.constant 0 : index
    %27 = tpu.strided_load %arg10[%c0_27, %c2, %c0_28] {strides = array<i32: 1, 2, 1>} : memref<2x9x8xf32, #tpu.memory_space<vmem>>, vector<2x4x8xf32>
    %28 = vector.shape_cast %27 : vector<2x4x8xf32> to vector<8x8xf32>
    %c2_29 = arith.constant 2 : index
    %c0_30 = arith.constant 0 : index
    %c0_31 = arith.constant 0 : index
    %29 = vector.load %arg3[%c2_29, %c0_30, %c0_31] : memref<3x8x8xf32, #tpu.memory_space<vmem>>, vector<1x8x8xf32>
    %30 = vector.shape_cast %29 : vector<1x8x8xf32> to vector<8x8xf32>
    %cst_32 = arith.constant dense<0.000000e+00> : vector<8x8xf32>
    %31 = tpu.matmul %28, %30, %cst_32 {dimension_numbers = #tpu.dot_dimension_numbers<[1], [0], [0], [1], [0, 0, 1, 1], [], []>} : vector<8x8xf32>, vector<8x8xf32>, vector<8x8xf32> -> vector<8x8xf32>
    %32 = arith.addf %26, %31 : vector<8x8xf32>
    %c0_33 = arith.constant 0 : index
    %c0_34 = arith.constant 0 : index
    %33 = vector.load %arg4[%c0_33, %c0_34] : memref<1x8xf32, #tpu.memory_space<vmem>>, vector<1x8xf32>
    %34 = vector.broadcast %33 : vector<1x8xf32> to vector<8x8xf32>
    %35 = arith.addf %32, %34 : vector<8x8xf32>
    %c0_35 = arith.constant 0 : index
    %c0_36 = arith.constant 0 : index
    %36 = vector.load %arg5[%c0_35, %c0_36] : memref<1x8xf32, #tpu.memory_space<vmem>>, vector<1x8xf32>
    %37 = vector.broadcast %36 : vector<1x8xf32> to vector<8x8xf32>
    %38 = arith.mulf %35, %37 : vector<8x8xf32>
    %c0_37 = arith.constant 0 : index
    %c0_38 = arith.constant 0 : index
    %39 = vector.load %arg6[%c0_37, %c0_38] : memref<1x8xf32, #tpu.memory_space<vmem>>, vector<1x8xf32>
    %40 = vector.broadcast %39 : vector<1x8xf32> to vector<8x8xf32>
    %41 = arith.addf %38, %40 : vector<8x8xf32>
    %cst_39 = arith.constant 0.000000e+00 : f32
    %42 = vector.broadcast %cst_39 : f32 to vector<8x8xf32>
    %43 = arith.maximumf %41, %42 : vector<8x8xf32>
    %44 = vector.shape_cast %43 : vector<8x8xf32> to vector<2x4x8xf32>
    %cst_40 = arith.constant 0.000000e+00 : f32
    %45 = vector.broadcast %cst_40 : f32 to vector<2x6x8xf32>
    %c0_41 = arith.constant 0 : index
    %c0_42 = arith.constant 0 : index
    %c0_43 = arith.constant 0 : index
    %46 = vector.load %arg11[%c0_41, %c0_42, %c0_43] : memref<2x6x8xf32, #tpu.memory_space<vmem>>, vector<2x6x8xf32>
    tpu.vector_store %arg11[%c0_41, %c0_42, %c0_43], %45 {strides = array<i32>} : memref<2x6x8xf32, #tpu.memory_space<vmem>>, vector<2x6x8xf32>,
    %c0_44 = arith.constant 0 : index
    %c1_45 = arith.constant 1 : index
    %c0_46 = arith.constant 0 : index
    %47 = vector.load %arg11[%c0_44, %c1_45, %c0_46] : memref<2x6x8xf32, #tpu.memory_space<vmem>>, vector<2x4x8xf32>
    tpu.vector_store %arg11[%c0_44, %c1_45, %c0_46], %44 {strides = array<i32>} : memref<2x6x8xf32, #tpu.memory_space<vmem>>, vector<2x4x8xf32>,
    %cst_47 = arith.constant 0.000000e+00 : f32
    %48 = vector.broadcast %cst_47 : f32 to vector<8x8xf32>
    %c0_48 = arith.constant 0 : index
    %c0_49 = arith.constant 0 : index
    %c0_50 = arith.constant 0 : index
    %49 = vector.load %arg11[%c0_48, %c0_49, %c0_50] : memref<2x6x8xf32, #tpu.memory_space<vmem>>, vector<2x4x8xf32>
    %50 = vector.shape_cast %49 : vector<2x4x8xf32> to vector<8x8xf32>
    %c0_51 = arith.constant 0 : index
    %c0_52 = arith.constant 0 : index
    %c0_53 = arith.constant 0 : index
    %51 = vector.load %arg7[%c0_51, %c0_52, %c0_53] : memref<3x8x8xf32, #tpu.memory_space<vmem>>, vector<1x8x8xf32>
    %52 = vector.shape_cast %51 : vector<1x8x8xf32> to vector<8x8xf32>
    %cst_54 = arith.constant dense<0.000000e+00> : vector<8x8xf32>
    %53 = tpu.matmul %50, %52, %cst_54 {dimension_numbers = #tpu.dot_dimension_numbers<[1], [0], [0], [1], [0, 0, 1, 1], [], []>} : vector<8x8xf32>, vector<8x8xf32>, vector<8x8xf32> -> vector<8x8xf32>
    %54 = arith.addf %48, %53 : vector<8x8xf32>
    %c0_55 = arith.constant 0 : index
    %c1_56 = arith.constant 1 : index
    %c0_57 = arith.constant 0 : index
    %55 = vector.load %arg11[%c0_55, %c1_56, %c0_57] : memref<2x6x8xf32, #tpu.memory_space<vmem>>, vector<2x4x8xf32>
    %56 = vector.shape_cast %55 : vector<2x4x8xf32> to vector<8x8xf32>
    %c1_58 = arith.constant 1 : index
    %c0_59 = arith.constant 0 : index
    %c0_60 = arith.constant 0 : index
    %57 = vector.load %arg7[%c1_58, %c0_59, %c0_60] : memref<3x8x8xf32, #tpu.memory_space<vmem>>, vector<1x8x8xf32>
    %58 = vector.shape_cast %57 : vector<1x8x8xf32> to vector<8x8xf32>
    %cst_61 = arith.constant dense<0.000000e+00> : vector<8x8xf32>
    %59 = tpu.matmul %56, %58, %cst_61 {dimension_numbers = #tpu.dot_dimension_numbers<[1], [0], [0], [1], [0, 0, 1, 1], [], []>} : vector<8x8xf32>, vector<8x8xf32>, vector<8x8xf32> -> vector<8x8xf32>
    %60 = arith.addf %54, %59 : vector<8x8xf32>
    %c0_62 = arith.constant 0 : index
    %c2_63 = arith.constant 2 : index
    %c0_64 = arith.constant 0 : index
    %61 = vector.load %arg11[%c0_62, %c2_63, %c0_64] : memref<2x6x8xf32, #tpu.memory_space<vmem>>, vector<2x4x8xf32>
    %62 = vector.shape_cast %61 : vector<2x4x8xf32> to vector<8x8xf32>
    %c2_65 = arith.constant 2 : index
    %c0_66 = arith.constant 0 : index
    %c0_67 = arith.constant 0 : index
    %63 = vector.load %arg7[%c2_65, %c0_66, %c0_67] : memref<3x8x8xf32, #tpu.memory_space<vmem>>, vector<1x8x8xf32>
    %64 = vector.shape_cast %63 : vector<1x8x8xf32> to vector<8x8xf32>
    %cst_68 = arith.constant dense<0.000000e+00> : vector<8x8xf32>
    %65 = tpu.matmul %62, %64, %cst_68 {dimension_numbers = #tpu.dot_dimension_numbers<[1], [0], [0], [1], [0, 0, 1, 1], [], []>} : vector<8x8xf32>, vector<8x8xf32>, vector<8x8xf32> -> vector<8x8xf32>
    %66 = arith.addf %60, %65 : vector<8x8xf32>
    %c0_69 = arith.constant 0 : index
    %c0_70 = arith.constant 0 : index
    %67 = vector.load %arg8[%c0_69, %c0_70] : memref<1x8xf32, #tpu.memory_space<vmem>>, vector<1x8xf32>
    %68 = vector.broadcast %67 : vector<1x8xf32> to vector<8x8xf32>
    %69 = arith.addf %66, %68 : vector<8x8xf32>
    %cst_71 = arith.constant 0.000000e+00 : f32
    %70 = vector.broadcast %cst_71 : f32 to vector<2x9x8xf32>
    %c0_72 = arith.constant 0 : index
    %c0_73 = arith.constant 0 : index
    %c0_74 = arith.constant 0 : index
    %71 = vector.load %arg12[%c0_72, %c0_73, %c0_74] : memref<2x9x8xf32, #tpu.memory_space<vmem>>, vector<2x9x8xf32>
    tpu.vector_store %arg12[%c0_72, %c0_73, %c0_74], %70 {strides = array<i32>} : memref<2x9x8xf32, #tpu.memory_space<vmem>>, vector<2x9x8xf32>,
    %c0_75 = arith.constant 0 : index
    %c0_76 = arith.constant 0 : index
    %c0_77 = arith.constant 0 : index
    %72 = vector.load %arg12[%c0_75, %c0_76, %c0_77] : memref<2x9x8xf32, #tpu.memory_space<vmem>>, vector<2x8x8xf32>
    tpu.vector_store %arg12[%c0_75, %c0_76, %c0_77], %0 {strides = array<i32>} : memref<2x9x8xf32, #tpu.memory_space<vmem>>, vector<2x8x8xf32>,
    %c0_78 = arith.constant 0 : index
    %c0_79 = arith.constant 0 : index
    %c0_80 = arith.constant 0 : index
    %73 = tpu.strided_load %arg12[%c0_78, %c0_79, %c0_80] {strides = array<i32: 1, 2, 1>} : memref<2x9x8xf32, #tpu.memory_space<vmem>>, vector<2x4x8xf32>
    %c0_81 = arith.constant 0 : index
    %c1_82 = arith.constant 1 : index
    %c0_83 = arith.constant 0 : index
    %74 = tpu.strided_load %arg12[%c0_81, %c1_82, %c0_83] {strides = array<i32: 1, 2, 1>} : memref<2x9x8xf32, #tpu.memory_space<vmem>>, vector<2x4x8xf32>
    %75 = arith.maximumf %73, %74 : vector<2x4x8xf32>
    %76 = vector.shape_cast %75 : vector<2x4x8xf32> to vector<8x8xf32>
    %77 = arith.addf %69, %76 : vector<8x8xf32>
    %78 = vector.shape_cast %77 : vector<8x8xf32> to vector<2x4x8xf32>
    %c0_84 = arith.constant 0 : index
    %c0_85 = arith.constant 0 : index
    %c0_86 = arith.constant 0 : index
    %79 = vector.load %arg9[%c0_84, %c0_85, %c0_86] : memref<2x4x8xf32, #tpu.memory_space<vmem>>, vector<2x4x8xf32>
    tpu.vector_store %arg9[%c0_84, %c0_85, %c0_86], %78 {strides = array<i32>} : memref<2x4x8xf32, #tpu.memory_space<vmem>>, vector<2x4x8xf32>,
    return
  }
}

module attributes {stable_mosaic.version = 11 : i64} {
  func.func @_block_kernel(%arg0: memref<2x4x8xf32, #tpu.memory_space<vmem>>, %arg1: memref<1x8xf32, #tpu.memory_space<vmem>>, %arg2: memref<1x8xf32, #tpu.memory_space<vmem>>, %arg3: memref<3x8x16xf32, #tpu.memory_space<vmem>>, %arg4: memref<1x16xf32, #tpu.memory_space<vmem>>, %arg5: memref<1x16xf32, #tpu.memory_space<vmem>>, %arg6: memref<1x16xf32, #tpu.memory_space<vmem>>, %arg7: memref<3x16x16xf32, #tpu.memory_space<vmem>>, %arg8: memref<1x16xf32, #tpu.memory_space<vmem>>, %arg9: memref<2x4x16xf32, #tpu.memory_space<vmem>>, %arg10: memref<2x6x8xf32, #tpu.memory_space<vmem>>, %arg11: memref<2x6x16xf32, #tpu.memory_space<vmem>>) attributes {dimension_semantics = [], scalar_prefetch = 0 : i64, scratch_operands = 2 : i64, tpu.core_type = #tpu.core_type<tc>} {
    %c0 = arith.constant 0 : index
    %c0_0 = arith.constant 0 : index
    %c0_1 = arith.constant 0 : index
    %0 = vector.load %arg0[%c0, %c0_0, %c0_1] : memref<2x4x8xf32, #tpu.memory_space<vmem>>, vector<2x4x8xf32>
    %1 = vector.shape_cast %0 : vector<2x4x8xf32> to vector<8x8xf32>
    %c0_2 = arith.constant 0 : index
    %c0_3 = arith.constant 0 : index
    %2 = vector.load %arg1[%c0_2, %c0_3] : memref<1x8xf32, #tpu.memory_space<vmem>>, vector<1x8xf32>
    %3 = vector.broadcast %2 : vector<1x8xf32> to vector<8x8xf32>
    %4 = arith.mulf %1, %3 : vector<8x8xf32>
    %c0_4 = arith.constant 0 : index
    %c0_5 = arith.constant 0 : index
    %5 = vector.load %arg2[%c0_4, %c0_5] : memref<1x8xf32, #tpu.memory_space<vmem>>, vector<1x8xf32>
    %6 = vector.broadcast %5 : vector<1x8xf32> to vector<8x8xf32>
    %7 = arith.addf %4, %6 : vector<8x8xf32>
    %cst = arith.constant 0.000000e+00 : f32
    %8 = vector.broadcast %cst : f32 to vector<8x8xf32>
    %9 = arith.maximumf %7, %8 : vector<8x8xf32>
    %10 = vector.shape_cast %9 : vector<8x8xf32> to vector<2x4x8xf32>
    %cst_6 = arith.constant 0.000000e+00 : f32
    %11 = vector.broadcast %cst_6 : f32 to vector<2x6x8xf32>
    %c0_7 = arith.constant 0 : index
    %c0_8 = arith.constant 0 : index
    %c0_9 = arith.constant 0 : index
    %12 = vector.load %arg10[%c0_7, %c0_8, %c0_9] : memref<2x6x8xf32, #tpu.memory_space<vmem>>, vector<2x6x8xf32>
    tpu.vector_store %arg10[%c0_7, %c0_8, %c0_9], %11 {strides = array<i32>} : memref<2x6x8xf32, #tpu.memory_space<vmem>>, vector<2x6x8xf32>,
    %c0_10 = arith.constant 0 : index
    %c1 = arith.constant 1 : index
    %c0_11 = arith.constant 0 : index
    %13 = vector.load %arg10[%c0_10, %c1, %c0_11] : memref<2x6x8xf32, #tpu.memory_space<vmem>>, vector<2x4x8xf32>
    tpu.vector_store %arg10[%c0_10, %c1, %c0_11], %10 {strides = array<i32>} : memref<2x6x8xf32, #tpu.memory_space<vmem>>, vector<2x4x8xf32>,
    %cst_12 = arith.constant 0.000000e+00 : f32
    %14 = vector.broadcast %cst_12 : f32 to vector<8x16xf32>
    %c0_13 = arith.constant 0 : index
    %c0_14 = arith.constant 0 : index
    %c0_15 = arith.constant 0 : index
    %15 = vector.load %arg10[%c0_13, %c0_14, %c0_15] : memref<2x6x8xf32, #tpu.memory_space<vmem>>, vector<2x4x8xf32>
    %16 = vector.shape_cast %15 : vector<2x4x8xf32> to vector<8x8xf32>
    %c0_16 = arith.constant 0 : index
    %c0_17 = arith.constant 0 : index
    %c0_18 = arith.constant 0 : index
    %17 = vector.load %arg3[%c0_16, %c0_17, %c0_18] : memref<3x8x16xf32, #tpu.memory_space<vmem>>, vector<1x8x16xf32>
    %18 = vector.shape_cast %17 : vector<1x8x16xf32> to vector<8x16xf32>
    %cst_19 = arith.constant dense<0.000000e+00> : vector<8x16xf32>
    %19 = tpu.matmul %16, %18, %cst_19 {dimension_numbers = #tpu.dot_dimension_numbers<[1], [0], [0], [1], [0, 0, 1, 1], [], []>} : vector<8x8xf32>, vector<8x16xf32>, vector<8x16xf32> -> vector<8x16xf32>
    %20 = arith.addf %14, %19 : vector<8x16xf32>
    %c0_20 = arith.constant 0 : index
    %c1_21 = arith.constant 1 : index
    %c0_22 = arith.constant 0 : index
    %21 = vector.load %arg10[%c0_20, %c1_21, %c0_22] : memref<2x6x8xf32, #tpu.memory_space<vmem>>, vector<2x4x8xf32>
    %22 = vector.shape_cast %21 : vector<2x4x8xf32> to vector<8x8xf32>
    %c1_23 = arith.constant 1 : index
    %c0_24 = arith.constant 0 : index
    %c0_25 = arith.constant 0 : index
    %23 = vector.load %arg3[%c1_23, %c0_24, %c0_25] : memref<3x8x16xf32, #tpu.memory_space<vmem>>, vector<1x8x16xf32>
    %24 = vector.shape_cast %23 : vector<1x8x16xf32> to vector<8x16xf32>
    %cst_26 = arith.constant dense<0.000000e+00> : vector<8x16xf32>
    %25 = tpu.matmul %22, %24, %cst_26 {dimension_numbers = #tpu.dot_dimension_numbers<[1], [0], [0], [1], [0, 0, 1, 1], [], []>} : vector<8x8xf32>, vector<8x16xf32>, vector<8x16xf32> -> vector<8x16xf32>
    %26 = arith.addf %20, %25 : vector<8x16xf32>
    %c0_27 = arith.constant 0 : index
    %c2 = arith.constant 2 : index
    %c0_28 = arith.constant 0 : index
    %27 = vector.load %arg10[%c0_27, %c2, %c0_28] : memref<2x6x8xf32, #tpu.memory_space<vmem>>, vector<2x4x8xf32>
    %28 = vector.shape_cast %27 : vector<2x4x8xf32> to vector<8x8xf32>
    %c2_29 = arith.constant 2 : index
    %c0_30 = arith.constant 0 : index
    %c0_31 = arith.constant 0 : index
    %29 = vector.load %arg3[%c2_29, %c0_30, %c0_31] : memref<3x8x16xf32, #tpu.memory_space<vmem>>, vector<1x8x16xf32>
    %30 = vector.shape_cast %29 : vector<1x8x16xf32> to vector<8x16xf32>
    %cst_32 = arith.constant dense<0.000000e+00> : vector<8x16xf32>
    %31 = tpu.matmul %28, %30, %cst_32 {dimension_numbers = #tpu.dot_dimension_numbers<[1], [0], [0], [1], [0, 0, 1, 1], [], []>} : vector<8x8xf32>, vector<8x16xf32>, vector<8x16xf32> -> vector<8x16xf32>
    %32 = arith.addf %26, %31 : vector<8x16xf32>
    %c0_33 = arith.constant 0 : index
    %c0_34 = arith.constant 0 : index
    %33 = vector.load %arg4[%c0_33, %c0_34] : memref<1x16xf32, #tpu.memory_space<vmem>>, vector<1x16xf32>
    %34 = vector.broadcast %33 : vector<1x16xf32> to vector<8x16xf32>
    %35 = arith.addf %32, %34 : vector<8x16xf32>
    %c0_35 = arith.constant 0 : index
    %c0_36 = arith.constant 0 : index
    %36 = vector.load %arg5[%c0_35, %c0_36] : memref<1x16xf32, #tpu.memory_space<vmem>>, vector<1x16xf32>
    %37 = vector.broadcast %36 : vector<1x16xf32> to vector<8x16xf32>
    %38 = arith.mulf %35, %37 : vector<8x16xf32>
    %c0_37 = arith.constant 0 : index
    %c0_38 = arith.constant 0 : index
    %39 = vector.load %arg6[%c0_37, %c0_38] : memref<1x16xf32, #tpu.memory_space<vmem>>, vector<1x16xf32>
    %40 = vector.broadcast %39 : vector<1x16xf32> to vector<8x16xf32>
    %41 = arith.addf %38, %40 : vector<8x16xf32>
    %cst_39 = arith.constant 0.000000e+00 : f32
    %42 = vector.broadcast %cst_39 : f32 to vector<8x16xf32>
    %43 = arith.maximumf %41, %42 : vector<8x16xf32>
    %44 = vector.shape_cast %43 : vector<8x16xf32> to vector<2x4x16xf32>
    %cst_40 = arith.constant 0.000000e+00 : f32
    %45 = vector.broadcast %cst_40 : f32 to vector<2x6x16xf32>
    %c0_41 = arith.constant 0 : index
    %c0_42 = arith.constant 0 : index
    %c0_43 = arith.constant 0 : index
    %46 = vector.load %arg11[%c0_41, %c0_42, %c0_43] : memref<2x6x16xf32, #tpu.memory_space<vmem>>, vector<2x6x16xf32>
    tpu.vector_store %arg11[%c0_41, %c0_42, %c0_43], %45 {strides = array<i32>} : memref<2x6x16xf32, #tpu.memory_space<vmem>>, vector<2x6x16xf32>,
    %c0_44 = arith.constant 0 : index
    %c1_45 = arith.constant 1 : index
    %c0_46 = arith.constant 0 : index
    %47 = vector.load %arg11[%c0_44, %c1_45, %c0_46] : memref<2x6x16xf32, #tpu.memory_space<vmem>>, vector<2x4x16xf32>
    tpu.vector_store %arg11[%c0_44, %c1_45, %c0_46], %44 {strides = array<i32>} : memref<2x6x16xf32, #tpu.memory_space<vmem>>, vector<2x4x16xf32>,
    %cst_47 = arith.constant 0.000000e+00 : f32
    %48 = vector.broadcast %cst_47 : f32 to vector<8x16xf32>
    %c0_48 = arith.constant 0 : index
    %c0_49 = arith.constant 0 : index
    %c0_50 = arith.constant 0 : index
    %49 = vector.load %arg11[%c0_48, %c0_49, %c0_50] : memref<2x6x16xf32, #tpu.memory_space<vmem>>, vector<2x4x16xf32>
    %50 = vector.shape_cast %49 : vector<2x4x16xf32> to vector<8x16xf32>
    %c0_51 = arith.constant 0 : index
    %c0_52 = arith.constant 0 : index
    %c0_53 = arith.constant 0 : index
    %51 = vector.load %arg7[%c0_51, %c0_52, %c0_53] : memref<3x16x16xf32, #tpu.memory_space<vmem>>, vector<1x16x16xf32>
    %52 = vector.shape_cast %51 : vector<1x16x16xf32> to vector<16x16xf32>
    %cst_54 = arith.constant dense<0.000000e+00> : vector<8x16xf32>
    %53 = tpu.matmul %50, %52, %cst_54 {dimension_numbers = #tpu.dot_dimension_numbers<[1], [0], [0], [1], [0, 0, 1, 1], [], []>} : vector<8x16xf32>, vector<16x16xf32>, vector<8x16xf32> -> vector<8x16xf32>
    %54 = arith.addf %48, %53 : vector<8x16xf32>
    %c0_55 = arith.constant 0 : index
    %c1_56 = arith.constant 1 : index
    %c0_57 = arith.constant 0 : index
    %55 = vector.load %arg11[%c0_55, %c1_56, %c0_57] : memref<2x6x16xf32, #tpu.memory_space<vmem>>, vector<2x4x16xf32>
    %56 = vector.shape_cast %55 : vector<2x4x16xf32> to vector<8x16xf32>
    %c1_58 = arith.constant 1 : index
    %c0_59 = arith.constant 0 : index
    %c0_60 = arith.constant 0 : index
    %57 = vector.load %arg7[%c1_58, %c0_59, %c0_60] : memref<3x16x16xf32, #tpu.memory_space<vmem>>, vector<1x16x16xf32>
    %58 = vector.shape_cast %57 : vector<1x16x16xf32> to vector<16x16xf32>
    %cst_61 = arith.constant dense<0.000000e+00> : vector<8x16xf32>
    %59 = tpu.matmul %56, %58, %cst_61 {dimension_numbers = #tpu.dot_dimension_numbers<[1], [0], [0], [1], [0, 0, 1, 1], [], []>} : vector<8x16xf32>, vector<16x16xf32>, vector<8x16xf32> -> vector<8x16xf32>
    %60 = arith.addf %54, %59 : vector<8x16xf32>
    %c0_62 = arith.constant 0 : index
    %c2_63 = arith.constant 2 : index
    %c0_64 = arith.constant 0 : index
    %61 = vector.load %arg11[%c0_62, %c2_63, %c0_64] : memref<2x6x16xf32, #tpu.memory_space<vmem>>, vector<2x4x16xf32>
    %62 = vector.shape_cast %61 : vector<2x4x16xf32> to vector<8x16xf32>
    %c2_65 = arith.constant 2 : index
    %c0_66 = arith.constant 0 : index
    %c0_67 = arith.constant 0 : index
    %63 = vector.load %arg7[%c2_65, %c0_66, %c0_67] : memref<3x16x16xf32, #tpu.memory_space<vmem>>, vector<1x16x16xf32>
    %64 = vector.shape_cast %63 : vector<1x16x16xf32> to vector<16x16xf32>
    %cst_68 = arith.constant dense<0.000000e+00> : vector<8x16xf32>
    %65 = tpu.matmul %62, %64, %cst_68 {dimension_numbers = #tpu.dot_dimension_numbers<[1], [0], [0], [1], [0, 0, 1, 1], [], []>} : vector<8x16xf32>, vector<16x16xf32>, vector<8x16xf32> -> vector<8x16xf32>
    %66 = arith.addf %60, %65 : vector<8x16xf32>
    %c0_69 = arith.constant 0 : index
    %c0_70 = arith.constant 0 : index
    %67 = vector.load %arg8[%c0_69, %c0_70] : memref<1x16xf32, #tpu.memory_space<vmem>>, vector<1x16xf32>
    %68 = vector.broadcast %67 : vector<1x16xf32> to vector<8x16xf32>
    %69 = arith.addf %66, %68 : vector<8x16xf32>
    %70 = tpu.iota {dimensions = array<i32: 0>} : vector<8x16xi32>
    %71 = tpu.iota {dimensions = array<i32: 1>} : vector<8x16xi32>
    %c4_i32 = arith.constant 4 : i32
    %72 = vector.broadcast %c4_i32 : i32 to vector<8x16xi32>
    %73 = arith.addi %70, %72 : vector<8x16xi32>
    %74 = arith.cmpi eq, %71, %73 : vector<8x16xi32>
    %75 = arith.extui %74 : vector<8x16xi1> to vector<8x16xi32>
    %76 = arith.sitofp %75 : vector<8x16xi32> to vector<8x16xf32>
    %cst_71 = arith.constant dense<0.000000e+00> : vector<8x16xf32>
    %77 = tpu.matmul %1, %76, %cst_71 {dimension_numbers = #tpu.dot_dimension_numbers<[1], [0], [0], [1], [0, 0, 1, 1], [], []>} : vector<8x8xf32>, vector<8x16xf32>, vector<8x16xf32> -> vector<8x16xf32>
    %78 = arith.addf %69, %77 : vector<8x16xf32>
    %79 = vector.shape_cast %78 : vector<8x16xf32> to vector<2x4x16xf32>
    %c0_72 = arith.constant 0 : index
    %c0_73 = arith.constant 0 : index
    %c0_74 = arith.constant 0 : index
    %80 = vector.load %arg9[%c0_72, %c0_73, %c0_74] : memref<2x4x16xf32, #tpu.memory_space<vmem>>, vector<2x4x16xf32>
    tpu.vector_store %arg9[%c0_72, %c0_73, %c0_74], %79 {strides = array<i32>} : memref<2x4x16xf32, #tpu.memory_space<vmem>>, vector<2x4x16xf32>,
    return
  }
}

module attributes {stable_mosaic.version = 11 : i64} {
  func.func @_head_kernel(%arg0: memref<2x4x16xf32, #tpu.memory_space<vmem>>, %arg1: memref<1x16xf32, #tpu.memory_space<vmem>>, %arg2: memref<1x16xf32, #tpu.memory_space<vmem>>, %arg3: memref<16x5xf32, #tpu.memory_space<vmem>>, %arg4: memref<1x5xf32, #tpu.memory_space<vmem>>, %arg5: memref<2x5xf32, #tpu.memory_space<vmem>>) attributes {dimension_semantics = [], scalar_prefetch = 0 : i64, scratch_operands = 0 : i64, tpu.core_type = #tpu.core_type<tc>} {
    %c0 = arith.constant 0 : index
    %c0_0 = arith.constant 0 : index
    %c0_1 = arith.constant 0 : index
    %0 = vector.load %arg0[%c0, %c0_0, %c0_1] : memref<2x4x16xf32, #tpu.memory_space<vmem>>, vector<2x4x16xf32>
    %1 = vector.shape_cast %0 : vector<2x4x16xf32> to vector<8x16xf32>
    %c0_2 = arith.constant 0 : index
    %c0_3 = arith.constant 0 : index
    %2 = vector.load %arg1[%c0_2, %c0_3] : memref<1x16xf32, #tpu.memory_space<vmem>>, vector<1x16xf32>
    %3 = vector.broadcast %2 : vector<1x16xf32> to vector<8x16xf32>
    %4 = arith.mulf %1, %3 : vector<8x16xf32>
    %c0_4 = arith.constant 0 : index
    %c0_5 = arith.constant 0 : index
    %5 = vector.load %arg2[%c0_4, %c0_5] : memref<1x16xf32, #tpu.memory_space<vmem>>, vector<1x16xf32>
    %6 = vector.broadcast %5 : vector<1x16xf32> to vector<8x16xf32>
    %7 = arith.addf %4, %6 : vector<8x16xf32>
    %cst = arith.constant 0.000000e+00 : f32
    %8 = vector.broadcast %cst : f32 to vector<8x16xf32>
    %9 = arith.maximumf %7, %8 : vector<8x16xf32>
    %10 = vector.extract_strided_slice %9 {offsets = [0, 0], sizes = [4, 16], strides = [1, 1]} : vector<8x16xf32> to vector<4x16xf32>
    %cst_6 = arith.constant dense<0.000000e+00> : vector<16xf32>
    %11 = vector.multi_reduction <add>, %10, %cst_6 [0] : vector<4x16xf32> to vector<16xf32>
    %12 = vector.shape_cast %11 : vector<16xf32> to vector<1x16xf32>
    %cst_7 = arith.constant 2.500000e-01 : f32
    %13 = vector.broadcast %cst_7 : f32 to vector<1x16xf32>
    %14 = arith.mulf %12, %13 : vector<1x16xf32>
    %c0_8 = arith.constant 0 : index
    %c0_9 = arith.constant 0 : index
    %15 = vector.load %arg3[%c0_8, %c0_9] : memref<16x5xf32, #tpu.memory_space<vmem>>, vector<16x5xf32>
    %cst_10 = arith.constant dense<0.000000e+00> : vector<1x5xf32>
    %16 = tpu.matmul %14, %15, %cst_10 {dimension_numbers = #tpu.dot_dimension_numbers<[1], [0], [0], [1], [0, 0, 1, 1], [], []>} : vector<1x16xf32>, vector<16x5xf32>, vector<1x5xf32> -> vector<1x5xf32>
    %c0_11 = arith.constant 0 : index
    %c0_12 = arith.constant 0 : index
    %17 = vector.load %arg4[%c0_11, %c0_12] : memref<1x5xf32, #tpu.memory_space<vmem>>, vector<1x5xf32>
    %18 = arith.addf %16, %17 : vector<1x5xf32>
    %c0_13 = arith.constant 0 : index
    %c0_14 = arith.constant 0 : index
    %19 = vector.load %arg5[%c0_13, %c0_14] : memref<2x5xf32, #tpu.memory_space<vmem>>, vector<1x5xf32>
    tpu.vector_store %arg5[%c0_13, %c0_14], %18 {strides = array<i32>} : memref<2x5xf32, #tpu.memory_space<vmem>>, vector<1x5xf32>,
    %20 = vector.extract_strided_slice %9 {offsets = [4, 0], sizes = [4, 16], strides = [1, 1]} : vector<8x16xf32> to vector<4x16xf32>
    %cst_15 = arith.constant dense<0.000000e+00> : vector<16xf32>
    %21 = vector.multi_reduction <add>, %20, %cst_15 [0] : vector<4x16xf32> to vector<16xf32>
    %22 = vector.shape_cast %21 : vector<16xf32> to vector<1x16xf32>
    %cst_16 = arith.constant 2.500000e-01 : f32
    %23 = vector.broadcast %cst_16 : f32 to vector<1x16xf32>
    %24 = arith.mulf %22, %23 : vector<1x16xf32>
    %c0_17 = arith.constant 0 : index
    %c0_18 = arith.constant 0 : index
    %25 = vector.load %arg3[%c0_17, %c0_18] : memref<16x5xf32, #tpu.memory_space<vmem>>, vector<16x5xf32>
    %cst_19 = arith.constant dense<0.000000e+00> : vector<1x5xf32>
    %26 = tpu.matmul %24, %25, %cst_19 {dimension_numbers = #tpu.dot_dimension_numbers<[1], [0], [0], [1], [0, 0, 1, 1], [], []>} : vector<1x16xf32>, vector<16x5xf32>, vector<1x5xf32> -> vector<1x5xf32>
    %c0_20 = arith.constant 0 : index
    %c0_21 = arith.constant 0 : index
    %27 = vector.load %arg4[%c0_20, %c0_21] : memref<1x5xf32, #tpu.memory_space<vmem>>, vector<1x5xf32>
    %28 = arith.addf %26, %27 : vector<1x5xf32>
    %c1 = arith.constant 1 : index
    %c0_22 = arith.constant 0 : index
    %29 = vector.load %arg5[%c1, %c0_22] : memref<2x5xf32, #tpu.memory_space<vmem>>, vector<1x5xf32>
    tpu.vector_store %arg5[%c1, %c0_22], %28 {strides = array<i32>} : memref<2x5xf32, #tpu.memory_space<vmem>>, vector<1x5xf32>,
    return
  }
}

</mosaic_0001>

<llo_original>
// kernel: _lambda_.7
$region0: #{_lambda_.7}
  #allocation0 [shape = 'u32[]', space=smem, size = 0x4, offset = 0x4, fixed_abs, tag = 'smem constant byte address 0x4 - core index']
  #allocation1 [shape = 'u32[144,128]{1,0:T(1,128)}', space=vmem, size = 0x12000, scoped, tag = 'internal scratch']
  #allocation2 [shape = 'f32[2,18,4]{2,1,0:T(8,128)}', space=vmem, size = 0x6000, scoped, tag = 'scratch operand']
  %s0 = inlined_call_operand.vmem [shape: f32[2,16,4], index: 0, kind: input, shape index: {}]
  %s1 = inlined_call_operand.vmem [shape: f32[3,4,8], index: 1, kind: input, shape index: {}]
  %s2 = inlined_call_operand.vmem [shape: f32[1,8], index: 2, kind: input, shape index: {}]
  %s3 = inlined_call_operand.vmem [shape: f32[1,8], index: 3, kind: input, shape index: {}]
  %s4 = inlined_call_operand.vmem [shape: f32[1,8], index: 4, kind: input, shape index: {}]
  %s5 = inlined_call_operand.vmem [shape: f32[2,16,8], index: 5, kind: output, shape index: {}]
  %s6 = sld [smem:[#allocation0]]
  $region30: #{_lambda_.7} parent=0
    _
  %s8 = ssub.s32 1, %s6
  %s9 = scalar_select 0, %s8, %s6
  // Predicated region
  $region2: #{_lambda_.7} parent=0 // pred_check
    _
  $region3: #{_lambda_.7} parent=0 // pred_check_branch
    %11 = sbr.rel (0) target = $region5
  $region4: #{_lambda_.7} parent=0 // pred_region
    _
  $region5: #{_lambda_.7} parent=0 // pred_fallthru
    _
  // Predicated region
  $region6: #{_lambda_.7} parent=0 // pred_check
    _
  $region7: #{_lambda_.7} parent=0 // pred_check_branch
    %13 = sbr.rel (0) target = $region9
  $region8: #{_lambda_.7} parent=0 // pred_region
    _
  $region9: #{_lambda_.7} parent=0 // pred_fallthru
    _
  // Predicated region
  $region10: #{_lambda_.7} parent=0 // pred_check
    _
  $region11: #{_lambda_.7} parent=0 // pred_check_branch
    %15 = sbr.rel (0) target = $region13
  $region12: #{_lambda_.7} parent=0 // pred_region
    _
  $region13: #{_lambda_.7} parent=0 // pred_fallthru
    _
  // Predicated region
  $region14: #{_lambda_.7} parent=0 // pred_check
    _
  $region15: #{_lambda_.7} parent=0 // pred_check_branch
    %17 = sbr.rel (0) target = $region17
  $region16: #{_lambda_.7} parent=0 // pred_region
    _
  $region17: #{_lambda_.7} parent=0 // pred_fallthru
    _
  // Predicated region
  $region18: #{_lambda_.7} parent=0 // pred_check
    _
  $region19: #{_lambda_.7} parent=0 // pred_check_branch
    %19 = sbr.rel (0) target = $region21
  $region20: #{_lambda_.7} parent=0 // pred_region
    _
  $region21: #{_lambda_.7} parent=0 // pred_fallthru
    _
  %v20 = vld [vmem:[%s0] sm:$0xff]
  %v21 = vld [vmem:[%s0 + $0x8] sm:$0xff]
  %v22 = vld [vmem:[%s0 + $0x10] sm:$0xff]
  %v23 = vld [vmem:[%s0 + $0x18] sm:$0xff]
  %vm24 = vcmask 31744
  %25 = vst.msk [vmem:[#allocation2] sm:$0xff] %vm24, 0.0
  %26 = vst.msk [vmem:[#allocation2 + $0x8] sm:$0xff] %vm24, 0.0
  %vm27 = vcmask 25600
  %28 = vst.msk [vmem:[#allocation2 + $0x10] sm:$0x3] %vm27, 0.0
  %29 = vst.msk [vmem:[#allocation2 + $0x18] sm:$0xff] %vm24, 0.0
  %30 = vst.msk [vmem:[#allocation2 + $0x20] sm:$0xff] %vm24, 0.0
  %31 = vst.msk [vmem:[#allocation2 + $0x28] sm:$0x3] %vm27, 0.0
  %32 = vst.msk [vmem:[#allocation2 + $0x1] sm:$0xff] %vm24, %v20
  %33 = vst.msk [vmem:[#allocation2 + $0x9] sm:$0xff] %vm24, %v21
  %34 = vst.msk [vmem:[#allocation2 + $0x19] sm:$0xff] %vm24, %v22
  %35 = vst.msk [vmem:[#allocation2 + $0x21] sm:$0xff] %vm24, %v23
  %v36 = vld [vmem:[#allocation2] sm:$0xff]
  %v37 = vld [vmem:[#allocation2 + $0x8] sm:$0xff]
  %v38 = vld [vmem:[#allocation2 + $0x18] sm:$0xff]
  %v39 = vld [vmem:[#allocation2 + $0x20] sm:$0xff]
  %v40 = vld [vmem:[%s1] sm:$0xf]
  %v41 = vld [vmem:[#allocation2 + $0x1] sm:$0xff]
  %v42 = vld [vmem:[#allocation2 + $0x9] sm:$0xff]
  %v43 = vld [vmem:[#allocation2 + $0x19] sm:$0xff]
  %v44 = vld [vmem:[#allocation2 + $0x21] sm:$0xff]
  %s45 = scalar_lea.vmem %s1, 4
  %v46 = vld [vmem:[%s45] sm:$0xf]
  %v48 = vsel %vm24, %v41, 0
  %v51 = vsel %vm24, %v42, 0
  %v54 = vsel %vm24, %v43, 0
  %v57 = vsel %vm24, %v44, 0
  %vm59 = vcmask 1043456
  %v61 = vsel %vm59, %v46, 0
  %63 = vmatprep.subr.mxu0 0.0
  %64 = vmatpush1.msra.mxu0 0.0
  %65 = vmatprep.subr.mxu0 0.0
  %66 = vmatpush1.msra.mxu0 0.0
  %67 = vmatprep.subr.mxu0 0.0
  %68 = vmatpush1.msra.mxu0 0.0
  %69 = vmatprep.subr.mxu0 0.0
  %70 = vmatpush1.msra.mxu0 0.0
  %71 = vmatprep.subr.mxu0 0.0
  %72 = vmatpush1.msra.mxu0 0.0
  %73 = vmatprep.subr.mxu0 0.0
  %74 = vmatpush1.msra.mxu0 0.0
  %75 = vmatprep.subr.mxu0 0.0
  %76 = vmatpush1.msra.mxu0 0.0
  %77 = vmatprep.subr.mxu0 0.0
  %78 = vmatpush1.msra.mxu0 0.0
  %79 = vmatprep.subr.mxu0 0.0
  %80 = vmatpush1.msra.mxu0 0.0
  %81 = vmatprep.subr.mxu0 0.0
  %82 = vmatpush1.msra.mxu0 0.0
  %83 = vmatprep.subr.mxu0 0.0
  %84 = vmatpush1.msra.mxu0 0.0
  %85 = vmatprep.subr.mxu0 0.0
  %86 = vmatpush1.msra.mxu0 0.0
  %87 = vmatprep.subr.mxu0 0.0
  %88 = vmatpush1.msra.mxu0 0.0
  %89 = vmatprep.subr.mxu0 0.0
  %90 = vmatpush1.msra.mxu0 0.0
  %91 = vmatprep.subr.mxu0 0.0
  %92 = vmatpush1.msra.mxu0 0.0
  %93 = vmatprep.subr.mxu0 0.0
  %94 = vmatpush1.msra.mxu0 %v61
  %95 = vmatprep.subr.mxu0 0.0
  %96 = vmatpush2.msra.mxu0 0.0
  %97 = vmatprep.subr.mxu0 0.0
  %98 = vmatpush2.msra.mxu0 0.0
  %99 = vmatprep.subr.mxu0 0.0
  %100 = vmatpush2.msra.mxu0 0.0
  %101 = vmatprep.subr.mxu0 0.0
  %102 = vmatpush2.msra.mxu0 0.0
  %103 = vmatprep.subr.mxu0 0.0
  %104 = vmatpush2.msra.mxu0 0.0
  %105 = vmatprep.subr.mxu0 0.0
  %106 = vmatpush2.msra.mxu0 0.0
  %107 = vmatprep.subr.mxu0 0.0
  %108 = vmatpush2.msra.mxu0 0.0
  %109 = vmatprep.subr.mxu0 0.0
  %110 = vmatpush2.msra.mxu0 0.0
  %111 = vmatprep.subr.mxu0 0.0
  %112 = vmatpush2.msra.mxu0 0.0
  %113 = vmatprep.subr.mxu0 0.0
  %114 = vmatpush2.msra.mxu0 0.0
  %115 = vmatprep.subr.mxu0 0.0
  %116 = vmatpush2.msra.mxu0 0.0
  %117 = vmatprep.subr.mxu0 0.0
  %118 = vmatpush2.msra.mxu0 0.0
  %119 = vmatprep.subr.mxu0 0.0
  %120 = vmatpush2.msra.mxu0 0.0
  %121 = vmatprep.subr.mxu0 0.0
  %122 = vmatpush2.msra.mxu0 0.0
  %123 = vmatprep.subr.mxu0 0.0
  %124 = vmatpush2.msra.mxu0 0.0
  %125 = vmatprep.subr.mxu0 0.0
  %126 = vmatpush2.msra.mxu0 0.0
  %127 = vmatprep.mubr.f32.mxu0 0.0
  %128 = vmatmul.mubr.f32.gmra.mxu0 %v48
  %v129 = vpop.f32.mrf.mxu0
  %v130 = vadd.f32 0.0, %v129
  %v131 = vpop.f32.mrf.mxu0
  %132 = vmatprep.mubr.f32.mxu0 0.0
  %133 = vmatmul.mubr.f32.gmra.mxu0 %v51
  %v134 = vpop.f32.mrf.mxu0
  %v135 = vadd.f32 0.0, %v134
  %v136 = vpop.f32.mrf.mxu0
  %137 = vmatprep.mubr.f32.mxu0 0.0
  %138 = vmatmul.mubr.f32.gmra.mxu0 %v54
  %v139 = vpop.f32.mrf.mxu0
  %v140 = vadd.f32 0.0, %v139
  %v141 = vpop.f32.mrf.mxu0
  %142 = vmatprep.mubr.f32.mxu0 0.0
  %143 = vmatmul.mubr.f32.gmra.mxu0 %v57
  %v144 = vpop.f32.mrf.mxu0
  %v145 = vadd.f32 0.0, %v144
  %v146 = vpop.f32.mrf.mxu0
  %147 = vdwg.mxu0
  %v149 = vsel %vm24, %v36, 0
  %v152 = vsel %vm24, %v37, 0
  %v155 = vsel %vm24, %v38, 0
  %v158 = vsel %vm24, %v39, 0
  %v161 = vsel %vm59, %v40, 0
  %163 = vmatprep.subr.mxu0 0.0
  %164 = vmatpush1.msra.mxu0 0.0
  %165 = vmatprep.subr.mxu0 0.0
  %166 = vmatpush1.msra.mxu0 0.0
  %167 = vmatprep.subr.mxu0 0.0
  %168 = vmatpush1.msra.mxu0 0.0
  %169 = vmatprep.subr.mxu0 0.0
  %170 = vmatpush1.msra.mxu0 0.0
  %171 = vmatprep.subr.mxu0 0.0
  %172 = vmatpush1.msra.mxu0 0.0
  %173 = vmatprep.subr.mxu0 0.0
  %174 = vmatpush1.msra.mxu0 0.0
  %175 = vmatprep.subr.mxu0 0.0
  %176 = vmatpush1.msra.mxu0 0.0
  %177 = vmatprep.subr.mxu0 0.0
  %178 = vmatpush1.msra.mxu0 0.0
  %179 = vmatprep.subr.mxu0 0.0
  %180 = vmatpush1.msra.mxu0 0.0
  %181 = vmatprep.subr.mxu0 0.0
  %182 = vmatpush1.msra.mxu0 0.0
  %183 = vmatprep.subr.mxu0 0.0
  %184 = vmatpush1.msra.mxu0 0.0
  %185 = vmatprep.subr.mxu0 0.0
  %186 = vmatpush1.msra.mxu0 0.0
  %187 = vmatprep.subr.mxu0 0.0
  %188 = vmatpush1.msra.mxu0 0.0
  %189 = vmatprep.subr.mxu0 0.0
  %190 = vmatpush1.msra.mxu0 0.0
  %191 = vmatprep.subr.mxu0 0.0
  %192 = vmatpush1.msra.mxu0 0.0
  %193 = vmatprep.subr.mxu0 0.0
  %194 = vmatpush1.msra.mxu0 %v161
  %195 = vmatprep.subr.mxu0 0.0
  %196 = vmatpush2.msra.mxu0 0.0
  %197 = vmatprep.subr.mxu0 0.0
  %198 = vmatpush2.msra.mxu0 0.0
  %199 = vmatprep.subr.mxu0 0.0
  %200 = vmatpush2.msra.mxu0 0.0
  %201 = vmatprep.subr.mxu0 0.0
  %202 = vmatpush2.msra.mxu0 0.0
  %203 = vmatprep.subr.mxu0 0.0
  %204 = vmatpush2.msra.mxu0 0.0
  %205 = vmatprep.subr.mxu0 0.0
  %206 = vmatpush2.msra.mxu0 0.0
  %207 = vmatprep.subr.mxu0 0.0
  %208 = vmatpush2.msra.mxu0 0.0
  %209 = vmatprep.subr.mxu0 0.0
  %210 = vmatpush2.msra.mxu0 0.0
  %211 = vmatprep.subr.mxu0 0.0
  %212 = vmatpush2.msra.mxu0 0.0
  %213 = vmatprep.subr.mxu0 0.0
  %214 = vmatpush2.msra.mxu0 0.0
  %215 = vmatprep.subr.mxu0 0.0
  %216 = vmatpush2.msra.mxu0 0.0
  %217 = vmatprep.subr.mxu0 0.0
  %218 = vmatpush2.msra.mxu0 0.0
  %219 = vmatprep.subr.mxu0 0.0
  %220 = vmatpush2.msra.mxu0 0.0
  %221 = vmatprep.subr.mxu0 0.0
  %222 = vmatpush2.msra.mxu0 0.0
  %223 = vmatprep.subr.mxu0 0.0
  %224 = vmatpush2.msra.mxu0 0.0
  %225 = vmatprep.subr.mxu0 0.0
  %226 = vmatpush2.msra.mxu0 0.0
  %227 = vmatprep.mubr.f32.mxu0 0.0
  %228 = vmatmul.mubr.f32.gmra.mxu0 %v149
  %v229 = vpop.f32.mrf.mxu0
  %v230 = vadd.f32 %v130, %v229
  %v231 = vpop.f32.mrf.mxu0
  %232 = vmatprep.mubr.f32.mxu0 0.0
  %233 = vmatmul.mubr.f32.gmra.mxu0 %v152
  %v234 = vpop.f32.mrf.mxu0
  %v235 = vadd.f32 %v135, %v234
  %v236 = vpop.f32.mrf.mxu0
  %237 = vmatprep.mubr.f32.mxu0 0.0
  %238 = vmatmul.mubr.f32.gmra.mxu0 %v155
  %v239 = vpop.f32.mrf.mxu0
  %v240 = vadd.f32 %v140, %v239
  %v241 = vpop.f32.mrf.mxu0
  %242 = vmatprep.mubr.f32.mxu0 0.0
  %243 = vmatmul.mubr.f32.gmra.mxu0 %v158
  %v244 = vpop.f32.mrf.mxu0
  %v245 = vadd.f32 %v145, %v244
  %v246 = vpop.f32.mrf.mxu0
  %247 = vdwg.mxu0
  %v248 = vld [vmem:[#allocation2 + $0x2] sm:$0xff]
  %v249 = vld [vmem:[#allocation2 + $0xa] sm:$0xff]
  %v250 = vld [vmem:[#allocation2 + $0x1a] sm:$0xff]
  %v251 = vld [vmem:[#allocation2 + $0x22] sm:$0xff]
  %s252 = scalar_lea.vmem %s1, 8
  %v253 = vld [vmem:[%s252] sm:$0xf]
  %v255 = vsel %vm24, %v248, 0
  %v258 = vsel %vm24, %v249, 0
  %v261 = vsel %vm24, %v250, 0
  %v264 = vsel %vm24, %v251, 0
  %v267 = vsel %vm59, %v253, 0
  %269 = vmatprep.subr.mxu0 0.0
  %270 = vmatpush1.msra.mxu0 0.0
  %271 = vmatprep.subr.mxu0 0.0
  %272 = vmatpush1.msra.mxu0 0.0
  %273 = vmatprep.subr.mxu0 0.0
  %274 = vmatpush1.msra.mxu0 0.0
  %275 = vmatprep.subr.mxu0 0.0
  %276 = vmatpush1.msra.mxu0 0.0
  %277 = vmatprep.subr.mxu0 0.0
  %278 = vmatpush1.msra.mxu0 0.0
  %279 = vmatprep.subr.mxu0 0.0
  %280 = vmatpush1.msra.mxu0 0.0
  %281 = vmatprep.subr.mxu0 0.0
  %282 = vmatpush1.msra.mxu0 0.0
  %283 = vmatprep.subr.mxu0 0.0
  %284 = vmatpush1.msra.mxu0 0.0
  %285 = vmatprep.subr.mxu0 0.0
  %286 = vmatpush1.msra.mxu0 0.0
  %287 = vmatprep.subr.mxu0 0.0
  %288 = vmatpush1.msra.mxu0 0.0
  %289 = vmatprep.subr.mxu0 0.0
  %290 = vmatpush1.msra.mxu0 0.0
  %291 = vmatprep.subr.mxu0 0.0
  %292 = vmatpush1.msra.mxu0 0.0
  %293 = vmatprep.subr.mxu0 0.0
  %294 = vmatpush1.msra.mxu0 0.0
  %295 = vmatprep.subr.mxu0 0.0
  %296 = vmatpush1.msra.mxu0 0.0
  %297 = vmatprep.subr.mxu0 0.0
  %298 = vmatpush1.msra.mxu0 0.0
  %299 = vmatprep.subr.mxu0 0.0
  %300 = vmatpush1.msra.mxu0 %v267
  %301 = vmatprep.subr.mxu0 0.0
  %302 = vmatpush2.msra.mxu0 0.0
  %303 = vmatprep.subr.mxu0 0.0
  %304 = vmatpush2.msra.mxu0 0.0
  %305 = vmatprep.subr.mxu0 0.0
  %306 = vmatpush2.msra.mxu0 0.0
  %307 = vmatprep.subr.mxu0 0.0
  %308 = vmatpush2.msra.mxu0 0.0
  %309 = vmatprep.subr.mxu0 0.0
  %310 = vmatpush2.msra.mxu0 0.0
  %311 = vmatprep.subr.mxu0 0.0
  %312 = vmatpush2.msra.mxu0 0.0
  %313 = vmatprep.subr.mxu0 0.0
  %314 = vmatpush2.msra.mxu0 0.0
  %315 = vmatprep.subr.mxu0 0.0
  %316 = vmatpush2.msra.mxu0 0.0
  %317 = vmatprep.subr.mxu0 0.0
  %318 = vmatpush2.msra.mxu0 0.0
  %319 = vmatprep.subr.mxu0 0.0
  %320 = vmatpush2.msra.mxu0 0.0
  %321 = vmatprep.subr.mxu0 0.0
  %322 = vmatpush2.msra.mxu0 0.0
  %323 = vmatprep.subr.mxu0 0.0
  %324 = vmatpush2.msra.mxu0 0.0
  %325 = vmatprep.subr.mxu0 0.0
  %326 = vmatpush2.msra.mxu0 0.0
  %327 = vmatprep.subr.mxu0 0.0
  %328 = vmatpush2.msra.mxu0 0.0
  %329 = vmatprep.subr.mxu0 0.0
  %330 = vmatpush2.msra.mxu0 0.0
  %331 = vmatprep.subr.mxu0 0.0
  %332 = vmatpush2.msra.mxu0 0.0
  %333 = vmatprep.mubr.f32.mxu0 0.0
  %334 = vmatmul.mubr.f32.gmra.mxu0 %v255
  %v335 = vpop.f32.mrf.mxu0
  %v336 = vadd.f32 0.0, %v335
  %v337 = vpop.f32.mrf.mxu0
  %338 = vmatprep.mubr.f32.mxu0 0.0
  %339 = vmatmul.mubr.f32.gmra.mxu0 %v258
  %v340 = vpop.f32.mrf.mxu0
  %v341 = vadd.f32 0.0, %v340
  %v342 = vpop.f32.mrf.mxu0
  %343 = vmatprep.mubr.f32.mxu0 0.0
  %344 = vmatmul.mubr.f32.gmra.mxu0 %v261
  %v345 = vpop.f32.mrf.mxu0
  %v346 = vadd.f32 0.0, %v345
  %v347 = vpop.f32.mrf.mxu0
  %348 = vmatprep.mubr.f32.mxu0 0.0
  %349 = vmatmul.mubr.f32.gmra.mxu0 %v264
  %v350 = vpop.f32.mrf.mxu0
  %v351 = vadd.f32 0.0, %v350
  %v352 = vpop.f32.mrf.mxu0
  %353 = vdwg.mxu0
  %v354 = vadd.f32 %v230, %v336
  %v355 = vadd.f32 %v235, %v341
  %v356 = vadd.f32 %v240, %v346
  %v357 = vadd.f32 %v245, %v351
  %v358 = vld [vmem:[%s2] sm:$0x1]
  %v360 = vlaneseq
  %v361 = vshrl.u32 %v360, 7
  %v362 = vsub.s32 0, %v361
  %v363 = vrot.slane %v358, %v362
  %v365 = vadd.f32 %v354, %v363
  %v366 = vadd.f32 %v355, %v363
  %v367 = vadd.f32 %v356, %v363
  %v368 = vadd.f32 %v357, %v363
  %v369 = vld [vmem:[%s3] sm:$0x1]
  %v371 = vlaneseq
  %v372 = vshrl.u32 %v371, 7
  %v373 = vsub.s32 0, %v372
  %v374 = vrot.slane %v369, %v373
  %v376 = vmul.f32 %v365, %v374
  %v377 = vmul.f32 %v366, %v374
  %v378 = vmul.f32 %v367, %v374
  %v379 = vmul.f32 %v368, %v374
  %v380 = vld [vmem:[%s4] sm:$0x1]
  %v382 = vlaneseq
  %v383 = vshrl.u32 %v382, 7
  %v384 = vsub.s32 0, %v383
  %v385 = vrot.slane %v380, %v384
  %v387 = vadd.f32 %v376, %v385
  %v388 = vadd.f32 %v377, %v385
  %v389 = vadd.f32 %v378, %v385
  %v390 = vadd.f32 %v379, %v385
  %v391 = vmax.f32 %v387, 0.0
  %v392 = vmax.f32 %v388, 0.0
  %v393 = vmax.f32 %v389, 0.0
  %v394 = vmax.f32 %v390, 0.0
  %vm395 = vcmask 64512
  %396 = vst.msk [vmem:[%s5] sm:$0xff] %vm395, %v391
  %397 = vst.msk [vmem:[%s5 + $0x8] sm:$0xff] %vm395, %v392
  %398 = vst.msk [vmem:[%s5 + $0x10] sm:$0xff] %vm395, %v393
  %399 = vst.msk [vmem:[%s5 + $0x18] sm:$0xff] %vm395, %v394
  // Predicated region
  $region22: #{_lambda_.7} parent=0 // pred_check
    _
  $region23: #{_lambda_.7} parent=0 // pred_check_branch
    %401 = sbr.rel (0) target = $region25
  $region24: #{_lambda_.7} parent=0 // pred_region
    _
  $region25: #{_lambda_.7} parent=0 // pred_fallthru
    _
  // Predicated region
  $region26: #{_lambda_.7} parent=0 // pred_check
    _
  $region27: #{_lambda_.7} parent=0 // pred_check_branch
    %403 = sbr.rel (0) target = $region29
  $region28: #{_lambda_.7} parent=0 // pred_region
    _
  $region29: #{_lambda_.7} parent=0 // pred_fallthru
    _

// kernel: _lambda_.9
$region0: #{_lambda_.9}
  #allocation0 [shape = 'u32[]', space=smem, size = 0x4, offset = 0x4, fixed_abs, tag = 'smem constant byte address 0x4 - core index']
  #allocation1 [shape = 'u32[144,128]{1,0:T(1,128)}', space=vmem, size = 0x12000, scoped, tag = 'internal scratch']
  #allocation2 [shape = 'f32[2,17,8]{2,1,0:T(8,128)}', space=vmem, size = 0x6000, scoped, tag = 'scratch operand']
  #allocation3 [shape = 'f32[2,10,8]{2,1,0:T(8,128)}', space=vmem, size = 0x4000, scoped, tag = 'scratch operand']
  #allocation4 [shape = 'f32[2,17,8]{2,1,0:T(8,128)}', space=vmem, size = 0x6000, scoped, tag = 'scratch operand']
  %s0 = inlined_call_operand.vmem [shape: f32[2,16,8], index: 0, kind: input, shape index: {}]
  %s1 = inlined_call_operand.vmem [shape: f32[1,8], index: 1, kind: input, shape index: {}]
  %s2 = inlined_call_operand.vmem [shape: f32[1,8], index: 2, kind: input, shape index: {}]
  %s3 = inlined_call_operand.vmem [shape: f32[3,8,8], index: 3, kind: input, shape index: {}]
  %s4 = inlined_call_operand.vmem [shape: f32[1,8], index: 4, kind: input, shape index: {}]
  %s5 = inlined_call_operand.vmem [shape: f32[1,8], index: 5, kind: input, shape index: {}]
  %s6 = inlined_call_operand.vmem [shape: f32[1,8], index: 6, kind: input, shape index: {}]
  %s7 = inlined_call_operand.vmem [shape: f32[3,8,8], index: 7, kind: input, shape index: {}]
  %s8 = inlined_call_operand.vmem [shape: f32[1,8], index: 8, kind: input, shape index: {}]
  %s9 = inlined_call_operand.vmem [shape: f32[2,8,8], index: 9, kind: output, shape index: {}]
  %s10 = sld [smem:[#allocation0]]
  $region46: #{_lambda_.9} parent=0
    _
  %s12 = ssub.s32 1, %s10
  %s13 = scalar_select 0, %s12, %s10
  // Predicated region
  $region2: #{_lambda_.9} parent=0 // pred_check
    _
  $region3: #{_lambda_.9} parent=0 // pred_check_branch
    %15 = sbr.rel (0) target = $region5
  $region4: #{_lambda_.9} parent=0 // pred_region
    _
  $region5: #{_lambda_.9} parent=0 // pred_fallthru
    _
  // Predicated region
  $region6: #{_lambda_.9} parent=0 // pred_check
    _
  $region7: #{_lambda_.9} parent=0 // pred_check_branch
    %17 = sbr.rel (0) target = $region9
  $region8: #{_lambda_.9} parent=0 // pred_region
    _
  $region9: #{_lambda_.9} parent=0 // pred_fallthru
    _
  // Predicated region
  $region10: #{_lambda_.9} parent=0 // pred_check
    _
  $region11: #{_lambda_.9} parent=0 // pred_check_branch
    %19 = sbr.rel (0) target = $region13
  $region12: #{_lambda_.9} parent=0 // pred_region
    _
  $region13: #{_lambda_.9} parent=0 // pred_fallthru
    _
  // Predicated region
  $region14: #{_lambda_.9} parent=0 // pred_check
    _
  $region15: #{_lambda_.9} parent=0 // pred_check_branch
    %21 = sbr.rel (0) target = $region17
  $region16: #{_lambda_.9} parent=0 // pred_region
    _
  $region17: #{_lambda_.9} parent=0 // pred_fallthru
    _
  // Predicated region
  $region18: #{_lambda_.9} parent=0 // pred_check
    _
  $region19: #{_lambda_.9} parent=0 // pred_check_branch
    %23 = sbr.rel (0) target = $region21
  $region20: #{_lambda_.9} parent=0 // pred_region
    _
  $region21: #{_lambda_.9} parent=0 // pred_fallthru
    _
  // Predicated region
  $region22: #{_lambda_.9} parent=0 // pred_check
    _
  $region23: #{_lambda_.9} parent=0 // pred_check_branch
    %25 = sbr.rel (0) target = $region25
  $region24: #{_lambda_.9} parent=0 // pred_region
    _
  $region25: #{_lambda_.9} parent=0 // pred_fallthru
    _
  // Predicated region
  $region26: #{_lambda_.9} parent=0 // pred_check
    _
  $region27: #{_lambda_.9} parent=0 // pred_check_branch
    %27 = sbr.rel (0) target = $region29
  $region28: #{_lambda_.9} parent=0 // pred_region
    _
  $region29: #{_lambda_.9} parent=0 // pred_fallthru
    _
  // Predicated region
  $region30: #{_lambda_.9} parent=0 // pred_check
    _
  $region31: #{_lambda_.9} parent=0 // pred_check_branch
    %29 = sbr.rel (0) target = $region33
  $region32: #{_lambda_.9} parent=0 // pred_region
    _
  $region33: #{_lambda_.9} parent=0 // pred_fallthru
    _
  // Predicated region
  $region34: #{_lambda_.9} parent=0 // pred_check
    _
  $region35: #{_lambda_.9} parent=0 // pred_check_branch
    %31 = sbr.rel (0) target = $region37
  $region36: #{_lambda_.9} parent=0 // pred_region
    _
  $region37: #{_lambda_.9} parent=0 // pred_fallthru
    _
  %v32 = vld [vmem:[%s0] sm:$0xff]
  %v33 = vld [vmem:[%s0 + $0x8] sm:$0xff]
  %v34 = vld [vmem:[%s0 + $0x10] sm:$0xff]
  %v35 = vld [vmem:[%s0 + $0x18] sm:$0xff]
  %v36 = vld [vmem:[%s1] sm:$0x1]
  %v38 = vlaneseq
  %v39 = vshrl.u32 %v38, 7
  %v40 = vsub.s32 0, %v39
  %v41 = vrot.slane %v36, %v40
  %v43 = vmul.f32 %v32, %v41
  %v44 = vmul.f32 %v33, %v41
  %v45 = vmul.f32 %v34, %v41
  %v46 = vmul.f32 %v35, %v41
  %v47 = vld [vmem:[%s2] sm:$0x1]
  %v49 = vlaneseq
  %v50 = vshrl.u32 %v49, 7
  %v51 = vsub.s32 0, %v50
  %v52 = vrot.slane %v47, %v51
  %v54 = vadd.f32 %v43, %v52
  %v55 = vadd.f32 %v44, %v52
  %v56 = vadd.f32 %v45, %v52
  %v57 = vadd.f32 %v46, %v52
  %v58 = vmax.f32 %v54, 0.0
  %v59 = vmax.f32 %v55, 0.0
  %v60 = vmax.f32 %v56, 0.0
  %v61 = vmax.f32 %v57, 0.0
  %vm62 = vcmask 64512
  %63 = vst.msk [vmem:[#allocation2] sm:$0xff] %vm62, 0.0
  %64 = vst.msk [vmem:[#allocation2 + $0x8] sm:$0xff] %vm62, 0.0
  %vm65 = vcmask 57344
  %66 = vst.msk [vmem:[#allocation2 + $0x10] sm:$0x1] %vm65, 0.0
  %67 = vst.msk [vmem:[#allocation2 + $0x18] sm:$0xff] %vm62, 0.0
  %68 = vst.msk [vmem:[#allocation2 + $0x20] sm:$0xff] %vm62, 0.0
  %69 = vst.msk [vmem:[#allocation2 + $0x28] sm:$0x1] %vm65, 0.0
  %70 = vst.msk [vmem:[#allocation2] sm:$0xff] %vm62, %v58
  %71 = vst.msk [vmem:[#allocation2 + $0x8] sm:$0xff] %vm62, %v59
  %72 = vst.msk [vmem:[#allocation2 + $0x18] sm:$0xff] %vm62, %v60
  %73 = vst.msk [vmem:[#allocation2 + $0x20] sm:$0xff] %vm62, %v61
  %v74 = vld [vmem:[#allocation2] ss:$2 sm:$0xff]
  %s75 = scalar_lea.vmem [#allocation2], 24
  %v76 = vld [vmem:[%s75] ss:$2 sm:$0xff]
  %v77 = vld [vmem:[%s3] sm:$0xff]
  %s78 = scalar_lea.vmem [#allocation2], 1
  %v79 = vld [vmem:[%s78] ss:$2 sm:$0xff]
  %s80 = scalar_lea.vmem [#allocation2], 25
  %v81 = vld [vmem:[%s80] ss:$2 sm:$0xff]
  %s82 = scalar_lea.vmem %s3, 8
  %v83 = vld [vmem:[%s82] sm:$0xff]
  %v85 = vsel %vm62, %v79, 0
  %v88 = vsel %vm62, %v81, 0
  %90 = vmatprep.subr.mxu0 0.0
  %91 = vmatpush1.msra.mxu0 0.0
  %92 = vmatprep.subr.mxu0 0.0
  %93 = vmatpush1.msra.mxu0 0.0
  %94 = vmatprep.subr.mxu0 0.0
  %95 = vmatpush1.msra.mxu0 0.0
  %96 = vmatprep.subr.mxu0 0.0
  %97 = vmatpush1.msra.mxu0 0.0
  %98 = vmatprep.subr.mxu0 0.0
  %99 = vmatpush1.msra.mxu0 0.0
  %100 = vmatprep.subr.mxu0 0.0
  %101 = vmatpush1.msra.mxu0 0.0
  %102 = vmatprep.subr.mxu0 0.0
  %103 = vmatpush1.msra.mxu0 0.0
  %104 = vmatprep.subr.mxu0 0.0
  %105 = vmatpush1.msra.mxu0 0.0
  %106 = vmatprep.subr.mxu0 0.0
  %107 = vmatpush1.msra.mxu0 0.0
  %108 = vmatprep.subr.mxu0 0.0
  %109 = vmatpush1.msra.mxu0 0.0
  %110 = vmatprep.subr.mxu0 0.0
  %111 = vmatpush1.msra.mxu0 0.0
  %112 = vmatprep.subr.mxu0 0.0
  %113 = vmatpush1.msra.mxu0 0.0
  %114 = vmatprep.subr.mxu0 0.0
  %115 = vmatpush1.msra.mxu0 0.0
  %116 = vmatprep.subr.mxu0 0.0
  %117 = vmatpush1.msra.mxu0 0.0
  %118 = vmatprep.subr.mxu0 0.0
  %119 = vmatpush1.msra.mxu0 0.0
  %120 = vmatprep.subr.mxu0 0.0
  %121 = vmatpush1.msra.mxu0 %v83
  %122 = vmatprep.subr.mxu0 0.0
  %123 = vmatpush2.msra.mxu0 0.0
  %124 = vmatprep.subr.mxu0 0.0
  %125 = vmatpush2.msra.mxu0 0.0
  %126 = vmatprep.subr.mxu0 0.0
  %127 = vmatpush2.msra.mxu0 0.0
  %128 = vmatprep.subr.mxu0 0.0
  %129 = vmatpush2.msra.mxu0 0.0
  %130 = vmatprep.subr.mxu0 0.0
  %131 = vmatpush2.msra.mxu0 0.0
  %132 = vmatprep.subr.mxu0 0.0
  %133 = vmatpush2.msra.mxu0 0.0
  %134 = vmatprep.subr.mxu0 0.0
  %135 = vmatpush2.msra.mxu0 0.0
  %136 = vmatprep.subr.mxu0 0.0
  %137 = vmatpush2.msra.mxu0 0.0
  %138 = vmatprep.subr.mxu0 0.0
  %139 = vmatpush2.msra.mxu0 0.0
  %140 = vmatprep.subr.mxu0 0.0
  %141 = vmatpush2.msra.mxu0 0.0
  %142 = vmatprep.subr.mxu0 0.0
  %143 = vmatpush2.msra.mxu0 0.0
  %144 = vmatprep.subr.mxu0 0.0
  %145 = vmatpush2.msra.mxu0 0.0
  %146 = vmatprep.subr.mxu0 0.0
  %147 = vmatpush2.msra.mxu0 0.0
  %148 = vmatprep.subr.mxu0 0.0
  %149 = vmatpush2.msra.mxu0 0.0
  %150 = vmatprep.subr.mxu0 0.0
  %151 = vmatpush2.msra.mxu0 0.0
  %152 = vmatprep.subr.mxu0 0.0
  %153 = vmatpush2.msra.mxu0 0.0
  %154 = vmatprep.mubr.f32.mxu0 0.0
  %155 = vmatmul.mubr.f32.gmra.mxu0 %v85
  %v156 = vpop.f32.mrf.mxu0
  %v157 = vadd.f32 0.0, %v156
  %v158 = vpop.f32.mrf.mxu0
  %159 = vmatprep.mubr.f32.mxu0 0.0
  %160 = vmatmul.mubr.f32.gmra.mxu0 %v88
  %v161 = vpop.f32.mrf.mxu0
  %v162 = vadd.f32 0.0, %v161
  %v163 = vpop.f32.mrf.mxu0
  %164 = vdwg.mxu0
  %v166 = vsel %vm62, %v74, 0
  %v169 = vsel %vm62, %v76, 0
  %171 = vmatprep.subr.mxu0 0.0
  %172 = vmatpush1.msra.mxu0 0.0
  %173 = vmatprep.subr.mxu0 0.0
  %174 = vmatpush1.msra.mxu0 0.0
  %175 = vmatprep.subr.mxu0 0.0
  %176 = vmatpush1.msra.mxu0 0.0
  %177 = vmatprep.subr.mxu0 0.0
  %178 = vmatpush1.msra.mxu0 0.0
  %179 = vmatprep.subr.mxu0 0.0
  %180 = vmatpush1.msra.mxu0 0.0
  %181 = vmatprep.subr.mxu0 0.0
  %182 = vmatpush1.msra.mxu0 0.0
  %183 = vmatprep.subr.mxu0 0.0
  %184 = vmatpush1.msra.mxu0 0.0
  %185 = vmatprep.subr.mxu0 0.0
  %186 = vmatpush1.msra.mxu0 0.0
  %187 = vmatprep.subr.mxu0 0.0
  %188 = vmatpush1.msra.mxu0 0.0
  %189 = vmatprep.subr.mxu0 0.0
  %190 = vmatpush1.msra.mxu0 0.0
  %191 = vmatprep.subr.mxu0 0.0
  %192 = vmatpush1.msra.mxu0 0.0
  %193 = vmatprep.subr.mxu0 0.0
  %194 = vmatpush1.msra.mxu0 0.0
  %195 = vmatprep.subr.mxu0 0.0
  %196 = vmatpush1.msra.mxu0 0.0
  %197 = vmatprep.subr.mxu0 0.0
  %198 = vmatpush1.msra.mxu0 0.0
  %199 = vmatprep.subr.mxu0 0.0
  %200 = vmatpush1.msra.mxu0 0.0
  %201 = vmatprep.subr.mxu0 0.0
  %202 = vmatpush1.msra.mxu0 %v77
  %203 = vmatprep.subr.mxu0 0.0
  %204 = vmatpush2.msra.mxu0 0.0
  %205 = vmatprep.subr.mxu0 0.0
  %206 = vmatpush2.msra.mxu0 0.0
  %207 = vmatprep.subr.mxu0 0.0
  %208 = vmatpush2.msra.mxu0 0.0
  %209 = vmatprep.subr.mxu0 0.0
  %210 = vmatpush2.msra.mxu0 0.0
  %211 = vmatprep.subr.mxu0 0.0
  %212 = vmatpush2.msra.mxu0 0.0
  %213 = vmatprep.subr.mxu0 0.0
  %214 = vmatpush2.msra.mxu0 0.0
  %215 = vmatprep.subr.mxu0 0.0
  %216 = vmatpush2.msra.mxu0 0.0
  %217 = vmatprep.subr.mxu0 0.0
  %218 = vmatpush2.msra.mxu0 0.0
  %219 = vmatprep.subr.mxu0 0.0
  %220 = vmatpush2.msra.mxu0 0.0
  %221 = vmatprep.subr.mxu0 0.0
  %222 = vmatpush2.msra.mxu0 0.0
  %223 = vmatprep.subr.mxu0 0.0
  %224 = vmatpush2.msra.mxu0 0.0
  %225 = vmatprep.subr.mxu0 0.0
  %226 = vmatpush2.msra.mxu0 0.0
  %227 = vmatprep.subr.mxu0 0.0
  %228 = vmatpush2.msra.mxu0 0.0
  %229 = vmatprep.subr.mxu0 0.0
  %230 = vmatpush2.msra.mxu0 0.0
  %231 = vmatprep.subr.mxu0 0.0
  %232 = vmatpush2.msra.mxu0 0.0
  %233 = vmatprep.subr.mxu0 0.0
  %234 = vmatpush2.msra.mxu0 0.0
  %235 = vmatprep.mubr.f32.mxu0 0.0
  %236 = vmatmul.mubr.f32.gmra.mxu0 %v166
  %v237 = vpop.f32.mrf.mxu0
  %v238 = vadd.f32 %v157, %v237
  %v239 = vpop.f32.mrf.mxu0
  %240 = vmatprep.mubr.f32.mxu0 0.0
  %241 = vmatmul.mubr.f32.gmra.mxu0 %v169
  %v242 = vpop.f32.mrf.mxu0
  %v243 = vadd.f32 %v162, %v242
  %v244 = vpop.f32.mrf.mxu0
  %245 = vdwg.mxu0
  %s246 = scalar_lea.vmem [#allocation2], 2
  %v247 = vld [vmem:[%s246] ss:$2 sm:$0xff]
  %s248 = scalar_lea.vmem [#allocation2], 26
  %v249 = vld [vmem:[%s248] ss:$2 sm:$0xff]
  %s250 = scalar_lea.vmem %s3, 16
  %v251 = vld [vmem:[%s250] sm:$0xff]
  %v253 = vsel %vm62, %v247, 0
  %v256 = vsel %vm62, %v249, 0
  %258 = vmatprep.subr.mxu0 0.0
  %259 = vmatpush1.msra.mxu0 0.0
  %260 = vmatprep.subr.mxu0 0.0
  %261 = vmatpush1.msra.mxu0 0.0
  %262 = vmatprep.subr.mxu0 0.0
  %263 = vmatpush1.msra.mxu0 0.0
  %264 = vmatprep.subr.mxu0 0.0
  %265 = vmatpush1.msra.mxu0 0.0
  %266 = vmatprep.subr.mxu0 0.0
  %267 = vmatpush1.msra.mxu0 0.0
  %268 = vmatprep.subr.mxu0 0.0
  %269 = vmatpush1.msra.mxu0 0.0
  %270 = vmatprep.subr.mxu0 0.0
  %271 = vmatpush1.msra.mxu0 0.0
  %272 = vmatprep.subr.mxu0 0.0
  %273 = vmatpush1.msra.mxu0 0.0
  %274 = vmatprep.subr.mxu0 0.0
  %275 = vmatpush1.msra.mxu0 0.0
  %276 = vmatprep.subr.mxu0 0.0
  %277 = vmatpush1.msra.mxu0 0.0
  %278 = vmatprep.subr.mxu0 0.0
  %279 = vmatpush1.msra.mxu0 0.0
  %280 = vmatprep.subr.mxu0 0.0
  %281 = vmatpush1.msra.mxu0 0.0
  %282 = vmatprep.subr.mxu0 0.0
  %283 = vmatpush1.msra.mxu0 0.0
  %284 = vmatprep.subr.mxu0 0.0
  %285 = vmatpush1.msra.mxu0 0.0
  %286 = vmatprep.subr.mxu0 0.0
  %287 = vmatpush1.msra.mxu0 0.0
  %288 = vmatprep.subr.mxu0 0.0
  %289 = vmatpush1.msra.mxu0 %v251
  %290 = vmatprep.subr.mxu0 0.0
  %291 = vmatpush2.msra.mxu0 0.0
  %292 = vmatprep.subr.mxu0 0.0
  %293 = vmatpush2.msra.mxu0 0.0
  %294 = vmatprep.subr.mxu0 0.0
  %295 = vmatpush2.msra.mxu0 0.0
  %296 = vmatprep.subr.mxu0 0.0
  %297 = vmatpush2.msra.mxu0 0.0
  %298 = vmatprep.subr.mxu0 0.0
  %299 = vmatpush2.msra.mxu0 0.0
  %300 = vmatprep.subr.mxu0 0.0
  %301 = vmatpush2.msra.mxu0 0.0
  %302 = vmatprep.subr.mxu0 0.0
  %303 = vmatpush2.msra.mxu0 0.0
  %304 = vmatprep.subr.mxu0 0.0
  %305 = vmatpush2.msra.mxu0 0.0
  %306 = vmatprep.subr.mxu0 0.0
  %307 = vmatpush2.msra.mxu0 0.0
  %308 = vmatprep.subr.mxu0 0.0
  %309 = vmatpush2.msra.mxu0 0.0
  %310 = vmatprep.subr.mxu0 0.0
  %311 = vmatpush2.msra.mxu0 0.0
  %312 = vmatprep.subr.mxu0 0.0
  %313 = vmatpush2.msra.mxu0 0.0
  %314 = vmatprep.subr.mxu0 0.0
  %315 = vmatpush2.msra.mxu0 0.0
  %316 = vmatprep.subr.mxu0 0.0
  %317 = vmatpush2.msra.mxu0 0.0
  %318 = vmatprep.subr.mxu0 0.0
  %319 = vmatpush2.msra.mxu0 0.0
  %320 = vmatprep.subr.mxu0 0.0
  %321 = vmatpush2.msra.mxu0 0.0
  %322 = vmatprep.mubr.f32.mxu0 0.0
  %323 = vmatmul.mubr.f32.gmra.mxu0 %v253
  %v324 = vpop.f32.mrf.mxu0
  %v325 = vadd.f32 0.0, %v324
  %v326 = vpop.f32.mrf.mxu0
  %327 = vmatprep.mubr.f32.mxu0 0.0
  %328 = vmatmul.mubr.f32.gmra.mxu0 %v256
  %v329 = vpop.f32.mrf.mxu0
  %v330 = vadd.f32 0.0, %v329
  %v331 = vpop.f32.mrf.mxu0
  %332 = vdwg.mxu0
  %v333 = vadd.f32 %v238, %v325
  %v334 = vadd.f32 %v243, %v330
  %v335 = vld [vmem:[%s4] sm:$0x1]
  %v337 = vlaneseq
  %v338 = vshrl.u32 %v337, 7
  %v339 = vsub.s32 0, %v338
  %v340 = vrot.slane %v335, %v339
  %v342 = vadd.f32 %v333, %v340
  %v343 = vadd.f32 %v334, %v340
  %v344 = vld [vmem:[%s5] sm:$0x1]
  %v346 = vlaneseq
  %v347 = vshrl.u32 %v346, 7
  %v348 = vsub.s32 0, %v347
  %v349 = vrot.slane %v344, %v348
  %v351 = vmul.f32 %v342, %v349
  %v352 = vmul.f32 %v343, %v349
  %v353 = vld [vmem:[%s6] sm:$0x1]
  %v355 = vlaneseq
  %v356 = vshrl.u32 %v355, 7
  %v357 = vsub.s32 0, %v356
  %v358 = vrot.slane %v353, %v357
  %v360 = vadd.f32 %v351, %v358
  %v361 = vadd.f32 %v352, %v358
  %v362 = vmax.f32 %v360, 0.0
  %v363 = vmax.f32 %v361, 0.0
  %364 = vst.msk [vmem:[#allocation3] sm:$0xff] %vm62, 0.0
  %vm365 = vcmask 58368
  %366 = vst.msk [vmem:[#allocation3 + $0x8] sm:$0x3] %vm365, 0.0
  %367 = vst.msk [vmem:[#allocation3 + $0x10] sm:$0xff] %vm62, 0.0
  %368 = vst.msk [vmem:[#allocation3 + $0x18] sm:$0x3] %vm365, 0.0
  %369 = vst.msk [vmem:[#allocation3 + $0x1] sm:$0xff] %vm62, %v362
  %370 = vst.msk [vmem:[#allocation3 + $0x11] sm:$0xff] %vm62, %v363
  %v371 = vld [vmem:[#allocation3] sm:$0xff]
  %v372 = vld [vmem:[#allocation3 + $0x10] sm:$0xff]
  %v373 = vld [vmem:[%s7] sm:$0xff]
  %v374 = vld [vmem:[#allocation3 + $0x1] sm:$0xff]
  %v375 = vld [vmem:[#allocation3 + $0x11] sm:$0xff]
  %s376 = scalar_lea.vmem %s7, 8
  %v377 = vld [vmem:[%s376] sm:$0xff]
  %v379 = vsel %vm62, %v374, 0
  %v382 = vsel %vm62, %v375, 0
  %384 = vmatprep.subr.mxu0 0.0
  %385 = vmatpush1.msra.mxu0 0.0
  %386 = vmatprep.subr.mxu0 0.0
  %387 = vmatpush1.msra.mxu0 0.0
  %388 = vmatprep.subr.mxu0 0.0
  %389 = vmatpush1.msra.mxu0 0.0
  %390 = vmatprep.subr.mxu0 0.0
  %391 = vmatpush1.msra.mxu0 0.0
  %392 = vmatprep.subr.mxu0 0.0
  %393 = vmatpush1.msra.mxu0 0.0
  %394 = vmatprep.subr.mxu0 0.0
  %395 = vmatpush1.msra.mxu0 0.0
  %396 = vmatprep.subr.mxu0 0.0
  %397 = vmatpush1.msra.mxu0 0.0
  %398 = vmatprep.subr.mxu0 0.0
  %399 = vmatpush1.msra.mxu0 0.0
  %400 = vmatprep.subr.mxu0 0.0
  %401 = vmatpush1.msra.mxu0 0.0
  %402 = vmatprep.subr.mxu0 0.0
  %403 = vmatpush1.msra.mxu0 0.0
  %404 = vmatprep.subr.mxu0 0.0
  %405 = vmatpush1.msra.mxu0 0.0
  %406 = vmatprep.subr.mxu0 0.0
  %407 = vmatpush1.msra.mxu0 0.0
  %408 = vmatprep.subr.mxu0 0.0
  %409 = vmatpush1.msra.mxu0 0.0
  %410 = vmatprep.subr.mxu0 0.0
  %411 = vmatpush1.msra.mxu0 0.0
  %412 = vmatprep.subr.mxu0 0.0
  %413 = vmatpush1.msra.mxu0 0.0
  %414 = vmatprep.subr.mxu0 0.0
  %415 = vmatpush1.msra.mxu0 %v377
  %416 = vmatprep.subr.mxu0 0.0
  %417 = vmatpush2.msra.mxu0 0.0
  %418 = vmatprep.subr.mxu0 0.0
  %419 = vmatpush2.msra.mxu0 0.0
  %420 = vmatprep.subr.mxu0 0.0
  %421 = vmatpush2.msra.mxu0 0.0
  %422 = vmatprep.subr.mxu0 0.0
  %423 = vmatpush2.msra.mxu0 0.0
  %424 = vmatprep.subr.mxu0 0.0
  %425 = vmatpush2.msra.mxu0 0.0
  %426 = vmatprep.subr.mxu0 0.0
  %427 = vmatpush2.msra.mxu0 0.0
  %428 = vmatprep.subr.mxu0 0.0
  %429 = vmatpush2.msra.mxu0 0.0
  %430 = vmatprep.subr.mxu0 0.0
  %431 = vmatpush2.msra.mxu0 0.0
  %432 = vmatprep.subr.mxu0 0.0
  %433 = vmatpush2.msra.mxu0 0.0
  %434 = vmatprep.subr.mxu0 0.0
  %435 = vmatpush2.msra.mxu0 0.0
  %436 = vmatprep.subr.mxu0 0.0
  %437 = vmatpush2.msra.mxu0 0.0
  %438 = vmatprep.subr.mxu0 0.0
  %439 = vmatpush2.msra.mxu0 0.0
  %440 = vmatprep.subr.mxu0 0.0
  %441 = vmatpush2.msra.mxu0 0.0
  %442 = vmatprep.subr.mxu0 0.0
  %443 = vmatpush2.msra.mxu0 0.0
  %444 = vmatprep.subr.mxu0 0.0
  %445 = vmatpush2.msra.mxu0 0.0
  %446 = vmatprep.subr.mxu0 0.0
  %447 = vmatpush2.msra.mxu0 0.0
  %448 = vmatprep.mubr.f32.mxu0 0.0
  %449 = vmatmul.mubr.f32.gmra.mxu0 %v379
  %v450 = vpop.f32.mrf.mxu0
  %v451 = vadd.f32 0.0, %v450
  %v452 = vpop.f32.mrf.mxu0
  %453 = vmatprep.mubr.f32.mxu0 0.0
  %454 = vmatmul.mubr.f32.gmra.mxu0 %v382
  %v455 = vpop.f32.mrf.mxu0
  %v456 = vadd.f32 0.0, %v455
  %v457 = vpop.f32.mrf.mxu0
  %458 = vdwg.mxu0
  %v460 = vsel %vm62, %v371, 0
  %v463 = vsel %vm62, %v372, 0
  %465 = vmatprep.subr.mxu0 0.0
  %466 = vmatpush1.msra.mxu0 0.0
  %467 = vmatprep.subr.mxu0 0.0
  %468 = vmatpush1.msra.mxu0 0.0
  %469 = vmatprep.subr.mxu0 0.0
  %470 = vmatpush1.msra.mxu0 0.0
  %471 = vmatprep.subr.mxu0 0.0
  %472 = vmatpush1.msra.mxu0 0.0
  %473 = vmatprep.subr.mxu0 0.0
  %474 = vmatpush1.msra.mxu0 0.0
  %475 = vmatprep.subr.mxu0 0.0
  %476 = vmatpush1.msra.mxu0 0.0
  %477 = vmatprep.subr.mxu0 0.0
  %478 = vmatpush1.msra.mxu0 0.0
  %479 = vmatprep.subr.mxu0 0.0
  %480 = vmatpush1.msra.mxu0 0.0
  %481 = vmatprep.subr.mxu0 0.0
  %482 = vmatpush1.msra.mxu0 0.0
  %483 = vmatprep.subr.mxu0 0.0
  %484 = vmatpush1.msra.mxu0 0.0
  %485 = vmatprep.subr.mxu0 0.0
  %486 = vmatpush1.msra.mxu0 0.0
  %487 = vmatprep.subr.mxu0 0.0
  %488 = vmatpush1.msra.mxu0 0.0
  %489 = vmatprep.subr.mxu0 0.0
  %490 = vmatpush1.msra.mxu0 0.0
  %491 = vmatprep.subr.mxu0 0.0
  %492 = vmatpush1.msra.mxu0 0.0
  %493 = vmatprep.subr.mxu0 0.0
  %494 = vmatpush1.msra.mxu0 0.0
  %495 = vmatprep.subr.mxu0 0.0
  %496 = vmatpush1.msra.mxu0 %v373
  %497 = vmatprep.subr.mxu0 0.0
  %498 = vmatpush2.msra.mxu0 0.0
  %499 = vmatprep.subr.mxu0 0.0
  %500 = vmatpush2.msra.mxu0 0.0
  %501 = vmatprep.subr.mxu0 0.0
  %502 = vmatpush2.msra.mxu0 0.0
  %503 = vmatprep.subr.mxu0 0.0
  %504 = vmatpush2.msra.mxu0 0.0
  %505 = vmatprep.subr.mxu0 0.0
  %506 = vmatpush2.msra.mxu0 0.0
  %507 = vmatprep.subr.mxu0 0.0
  %508 = vmatpush2.msra.mxu0 0.0
  %509 = vmatprep.subr.mxu0 0.0
  %510 = vmatpush2.msra.mxu0 0.0
  %511 = vmatprep.subr.mxu0 0.0
  %512 = vmatpush2.msra.mxu0 0.0
  %513 = vmatprep.subr.mxu0 0.0
  %514 = vmatpush2.msra.mxu0 0.0
  %515 = vmatprep.subr.mxu0 0.0
  %516 = vmatpush2.msra.mxu0 0.0
  %517 = vmatprep.subr.mxu0 0.0
  %518 = vmatpush2.msra.mxu0 0.0
  %519 = vmatprep.subr.mxu0 0.0
  %520 = vmatpush2.msra.mxu0 0.0
  %521 = vmatprep.subr.mxu0 0.0
  %522 = vmatpush2.msra.mxu0 0.0
  %523 = vmatprep.subr.mxu0 0.0
  %524 = vmatpush2.msra.mxu0 0.0
  %525 = vmatprep.subr.mxu0 0.0
  %526 = vmatpush2.msra.mxu0 0.0
  %527 = vmatprep.subr.mxu0 0.0
  %528 = vmatpush2.msra.mxu0 0.0
  %529 = vmatprep.mubr.f32.mxu0 0.0
  %530 = vmatmul.mubr.f32.gmra.mxu0 %v460
  %v531 = vpop.f32.mrf.mxu0
  %v532 = vadd.f32 %v451, %v531
  %v533 = vpop.f32.mrf.mxu0
  %534 = vmatprep.mubr.f32.mxu0 0.0
  %535 = vmatmul.mubr.f32.gmra.mxu0 %v463
  %v536 = vpop.f32.mrf.mxu0
  %v537 = vadd.f32 %v456, %v536
  %v538 = vpop.f32.mrf.mxu0
  %539 = vdwg.mxu0
  %v540 = vld [vmem:[#allocation3 + $0x2] sm:$0xff]
  %v541 = vld [vmem:[#allocation3 + $0x12] sm:$0xff]
  %s542 = scalar_lea.vmem %s7, 16
  %v543 = vld [vmem:[%s542] sm:$0xff]
  %v545 = vsel %vm62, %v540, 0
  %v548 = vsel %vm62, %v541, 0
  %550 = vmatprep.subr.mxu0 0.0
  %551 = vmatpush1.msra.mxu0 0.0
  %552 = vmatprep.subr.mxu0 0.0
  %553 = vmatpush1.msra.mxu0 0.0
  %554 = vmatprep.subr.mxu0 0.0
  %555 = vmatpush1.msra.mxu0 0.0
  %556 = vmatprep.subr.mxu0 0.0
  %557 = vmatpush1.msra.mxu0 0.0
  %558 = vmatprep.subr.mxu0 0.0
  %559 = vmatpush1.msra.mxu0 0.0
  %560 = vmatprep.subr.mxu0 0.0
  %561 = vmatpush1.msra.mxu0 0.0
  %562 = vmatprep.subr.mxu0 0.0
  %563 = vmatpush1.msra.mxu0 0.0
  %564 = vmatprep.subr.mxu0 0.0
  %565 = vmatpush1.msra.mxu0 0.0
  %566 = vmatprep.subr.mxu0 0.0
  %567 = vmatpush1.msra.mxu0 0.0
  %568 = vmatprep.subr.mxu0 0.0
  %569 = vmatpush1.msra.mxu0 0.0
  %570 = vmatprep.subr.mxu0 0.0
  %571 = vmatpush1.msra.mxu0 0.0
  %572 = vmatprep.subr.mxu0 0.0
  %573 = vmatpush1.msra.mxu0 0.0
  %574 = vmatprep.subr.mxu0 0.0
  %575 = vmatpush1.msra.mxu0 0.0
  %576 = vmatprep.subr.mxu0 0.0
  %577 = vmatpush1.msra.mxu0 0.0
  %578 = vmatprep.subr.mxu0 0.0
  %579 = vmatpush1.msra.mxu0 0.0
  %580 = vmatprep.subr.mxu0 0.0
  %581 = vmatpush1.msra.mxu0 %v543
  %582 = vmatprep.subr.mxu0 0.0
  %583 = vmatpush2.msra.mxu0 0.0
  %584 = vmatprep.subr.mxu0 0.0
  %585 = vmatpush2.msra.mxu0 0.0
  %586 = vmatprep.subr.mxu0 0.0
  %587 = vmatpush2.msra.mxu0 0.0
  %588 = vmatprep.subr.mxu0 0.0
  %589 = vmatpush2.msra.mxu0 0.0
  %590 = vmatprep.subr.mxu0 0.0
  %591 = vmatpush2.msra.mxu0 0.0
  %592 = vmatprep.subr.mxu0 0.0
  %593 = vmatpush2.msra.mxu0 0.0
  %594 = vmatprep.subr.mxu0 0.0
  %595 = vmatpush2.msra.mxu0 0.0
  %596 = vmatprep.subr.mxu0 0.0
  %597 = vmatpush2.msra.mxu0 0.0
  %598 = vmatprep.subr.mxu0 0.0
  %599 = vmatpush2.msra.mxu0 0.0
  %600 = vmatprep.subr.mxu0 0.0
  %601 = vmatpush2.msra.mxu0 0.0
  %602 = vmatprep.subr.mxu0 0.0
  %603 = vmatpush2.msra.mxu0 0.0
  %604 = vmatprep.subr.mxu0 0.0
  %605 = vmatpush2.msra.mxu0 0.0
  %606 = vmatprep.subr.mxu0 0.0
  %607 = vmatpush2.msra.mxu0 0.0
  %608 = vmatprep.subr.mxu0 0.0
  %609 = vmatpush2.msra.mxu0 0.0
  %610 = vmatprep.subr.mxu0 0.0
  %611 = vmatpush2.msra.mxu0 0.0
  %612 = vmatprep.subr.mxu0 0.0
  %613 = vmatpush2.msra.mxu0 0.0
  %614 = vmatprep.mubr.f32.mxu0 0.0
  %615 = vmatmul.mubr.f32.gmra.mxu0 %v545
  %v616 = vpop.f32.mrf.mxu0
  %v617 = vadd.f32 0.0, %v616
  %v618 = vpop.f32.mrf.mxu0
  %619 = vmatprep.mubr.f32.mxu0 0.0
  %620 = vmatmul.mubr.f32.gmra.mxu0 %v548
  %v621 = vpop.f32.mrf.mxu0
  %v622 = vadd.f32 0.0, %v621
  %v623 = vpop.f32.mrf.mxu0
  %624 = vdwg.mxu0
  %v625 = vadd.f32 %v532, %v617
  %v626 = vadd.f32 %v537, %v622
  %v627 = vld [vmem:[%s8] sm:$0x1]
  %v629 = vlaneseq
  %v630 = vshrl.u32 %v629, 7
  %v631 = vsub.s32 0, %v630
  %v632 = vrot.slane %v627, %v631
  %v634 = vadd.f32 %v625, %v632
  %v635 = vadd.f32 %v626, %v632
  %636 = vst.msk [vmem:[#allocation4] sm:$0xff] %vm62, 0.0
  %637 = vst.msk [vmem:[#allocation4 + $0x8] sm:$0xff] %vm62, 0.0
  %638 = vst.msk [vmem:[#allocation4 + $0x10] sm:$0x1] %vm65, 0.0
  %639 = vst.msk [vmem:[#allocation4 + $0x18] sm:$0xff] %vm62, 0.0
  %640 = vst.msk [vmem:[#allocation4 + $0x20] sm:$0xff] %vm62, 0.0
  %641 = vst.msk [vmem:[#allocation4 + $0x28] sm:$0x1] %vm65, 0.0
  %642 = vst.msk [vmem:[#allocation4] sm:$0xff] %vm62, %v32
  %643 = vst.msk [vmem:[#allocation4 + $0x8] sm:$0xff] %vm62, %v33
  %644 = vst.msk [vmem:[#allocation4 + $0x18] sm:$0xff] %vm62, %v34
  %645 = vst.msk [vmem:[#allocation4 + $0x20] sm:$0xff] %vm62, %v35
  %v646 = vld [vmem:[#allocation4] ss:$2 sm:$0xff]
  %s647 = scalar_lea.vmem [#allocation4], 24
  %v648 = vld [vmem:[%s647] ss:$2 sm:$0xff]
  %s649 = scalar_lea.vmem [#allocation4], 1
  %v650 = vld [vmem:[%s649] ss:$2 sm:$0xff]
  %s651 = scalar_lea.vmem [#allocation4], 25
  %v652 = vld [vmem:[%s651] ss:$2 sm:$0xff]
  %v653 = vmax.f32 %v646, %v650
  %v654 = vmax.f32 %v648, %v652
  %v655 = vadd.f32 %v634, %v653
  %v656 = vadd.f32 %v635, %v654
  %657 = vst.msk [vmem:[%s9] sm:$0xff] %vm62, %v655
  %658 = vst.msk [vmem:[%s9 + $0x8] sm:$0xff] %vm62, %v656
  // Predicated region
  $region38: #{_lambda_.9} parent=0 // pred_check
    _
  $region39: #{_lambda_.9} parent=0 // pred_check_branch
    %660 = sbr.rel (0) target = $region41
  $region40: #{_lambda_.9} parent=0 // pred_region
    _
  $region41: #{_lambda_.9} parent=0 // pred_fallthru
    _
  // Predicated region
  $region42: #{_lambda_.9} parent=0 // pred_check
    _
  $region43: #{_lambda_.9} parent=0 // pred_check_branch
    %662 = sbr.rel (0) target = $region45
  $region44: #{_lambda_.9} parent=0 // pred_region
    _
  $region45: #{_lambda_.9} parent=0 // pred_fallthru
    _

// kernel: _lambda_.8
$region0: #{_lambda_.8}
  #allocation0 [shape = 'u32[]', space=smem, size = 0x4, offset = 0x4, fixed_abs, tag = 'smem constant byte address 0x4 - core index']
  #allocation1 [shape = 'u32[144,128]{1,0:T(1,128)}', space=vmem, size = 0x12000, scoped, tag = 'internal scratch']
  #allocation2 [shape = 'f32[2,18,8]{2,1,0:T(8,128)}', space=vmem, size = 0x6000, scoped, tag = 'scratch operand']
  #allocation3 [shape = 'f32[2,18,8]{2,1,0:T(8,128)}', space=vmem, size = 0x6000, scoped, tag = 'scratch operand']
  %s0 = inlined_call_operand.vmem [shape: f32[2,16,8], index: 0, kind: input, shape index: {}]
  %s1 = inlined_call_operand.vmem [shape: f32[1,8], index: 1, kind: input, shape index: {}]
  %s2 = inlined_call_operand.vmem [shape: f32[1,8], index: 2, kind: input, shape index: {}]
  %s3 = inlined_call_operand.vmem [shape: f32[3,8,8], index: 3, kind: input, shape index: {}]
  %s4 = inlined_call_operand.vmem [shape: f32[1,8], index: 4, kind: input, shape index: {}]
  %s5 = inlined_call_operand.vmem [shape: f32[1,8], index: 5, kind: input, shape index: {}]
  %s6 = inlined_call_operand.vmem [shape: f32[1,8], index: 6, kind: input, shape index: {}]
  %s7 = inlined_call_operand.vmem [shape: f32[3,8,8], index: 7, kind: input, shape index: {}]
  %s8 = inlined_call_operand.vmem [shape: f32[1,8], index: 8, kind: input, shape index: {}]
  %s9 = inlined_call_operand.vmem [shape: f32[2,16,8], index: 9, kind: output, shape index: {}]
  %s10 = sld [smem:[#allocation0]]
  $region46: #{_lambda_.8} parent=0
    _
  %s12 = ssub.s32 1, %s10
  %s13 = scalar_select 0, %s12, %s10
  // Predicated region
  $region2: #{_lambda_.8} parent=0 // pred_check
    _
  $region3: #{_lambda_.8} parent=0 // pred_check_branch
    %15 = sbr.rel (0) target = $region5
  $region4: #{_lambda_.8} parent=0 // pred_region
    _
  $region5: #{_lambda_.8} parent=0 // pred_fallthru
    _
  // Predicated region
  $region6: #{_lambda_.8} parent=0 // pred_check
    _
  $region7: #{_lambda_.8} parent=0 // pred_check_branch
    %17 = sbr.rel (0) target = $region9
  $region8: #{_lambda_.8} parent=0 // pred_region
    _
  $region9: #{_lambda_.8} parent=0 // pred_fallthru
    _
  // Predicated region
  $region10: #{_lambda_.8} parent=0 // pred_check
    _
  $region11: #{_lambda_.8} parent=0 // pred_check_branch
    %19 = sbr.rel (0) target = $region13
  $region12: #{_lambda_.8} parent=0 // pred_region
    _
  $region13: #{_lambda_.8} parent=0 // pred_fallthru
    _
  // Predicated region
  $region14: #{_lambda_.8} parent=0 // pred_check
    _
  $region15: #{_lambda_.8} parent=0 // pred_check_branch
    %21 = sbr.rel (0) target = $region17
  $region16: #{_lambda_.8} parent=0 // pred_region
    _
  $region17: #{_lambda_.8} parent=0 // pred_fallthru
    _
  // Predicated region
  $region18: #{_lambda_.8} parent=0 // pred_check
    _
  $region19: #{_lambda_.8} parent=0 // pred_check_branch
    %23 = sbr.rel (0) target = $region21
  $region20: #{_lambda_.8} parent=0 // pred_region
    _
  $region21: #{_lambda_.8} parent=0 // pred_fallthru
    _
  // Predicated region
  $region22: #{_lambda_.8} parent=0 // pred_check
    _
  $region23: #{_lambda_.8} parent=0 // pred_check_branch
    %25 = sbr.rel (0) target = $region25
  $region24: #{_lambda_.8} parent=0 // pred_region
    _
  $region25: #{_lambda_.8} parent=0 // pred_fallthru
    _
  // Predicated region
  $region26: #{_lambda_.8} parent=0 // pred_check
    _
  $region27: #{_lambda_.8} parent=0 // pred_check_branch
    %27 = sbr.rel (0) target = $region29
  $region28: #{_lambda_.8} parent=0 // pred_region
    _
  $region29: #{_lambda_.8} parent=0 // pred_fallthru
    _
  // Predicated region
  $region30: #{_lambda_.8} parent=0 // pred_check
    _
  $region31: #{_lambda_.8} parent=0 // pred_check_branch
    %29 = sbr.rel (0) target = $region33
  $region32: #{_lambda_.8} parent=0 // pred_region
    _
  $region33: #{_lambda_.8} parent=0 // pred_fallthru
    _
  // Predicated region
  $region34: #{_lambda_.8} parent=0 // pred_check
    _
  $region35: #{_lambda_.8} parent=0 // pred_check_branch
    %31 = sbr.rel (0) target = $region37
  $region36: #{_lambda_.8} parent=0 // pred_region
    _
  $region37: #{_lambda_.8} parent=0 // pred_fallthru
    _
  %v32 = vld [vmem:[%s0] sm:$0xff]
  %v33 = vld [vmem:[%s0 + $0x8] sm:$0xff]
  %v34 = vld [vmem:[%s0 + $0x10] sm:$0xff]
  %v35 = vld [vmem:[%s0 + $0x18] sm:$0xff]
  %vm36 = vcmask 64512
  %37 = vst.msk [vmem:[#allocation2] sm:$0xff] %vm36, 0.0
  %38 = vst.msk [vmem:[#allocation2 + $0x8] sm:$0xff] %vm36, 0.0
  %vm39 = vcmask 58368
  %40 = vst.msk [vmem:[#allocation2 + $0x10] sm:$0x3] %vm39, 0.0
  %41 = vst.msk [vmem:[#allocation2 + $0x18] sm:$0xff] %vm36, 0.0
  %42 = vst.msk [vmem:[#allocation2 + $0x20] sm:$0xff] %vm36, 0.0
  %43 = vst.msk [vmem:[#allocation2 + $0x28] sm:$0x3] %vm39, 0.0
  %44 = vst.msk [vmem:[#allocation2 + $0x1] sm:$0xff] %vm36, %v32
  %45 = vst.msk [vmem:[#allocation2 + $0x9] sm:$0xff] %vm36, %v33
  %46 = vst.msk [vmem:[#allocation2 + $0x19] sm:$0xff] %vm36, %v34
  %47 = vst.msk [vmem:[#allocation2 + $0x21] sm:$0xff] %vm36, %v35
  %v48 = vld [vmem:[#allocation2] sm:$0xff]
  %v49 = vld [vmem:[#allocation2 + $0x8] sm:$0xff]
  %v50 = vld [vmem:[#allocation2 + $0x18] sm:$0xff]
  %v51 = vld [vmem:[#allocation2 + $0x20] sm:$0xff]
  %v52 = vld [vmem:[%s3] sm:$0xff]
  %v53 = vld [vmem:[#allocation2 + $0x1] sm:$0xff]
  %v54 = vld [vmem:[#allocation2 + $0x9] sm:$0xff]
  %v55 = vld [vmem:[#allocation2 + $0x19] sm:$0xff]
  %v56 = vld [vmem:[#allocation2 + $0x21] sm:$0xff]
  %s57 = scalar_lea.vmem %s3, 8
  %v58 = vld [vmem:[%s57] sm:$0xff]
  %v60 = vsel %vm36, %v53, 0
  %v63 = vsel %vm36, %v54, 0
  %v66 = vsel %vm36, %v55, 0
  %v69 = vsel %vm36, %v56, 0
  %71 = vmatprep.subr.mxu0 0.0
  %72 = vmatpush1.msra.mxu0 0.0
  %73 = vmatprep.subr.mxu0 0.0
  %74 = vmatpush1.msra.mxu0 0.0
  %75 = vmatprep.subr.mxu0 0.0
  %76 = vmatpush1.msra.mxu0 0.0
  %77 = vmatprep.subr.mxu0 0.0
  %78 = vmatpush1.msra.mxu0 0.0
  %79 = vmatprep.subr.mxu0 0.0
  %80 = vmatpush1.msra.mxu0 0.0
  %81 = vmatprep.subr.mxu0 0.0
  %82 = vmatpush1.msra.mxu0 0.0
  %83 = vmatprep.subr.mxu0 0.0
  %84 = vmatpush1.msra.mxu0 0.0
  %85 = vmatprep.subr.mxu0 0.0
  %86 = vmatpush1.msra.mxu0 0.0
  %87 = vmatprep.subr.mxu0 0.0
  %88 = vmatpush1.msra.mxu0 0.0
  %89 = vmatprep.subr.mxu0 0.0
  %90 = vmatpush1.msra.mxu0 0.0
  %91 = vmatprep.subr.mxu0 0.0
  %92 = vmatpush1.msra.mxu0 0.0
  %93 = vmatprep.subr.mxu0 0.0
  %94 = vmatpush1.msra.mxu0 0.0
  %95 = vmatprep.subr.mxu0 0.0
  %96 = vmatpush1.msra.mxu0 0.0
  %97 = vmatprep.subr.mxu0 0.0
  %98 = vmatpush1.msra.mxu0 0.0
  %99 = vmatprep.subr.mxu0 0.0
  %100 = vmatpush1.msra.mxu0 0.0
  %101 = vmatprep.subr.mxu0 0.0
  %102 = vmatpush1.msra.mxu0 %v58
  %103 = vmatprep.subr.mxu0 0.0
  %104 = vmatpush2.msra.mxu0 0.0
  %105 = vmatprep.subr.mxu0 0.0
  %106 = vmatpush2.msra.mxu0 0.0
  %107 = vmatprep.subr.mxu0 0.0
  %108 = vmatpush2.msra.mxu0 0.0
  %109 = vmatprep.subr.mxu0 0.0
  %110 = vmatpush2.msra.mxu0 0.0
  %111 = vmatprep.subr.mxu0 0.0
  %112 = vmatpush2.msra.mxu0 0.0
  %113 = vmatprep.subr.mxu0 0.0
  %114 = vmatpush2.msra.mxu0 0.0
  %115 = vmatprep.subr.mxu0 0.0
  %116 = vmatpush2.msra.mxu0 0.0
  %117 = vmatprep.subr.mxu0 0.0
  %118 = vmatpush2.msra.mxu0 0.0
  %119 = vmatprep.subr.mxu0 0.0
  %120 = vmatpush2.msra.mxu0 0.0
  %121 = vmatprep.subr.mxu0 0.0
  %122 = vmatpush2.msra.mxu0 0.0
  %123 = vmatprep.subr.mxu0 0.0
  %124 = vmatpush2.msra.mxu0 0.0
  %125 = vmatprep.subr.mxu0 0.0
  %126 = vmatpush2.msra.mxu0 0.0
  %127 = vmatprep.subr.mxu0 0.0
  %128 = vmatpush2.msra.mxu0 0.0
  %129 = vmatprep.subr.mxu0 0.0
  %130 = vmatpush2.msra.mxu0 0.0
  %131 = vmatprep.subr.mxu0 0.0
  %132 = vmatpush2.msra.mxu0 0.0
  %133 = vmatprep.subr.mxu0 0.0
  %134 = vmatpush2.msra.mxu0 0.0
  %135 = vmatprep.mubr.f32.mxu0 0.0
  %136 = vmatmul.mubr.f32.gmra.mxu0 %v60
  %v137 = vpop.f32.mrf.mxu0
  %v138 = vadd.f32 0.0, %v137
  %v139 = vpop.f32.mrf.mxu0
  %140 = vmatprep.mubr.f32.mxu0 0.0
  %141 = vmatmul.mubr.f32.gmra.mxu0 %v63
  %v142 = vpop.f32.mrf.mxu0
  %v143 = vadd.f32 0.0, %v142
  %v144 = vpop.f32.mrf.mxu0
  %145 = vmatprep.mubr.f32.mxu0 0.0
  %146 = vmatmul.mubr.f32.gmra.mxu0 %v66
  %v147 = vpop.f32.mrf.mxu0
  %v148 = vadd.f32 0.0, %v147
  %v149 = vpop.f32.mrf.mxu0
  %150 = vmatprep.mubr.f32.mxu0 0.0
  %151 = vmatmul.mubr.f32.gmra.mxu0 %v69
  %v152 = vpop.f32.mrf.mxu0
  %v153 = vadd.f32 0.0, %v152
  %v154 = vpop.f32.mrf.mxu0
  %155 = vdwg.mxu0
  %v157 = vsel %vm36, %v48, 0
  %v160 = vsel %vm36, %v49, 0
  %v163 = vsel %vm36, %v50, 0
  %v166 = vsel %vm36, %v51, 0
  %168 = vmatprep.subr.mxu0 0.0
  %169 = vmatpush1.msra.mxu0 0.0
  %170 = vmatprep.subr.mxu0 0.0
  %171 = vmatpush1.msra.mxu0 0.0
  %172 = vmatprep.subr.mxu0 0.0
  %173 = vmatpush1.msra.mxu0 0.0
  %174 = vmatprep.subr.mxu0 0.0
  %175 = vmatpush1.msra.mxu0 0.0
  %176 = vmatprep.subr.mxu0 0.0
  %177 = vmatpush1.msra.mxu0 0.0
  %178 = vmatprep.subr.mxu0 0.0
  %179 = vmatpush1.msra.mxu0 0.0
  %180 = vmatprep.subr.mxu0 0.0
  %181 = vmatpush1.msra.mxu0 0.0
  %182 = vmatprep.subr.mxu0 0.0
  %183 = vmatpush1.msra.mxu0 0.0
  %184 = vmatprep.subr.mxu0 0.0
  %185 = vmatpush1.msra.mxu0 0.0
  %186 = vmatprep.subr.mxu0 0.0
  %187 = vmatpush1.msra.mxu0 0.0
  %188 = vmatprep.subr.mxu0 0.0
  %189 = vmatpush1.msra.mxu0 0.0
  %190 = vmatprep.subr.mxu0 0.0
  %191 = vmatpush1.msra.mxu0 0.0
  %192 = vmatprep.subr.mxu0 0.0
  %193 = vmatpush1.msra.mxu0 0.0
  %194 = vmatprep.subr.mxu0 0.0
  %195 = vmatpush1.msra.mxu0 0.0
  %196 = vmatprep.subr.mxu0 0.0
  %197 = vmatpush1.msra.mxu0 0.0
  %198 = vmatprep.subr.mxu0 0.0
  %199 = vmatpush1.msra.mxu0 %v52
  %200 = vmatprep.subr.mxu0 0.0
  %201 = vmatpush2.msra.mxu0 0.0
  %202 = vmatprep.subr.mxu0 0.0
  %203 = vmatpush2.msra.mxu0 0.0
  %204 = vmatprep.subr.mxu0 0.0
  %205 = vmatpush2.msra.mxu0 0.0
  %206 = vmatprep.subr.mxu0 0.0
  %207 = vmatpush2.msra.mxu0 0.0
  %208 = vmatprep.subr.mxu0 0.0
  %209 = vmatpush2.msra.mxu0 0.0
  %210 = vmatprep.subr.mxu0 0.0
  %211 = vmatpush2.msra.mxu0 0.0
  %212 = vmatprep.subr.mxu0 0.0
  %213 = vmatpush2.msra.mxu0 0.0
  %214 = vmatprep.subr.mxu0 0.0
  %215 = vmatpush2.msra.mxu0 0.0
  %216 = vmatprep.subr.mxu0 0.0
  %217 = vmatpush2.msra.mxu0 0.0
  %218 = vmatprep.subr.mxu0 0.0
  %219 = vmatpush2.msra.mxu0 0.0
  %220 = vmatprep.subr.mxu0 0.0
  %221 = vmatpush2.msra.mxu0 0.0
  %222 = vmatprep.subr.mxu0 0.0
  %223 = vmatpush2.msra.mxu0 0.0
  %224 = vmatprep.subr.mxu0 0.0
  %225 = vmatpush2.msra.mxu0 0.0
  %226 = vmatprep.subr.mxu0 0.0
  %227 = vmatpush2.msra.mxu0 0.0
  %228 = vmatprep.subr.mxu0 0.0
  %229 = vmatpush2.msra.mxu0 0.0
  %230 = vmatprep.subr.mxu0 0.0
  %231 = vmatpush2.msra.mxu0 0.0
  %232 = vmatprep.mubr.f32.mxu0 0.0
  %233 = vmatmul.mubr.f32.gmra.mxu0 %v157
  %v234 = vpop.f32.mrf.mxu0
  %v235 = vadd.f32 %v138, %v234
  %v236 = vpop.f32.mrf.mxu0
  %237 = vmatprep.mubr.f32.mxu0 0.0
  %238 = vmatmul.mubr.f32.gmra.mxu0 %v160
  %v239 = vpop.f32.mrf.mxu0
  %v240 = vadd.f32 %v143, %v239
  %v241 = vpop.f32.mrf.mxu0
  %242 = vmatprep.mubr.f32.mxu0 0.0
  %243 = vmatmul.mubr.f32.gmra.mxu0 %v163
  %v244 = vpop.f32.mrf.mxu0
  %v245 = vadd.f32 %v148, %v244
  %v246 = vpop.f32.mrf.mxu0
  %247 = vmatprep.mubr.f32.mxu0 0.0
  %248 = vmatmul.mubr.f32.gmra.mxu0 %v166
  %v249 = vpop.f32.mrf.mxu0
  %v250 = vadd.f32 %v153, %v249
  %v251 = vpop.f32.mrf.mxu0
  %252 = vdwg.mxu0
  %v253 = vld [vmem:[#allocation2 + $0x2] sm:$0xff]
  %v254 = vld [vmem:[#allocation2 + $0xa] sm:$0xff]
  %v255 = vld [vmem:[#allocation2 + $0x1a] sm:$0xff]
  %v256 = vld [vmem:[#allocation2 + $0x22] sm:$0xff]
  %s257 = scalar_lea.vmem %s3, 16
  %v258 = vld [vmem:[%s257] sm:$0xff]
  %v260 = vsel %vm36, %v253, 0
  %v263 = vsel %vm36, %v254, 0
  %v266 = vsel %vm36, %v255, 0
  %v269 = vsel %vm36, %v256, 0
  %271 = vmatprep.subr.mxu0 0.0
  %272 = vmatpush1.msra.mxu0 0.0
  %273 = vmatprep.subr.mxu0 0.0
  %274 = vmatpush1.msra.mxu0 0.0
  %275 = vmatprep.subr.mxu0 0.0
  %276 = vmatpush1.msra.mxu0 0.0
  %277 = vmatprep.subr.mxu0 0.0
  %278 = vmatpush1.msra.mxu0 0.0
  %279 = vmatprep.subr.mxu0 0.0
  %280 = vmatpush1.msra.mxu0 0.0
  %281 = vmatprep.subr.mxu0 0.0
  %282 = vmatpush1.msra.mxu0 0.0
  %283 = vmatprep.subr.mxu0 0.0
  %284 = vmatpush1.msra.mxu0 0.0
  %285 = vmatprep.subr.mxu0 0.0
  %286 = vmatpush1.msra.mxu0 0.0
  %287 = vmatprep.subr.mxu0 0.0
  %288 = vmatpush1.msra.mxu0 0.0
  %289 = vmatprep.subr.mxu0 0.0
  %290 = vmatpush1.msra.mxu0 0.0
  %291 = vmatprep.subr.mxu0 0.0
  %292 = vmatpush1.msra.mxu0 0.0
  %293 = vmatprep.subr.mxu0 0.0
  %294 = vmatpush1.msra.mxu0 0.0
  %295 = vmatprep.subr.mxu0 0.0
  %296 = vmatpush1.msra.mxu0 0.0
  %297 = vmatprep.subr.mxu0 0.0
  %298 = vmatpush1.msra.mxu0 0.0
  %299 = vmatprep.subr.mxu0 0.0
  %300 = vmatpush1.msra.mxu0 0.0
  %301 = vmatprep.subr.mxu0 0.0
  %302 = vmatpush1.msra.mxu0 %v258
  %303 = vmatprep.subr.mxu0 0.0
  %304 = vmatpush2.msra.mxu0 0.0
  %305 = vmatprep.subr.mxu0 0.0
  %306 = vmatpush2.msra.mxu0 0.0
  %307 = vmatprep.subr.mxu0 0.0
  %308 = vmatpush2.msra.mxu0 0.0
  %309 = vmatprep.subr.mxu0 0.0
  %310 = vmatpush2.msra.mxu0 0.0
  %311 = vmatprep.subr.mxu0 0.0
  %312 = vmatpush2.msra.mxu0 0.0
  %313 = vmatprep.subr.mxu0 0.0
  %314 = vmatpush2.msra.mxu0 0.0
  %315 = vmatprep.subr.mxu0 0.0
  %316 = vmatpush2.msra.mxu0 0.0
  %317 = vmatprep.subr.mxu0 0.0
  %318 = vmatpush2.msra.mxu0 0.0
  %319 = vmatprep.subr.mxu0 0.0
  %320 = vmatpush2.msra.mxu0 0.0
  %321 = vmatprep.subr.mxu0 0.0
  %322 = vmatpush2.msra.mxu0 0.0
  %323 = vmatprep.subr.mxu0 0.0
  %324 = vmatpush2.msra.mxu0 0.0
  %325 = vmatprep.subr.mxu0 0.0
  %326 = vmatpush2.msra.mxu0 0.0
  %327 = vmatprep.subr.mxu0 0.0
  %328 = vmatpush2.msra.mxu0 0.0
  %329 = vmatprep.subr.mxu0 0.0
  %330 = vmatpush2.msra.mxu0 0.0
  %331 = vmatprep.subr.mxu0 0.0
  %332 = vmatpush2.msra.mxu0 0.0
  %333 = vmatprep.subr.mxu0 0.0
  %334 = vmatpush2.msra.mxu0 0.0
  %335 = vmatprep.mubr.f32.mxu0 0.0
  %336 = vmatmul.mubr.f32.gmra.mxu0 %v260
  %v337 = vpop.f32.mrf.mxu0
  %v338 = vadd.f32 0.0, %v337
  %v339 = vpop.f32.mrf.mxu0
  %340 = vmatprep.mubr.f32.mxu0 0.0
  %341 = vmatmul.mubr.f32.gmra.mxu0 %v263
  %v342 = vpop.f32.mrf.mxu0
  %v343 = vadd.f32 0.0, %v342
  %v344 = vpop.f32.mrf.mxu0
  %345 = vmatprep.mubr.f32.mxu0 0.0
  %346 = vmatmul.mubr.f32.gmra.mxu0 %v266
  %v347 = vpop.f32.mrf.mxu0
  %v348 = vadd.f32 0.0, %v347
  %v349 = vpop.f32.mrf.mxu0
  %350 = vmatprep.mubr.f32.mxu0 0.0
  %351 = vmatmul.mubr.f32.gmra.mxu0 %v269
  %v352 = vpop.f32.mrf.mxu0
  %v353 = vadd.f32 0.0, %v352
  %v354 = vpop.f32.mrf.mxu0
  %355 = vdwg.mxu0
  %v356 = vadd.f32 %v235, %v338
  %v357 = vadd.f32 %v240, %v343
  %v358 = vadd.f32 %v245, %v348
  %v359 = vadd.f32 %v250, %v353
  %v360 = vld [vmem:[%s4] sm:$0x1]
  %v362 = vlaneseq
  %v363 = vshrl.u32 %v362, 7
  %v364 = vsub.s32 0, %v363
  %v365 = vrot.slane %v360, %v364
  %v367 = vadd.f32 %v356, %v365
  %v368 = vadd.f32 %v357, %v365
  %v369 = vadd.f32 %v358, %v365
  %v370 = vadd.f32 %v359, %v365
  %v371 = vld [vmem:[%s5] sm:$0x1]
  %v373 = vlaneseq
  %v374 = vshrl.u32 %v373, 7
  %v375 = vsub.s32 0, %v374
  %v376 = vrot.slane %v371, %v375
  %v378 = vmul.f32 %v367, %v376
  %v379 = vmul.f32 %v368, %v376
  %v380 = vmul.f32 %v369, %v376
  %v381 = vmul.f32 %v370, %v376
  %v382 = vld [vmem:[%s6] sm:$0x1]
  %v384 = vlaneseq
  %v385 = vshrl.u32 %v384, 7
  %v386 = vsub.s32 0, %v385
  %v387 = vrot.slane %v382, %v386
  %v389 = vadd.f32 %v378, %v387
  %v390 = vadd.f32 %v379, %v387
  %v391 = vadd.f32 %v380, %v387
  %v392 = vadd.f32 %v381, %v387
  %v393 = vmax.f32 %v389, 0.0
  %v394 = vmax.f32 %v390, 0.0
  %v395 = vmax.f32 %v391, 0.0
  %v396 = vmax.f32 %v392, 0.0
  %397 = vst.msk [vmem:[#allocation3] sm:$0xff] %vm36, 0.0
  %398 = vst.msk [vmem:[#allocation3 + $0x8] sm:$0xff] %vm36, 0.0
  %399 = vst.msk [vmem:[#allocation3 + $0x10] sm:$0x3] %vm39, 0.0
  %400 = vst.msk [vmem:[#allocation3 + $0x18] sm:$0xff] %vm36, 0.0
  %401 = vst.msk [vmem:[#allocation3 + $0x20] sm:$0xff] %vm36, 0.0
  %402 = vst.msk [vmem:[#allocation3 + $0x28] sm:$0x3] %vm39, 0.0
  %403 = vst.msk [vmem:[#allocation3 + $0x1] sm:$0xff] %vm36, %v393
  %404 = vst.msk [vmem:[#allocation3 + $0x9] sm:$0xff] %vm36, %v394
  %405 = vst.msk [vmem:[#allocation3 + $0x19] sm:$0xff] %vm36, %v395
  %406 = vst.msk [vmem:[#allocation3 + $0x21] sm:$0xff] %vm36, %v396
  %v407 = vld [vmem:[#allocation3] sm:$0xff]
  %v408 = vld [vmem:[#allocation3 + $0x8] sm:$0xff]
  %v409 = vld [vmem:[#allocation3 + $0x18] sm:$0xff]
  %v410 = vld [vmem:[#allocation3 + $0x20] sm:$0xff]
  %v411 = vld [vmem:[%s7] sm:$0xff]
  %v412 = vld [vmem:[#allocation3 + $0x1] sm:$0xff]
  %v413 = vld [vmem:[#allocation3 + $0x9] sm:$0xff]
  %v414 = vld [vmem:[#allocation3 + $0x19] sm:$0xff]
  %v415 = vld [vmem:[#allocation3 + $0x21] sm:$0xff]
  %s416 = scalar_lea.vmem %s7, 8
  %v417 = vld [vmem:[%s416] sm:$0xff]
  %v419 = vsel %vm36, %v412, 0
  %v422 = vsel %vm36, %v413, 0
  %v425 = vsel %vm36, %v414, 0
  %v428 = vsel %vm36, %v415, 0
  %430 = vmatprep.subr.mxu0 0.0
  %431 = vmatpush1.msra.mxu0 0.0
  %432 = vmatprep.subr.mxu0 0.0
  %433 = vmatpush1.msra.mxu0 0.0
  %434 = vmatprep.subr.mxu0 0.0
  %435 = vmatpush1.msra.mxu0 0.0
  %436 = vmatprep.subr.mxu0 0.0
  %437 = vmatpush1.msra.mxu0 0.0
  %438 = vmatprep.subr.mxu0 0.0
  %439 = vmatpush1.msra.mxu0 0.0
  %440 = vmatprep.subr.mxu0 0.0
  %441 = vmatpush1.msra.mxu0 0.0
  %442 = vmatprep.subr.mxu0 0.0
  %443 = vmatpush1.msra.mxu0 0.0
  %444 = vmatprep.subr.mxu0 0.0
  %445 = vmatpush1.msra.mxu0 0.0
  %446 = vmatprep.subr.mxu0 0.0
  %447 = vmatpush1.msra.mxu0 0.0
  %448 = vmatprep.subr.mxu0 0.0
  %449 = vmatpush1.msra.mxu0 0.0
  %450 = vmatprep.subr.mxu0 0.0
  %451 = vmatpush1.msra.mxu0 0.0
  %452 = vmatprep.subr.mxu0 0.0
  %453 = vmatpush1.msra.mxu0 0.0
  %454 = vmatprep.subr.mxu0 0.0
  %455 = vmatpush1.msra.mxu0 0.0
  %456 = vmatprep.subr.mxu0 0.0
  %457 = vmatpush1.msra.mxu0 0.0
  %458 = vmatprep.subr.mxu0 0.0
  %459 = vmatpush1.msra.mxu0 0.0
  %460 = vmatprep.subr.mxu0 0.0
  %461 = vmatpush1.msra.mxu0 %v417
  %462 = vmatprep.subr.mxu0 0.0
  %463 = vmatpush2.msra.mxu0 0.0
  %464 = vmatprep.subr.mxu0 0.0
  %465 = vmatpush2.msra.mxu0 0.0
  %466 = vmatprep.subr.mxu0 0.0
  %467 = vmatpush2.msra.mxu0 0.0
  %468 = vmatprep.subr.mxu0 0.0
  %469 = vmatpush2.msra.mxu0 0.0
  %470 = vmatprep.subr.mxu0 0.0
  %471 = vmatpush2.msra.mxu0 0.0
  %472 = vmatprep.subr.mxu0 0.0
  %473 = vmatpush2.msra.mxu0 0.0
  %474 = vmatprep.subr.mxu0 0.0
  %475 = vmatpush2.msra.mxu0 0.0
  %476 = vmatprep.subr.mxu0 0.0
  %477 = vmatpush2.msra.mxu0 0.0
  %478 = vmatprep.subr.mxu0 0.0
  %479 = vmatpush2.msra.mxu0 0.0
  %480 = vmatprep.subr.mxu0 0.0
  %481 = vmatpush2.msra.mxu0 0.0
  %482 = vmatprep.subr.mxu0 0.0
  %483 = vmatpush2.msra.mxu0 0.0
  %484 = vmatprep.subr.mxu0 0.0
  %485 = vmatpush2.msra.mxu0 0.0
  %486 = vmatprep.subr.mxu0 0.0
  %487 = vmatpush2.msra.mxu0 0.0
  %488 = vmatprep.subr.mxu0 0.0
  %489 = vmatpush2.msra.mxu0 0.0
  %490 = vmatprep.subr.mxu0 0.0
  %491 = vmatpush2.msra.mxu0 0.0
  %492 = vmatprep.subr.mxu0 0.0
  %493 = vmatpush2.msra.mxu0 0.0
  %494 = vmatprep.mubr.f32.mxu0 0.0
  %495 = vmatmul.mubr.f32.gmra.mxu0 %v419
  %v496 = vpop.f32.mrf.mxu0
  %v497 = vadd.f32 0.0, %v496
  %v498 = vpop.f32.mrf.mxu0
  %499 = vmatprep.mubr.f32.mxu0 0.0
  %500 = vmatmul.mubr.f32.gmra.mxu0 %v422
  %v501 = vpop.f32.mrf.mxu0
  %v502 = vadd.f32 0.0, %v501
  %v503 = vpop.f32.mrf.mxu0
  %504 = vmatprep.mubr.f32.mxu0 0.0
  %505 = vmatmul.mubr.f32.gmra.mxu0 %v425
  %v506 = vpop.f32.mrf.mxu0
  %v507 = vadd.f32 0.0, %v506
  %v508 = vpop.f32.mrf.mxu0
  %509 = vmatprep.mubr.f32.mxu0 0.0
  %510 = vmatmul.mubr.f32.gmra.mxu0 %v428
  %v511 = vpop.f32.mrf.mxu0
  %v512 = vadd.f32 0.0, %v511
  %v513 = vpop.f32.mrf.mxu0
  %514 = vdwg.mxu0
  %v516 = vsel %vm36, %v407, 0
  %v519 = vsel %vm36, %v408, 0
  %v522 = vsel %vm36, %v409, 0
  %v525 = vsel %vm36, %v410, 0
  %527 = vmatprep.subr.mxu0 0.0
  %528 = vmatpush1.msra.mxu0 0.0
  %529 = vmatprep.subr.mxu0 0.0
  %530 = vmatpush1.msra.mxu0 0.0
  %531 = vmatprep.subr.mxu0 0.0
  %532 = vmatpush1.msra.mxu0 0.0
  %533 = vmatprep.subr.mxu0 0.0
  %534 = vmatpush1.msra.mxu0 0.0
  %535 = vmatprep.subr.mxu0 0.0
  %536 = vmatpush1.msra.mxu0 0.0
  %537 = vmatprep.subr.mxu0 0.0
  %538 = vmatpush1.msra.mxu0 0.0
  %539 = vmatprep.subr.mxu0 0.0
  %540 = vmatpush1.msra.mxu0 0.0
  %541 = vmatprep.subr.mxu0 0.0
  %542 = vmatpush1.msra.mxu0 0.0
  %543 = vmatprep.subr.mxu0 0.0
  %544 = vmatpush1.msra.mxu0 0.0
  %545 = vmatprep.subr.mxu0 0.0
  %546 = vmatpush1.msra.mxu0 0.0
  %547 = vmatprep.subr.mxu0 0.0
  %548 = vmatpush1.msra.mxu0 0.0
  %549 = vmatprep.subr.mxu0 0.0
  %550 = vmatpush1.msra.mxu0 0.0
  %551 = vmatprep.subr.mxu0 0.0
  %552 = vmatpush1.msra.mxu0 0.0
  %553 = vmatprep.subr.mxu0 0.0
  %554 = vmatpush1.msra.mxu0 0.0
  %555 = vmatprep.subr.mxu0 0.0
  %556 = vmatpush1.msra.mxu0 0.0
  %557 = vmatprep.subr.mxu0 0.0
  %558 = vmatpush1.msra.mxu0 %v411
  %559 = vmatprep.subr.mxu0 0.0
  %560 = vmatpush2.msra.mxu0 0.0
  %561 = vmatprep.subr.mxu0 0.0
  %562 = vmatpush2.msra.mxu0 0.0
  %563 = vmatprep.subr.mxu0 0.0
  %564 = vmatpush2.msra.mxu0 0.0
  %565 = vmatprep.subr.mxu0 0.0
  %566 = vmatpush2.msra.mxu0 0.0
  %567 = vmatprep.subr.mxu0 0.0
  %568 = vmatpush2.msra.mxu0 0.0
  %569 = vmatprep.subr.mxu0 0.0
  %570 = vmatpush2.msra.mxu0 0.0
  %571 = vmatprep.subr.mxu0 0.0
  %572 = vmatpush2.msra.mxu0 0.0
  %573 = vmatprep.subr.mxu0 0.0
  %574 = vmatpush2.msra.mxu0 0.0
  %575 = vmatprep.subr.mxu0 0.0
  %576 = vmatpush2.msra.mxu0 0.0
  %577 = vmatprep.subr.mxu0 0.0
  %578 = vmatpush2.msra.mxu0 0.0
  %579 = vmatprep.subr.mxu0 0.0
  %580 = vmatpush2.msra.mxu0 0.0
  %581 = vmatprep.subr.mxu0 0.0
  %582 = vmatpush2.msra.mxu0 0.0
  %583 = vmatprep.subr.mxu0 0.0
  %584 = vmatpush2.msra.mxu0 0.0
  %585 = vmatprep.subr.mxu0 0.0
  %586 = vmatpush2.msra.mxu0 0.0
  %587 = vmatprep.subr.mxu0 0.0
  %588 = vmatpush2.msra.mxu0 0.0
  %589 = vmatprep.subr.mxu0 0.0
  %590 = vmatpush2.msra.mxu0 0.0
  %591 = vmatprep.mubr.f32.mxu0 0.0
  %592 = vmatmul.mubr.f32.gmra.mxu0 %v516
  %v593 = vpop.f32.mrf.mxu0
  %v594 = vadd.f32 %v497, %v593
  %v595 = vpop.f32.mrf.mxu0
  %596 = vmatprep.mubr.f32.mxu0 0.0
  %597 = vmatmul.mubr.f32.gmra.mxu0 %v519
  %v598 = vpop.f32.mrf.mxu0
  %v599 = vadd.f32 %v502, %v598
  %v600 = vpop.f32.mrf.mxu0
  %601 = vmatprep.mubr.f32.mxu0 0.0
  %602 = vmatmul.mubr.f32.gmra.mxu0 %v522
  %v603 = vpop.f32.mrf.mxu0
  %v604 = vadd.f32 %v507, %v603
  %v605 = vpop.f32.mrf.mxu0
  %606 = vmatprep.mubr.f32.mxu0 0.0
  %607 = vmatmul.mubr.f32.gmra.mxu0 %v525
  %v608 = vpop.f32.mrf.mxu0
  %v609 = vadd.f32 %v512, %v608
  %v610 = vpop.f32.mrf.mxu0
  %611 = vdwg.mxu0
  %v612 = vld [vmem:[#allocation3 + $0x2] sm:$0xff]
  %v613 = vld [vmem:[#allocation3 + $0xa] sm:$0xff]
  %v614 = vld [vmem:[#allocation3 + $0x1a] sm:$0xff]
  %v615 = vld [vmem:[#allocation3 + $0x22] sm:$0xff]
  %s616 = scalar_lea.vmem %s7, 16
  %v617 = vld [vmem:[%s616] sm:$0xff]
  %v619 = vsel %vm36, %v612, 0
  %v622 = vsel %vm36, %v613, 0
  %v625 = vsel %vm36, %v614, 0
  %v628 = vsel %vm36, %v615, 0
  %630 = vmatprep.subr.mxu0 0.0
  %631 = vmatpush1.msra.mxu0 0.0
  %632 = vmatprep.subr.mxu0 0.0
  %633 = vmatpush1.msra.mxu0 0.0
  %634 = vmatprep.subr.mxu0 0.0
  %635 = vmatpush1.msra.mxu0 0.0
  %636 = vmatprep.subr.mxu0 0.0
  %637 = vmatpush1.msra.mxu0 0.0
  %638 = vmatprep.subr.mxu0 0.0
  %639 = vmatpush1.msra.mxu0 0.0
  %640 = vmatprep.subr.mxu0 0.0
  %641 = vmatpush1.msra.mxu0 0.0
  %642 = vmatprep.subr.mxu0 0.0
  %643 = vmatpush1.msra.mxu0 0.0
  %644 = vmatprep.subr.mxu0 0.0
  %645 = vmatpush1.msra.mxu0 0.0
  %646 = vmatprep.subr.mxu0 0.0
  %647 = vmatpush1.msra.mxu0 0.0
  %648 = vmatprep.subr.mxu0 0.0
  %649 = vmatpush1.msra.mxu0 0.0
  %650 = vmatprep.subr.mxu0 0.0
  %651 = vmatpush1.msra.mxu0 0.0
  %652 = vmatprep.subr.mxu0 0.0
  %653 = vmatpush1.msra.mxu0 0.0
  %654 = vmatprep.subr.mxu0 0.0
  %655 = vmatpush1.msra.mxu0 0.0
  %656 = vmatprep.subr.mxu0 0.0
  %657 = vmatpush1.msra.mxu0 0.0
  %658 = vmatprep.subr.mxu0 0.0
  %659 = vmatpush1.msra.mxu0 0.0
  %660 = vmatprep.subr.mxu0 0.0
  %661 = vmatpush1.msra.mxu0 %v617
  %662 = vmatprep.subr.mxu0 0.0
  %663 = vmatpush2.msra.mxu0 0.0
  %664 = vmatprep.subr.mxu0 0.0
  %665 = vmatpush2.msra.mxu0 0.0
  %666 = vmatprep.subr.mxu0 0.0
  %667 = vmatpush2.msra.mxu0 0.0
  %668 = vmatprep.subr.mxu0 0.0
  %669 = vmatpush2.msra.mxu0 0.0
  %670 = vmatprep.subr.mxu0 0.0
  %671 = vmatpush2.msra.mxu0 0.0
  %672 = vmatprep.subr.mxu0 0.0
  %673 = vmatpush2.msra.mxu0 0.0
  %674 = vmatprep.subr.mxu0 0.0
  %675 = vmatpush2.msra.mxu0 0.0
  %676 = vmatprep.subr.mxu0 0.0
  %677 = vmatpush2.msra.mxu0 0.0
  %678 = vmatprep.subr.mxu0 0.0
  %679 = vmatpush2.msra.mxu0 0.0
  %680 = vmatprep.subr.mxu0 0.0
  %681 = vmatpush2.msra.mxu0 0.0
  %682 = vmatprep.subr.mxu0 0.0
  %683 = vmatpush2.msra.mxu0 0.0
  %684 = vmatprep.subr.mxu0 0.0
  %685 = vmatpush2.msra.mxu0 0.0
  %686 = vmatprep.subr.mxu0 0.0
  %687 = vmatpush2.msra.mxu0 0.0
  %688 = vmatprep.subr.mxu0 0.0
  %689 = vmatpush2.msra.mxu0 0.0
  %690 = vmatprep.subr.mxu0 0.0
  %691 = vmatpush2.msra.mxu0 0.0
  %692 = vmatprep.subr.mxu0 0.0
  %693 = vmatpush2.msra.mxu0 0.0
  %694 = vmatprep.mubr.f32.mxu0 0.0
  %695 = vmatmul.mubr.f32.gmra.mxu0 %v619
  %v696 = vpop.f32.mrf.mxu0
  %v697 = vadd.f32 0.0, %v696
  %v698 = vpop.f32.mrf.mxu0
  %699 = vmatprep.mubr.f32.mxu0 0.0
  %700 = vmatmul.mubr.f32.gmra.mxu0 %v622
  %v701 = vpop.f32.mrf.mxu0
  %v702 = vadd.f32 0.0, %v701
  %v703 = vpop.f32.mrf.mxu0
  %704 = vmatprep.mubr.f32.mxu0 0.0
  %705 = vmatmul.mubr.f32.gmra.mxu0 %v625
  %v706 = vpop.f32.mrf.mxu0
  %v707 = vadd.f32 0.0, %v706
  %v708 = vpop.f32.mrf.mxu0
  %709 = vmatprep.mubr.f32.mxu0 0.0
  %710 = vmatmul.mubr.f32.gmra.mxu0 %v628
  %v711 = vpop.f32.mrf.mxu0
  %v712 = vadd.f32 0.0, %v711
  %v713 = vpop.f32.mrf.mxu0
  %714 = vdwg.mxu0
  %v715 = vadd.f32 %v594, %v697
  %v716 = vadd.f32 %v599, %v702
  %v717 = vadd.f32 %v604, %v707
  %v718 = vadd.f32 %v609, %v712
  %v719 = vld [vmem:[%s8] sm:$0x1]
  %v721 = vlaneseq
  %v722 = vshrl.u32 %v721, 7
  %v723 = vsub.s32 0, %v722
  %v724 = vrot.slane %v719, %v723
  %v726 = vadd.f32 %v715, %v724
  %v727 = vadd.f32 %v716, %v724
  %v728 = vadd.f32 %v717, %v724
  %v729 = vadd.f32 %v718, %v724
  %v730 = vadd.f32 %v726, %v32
  %v731 = vadd.f32 %v727, %v33
  %v732 = vadd.f32 %v728, %v34
  %v733 = vadd.f32 %v729, %v35
  %734 = vst.msk [vmem:[%s9] sm:$0xff] %vm36, %v730
  %735 = vst.msk [vmem:[%s9 + $0x8] sm:$0xff] %vm36, %v731
  %736 = vst.msk [vmem:[%s9 + $0x10] sm:$0xff] %vm36, %v732
  %737 = vst.msk [vmem:[%s9 + $0x18] sm:$0xff] %vm36, %v733
  // Predicated region
  $region38: #{_lambda_.8} parent=0 // pred_check
    _
  $region39: #{_lambda_.8} parent=0 // pred_check_branch
    %739 = sbr.rel (0) target = $region41
  $region40: #{_lambda_.8} parent=0 // pred_region
    _
  $region41: #{_lambda_.8} parent=0 // pred_fallthru
    _
  // Predicated region
  $region42: #{_lambda_.8} parent=0 // pred_check
    _
  $region43: #{_lambda_.8} parent=0 // pred_check_branch
    %741 = sbr.rel (0) target = $region45
  $region44: #{_lambda_.8} parent=0 // pred_region
    _
  $region45: #{_lambda_.8} parent=0 // pred_fallthru
    _

// kernel: _lambda_.10
$region0: #{_lambda_.10}
  #allocation0 [shape = 'u32[]', space=smem, size = 0x4, offset = 0x4, fixed_abs, tag = 'smem constant byte address 0x4 - core index']
  #allocation1 [shape = 'u32[144,128]{1,0:T(1,128)}', space=vmem, size = 0x12000, scoped, tag = 'internal scratch']
  #allocation2 [shape = 'f32[2,10,8]{2,1,0:T(8,128)}', space=vmem, size = 0x4000, scoped, tag = 'scratch operand']
  #allocation3 [shape = 'f32[2,10,8]{2,1,0:T(8,128)}', space=vmem, size = 0x4000, scoped, tag = 'scratch operand']
  %s0 = inlined_call_operand.vmem [shape: f32[2,8,8], index: 0, kind: input, shape index: {}]
  %s1 = inlined_call_operand.vmem [shape: f32[1,8], index: 1, kind: input, shape index: {}]
  %s2 = inlined_call_operand.vmem [shape: f32[1,8], index: 2, kind: input, shape index: {}]
  %s3 = inlined_call_operand.vmem [shape: f32[3,8,8], index: 3, kind: input, shape index: {}]
  %s4 = inlined_call_operand.vmem [shape: f32[1,8], index: 4, kind: input, shape index: {}]
  %s5 = inlined_call_operand.vmem [shape: f32[1,8], index: 5, kind: input, shape index: {}]
  %s6 = inlined_call_operand.vmem [shape: f32[1,8], index: 6, kind: input, shape index: {}]
  %s7 = inlined_call_operand.vmem [shape: f32[3,8,8], index: 7, kind: input, shape index: {}]
  %s8 = inlined_call_operand.vmem [shape: f32[1,8], index: 8, kind: input, shape index: {}]
  %s9 = inlined_call_operand.vmem [shape: f32[2,8,8], index: 9, kind: output, shape index: {}]
  %s10 = sld [smem:[#allocation0]]
  $region46: #{_lambda_.10} parent=0
    _
  %s12 = ssub.s32 1, %s10
  %s13 = scalar_select 0, %s12, %s10
  // Predicated region
  $region2: #{_lambda_.10} parent=0 // pred_check
    _
  $region3: #{_lambda_.10} parent=0 // pred_check_branch
    %15 = sbr.rel (0) target = $region5
  $region4: #{_lambda_.10} parent=0 // pred_region
    _
  $region5: #{_lambda_.10} parent=0 // pred_fallthru
    _
  // Predicated region
  $region6: #{_lambda_.10} parent=0 // pred_check
    _
  $region7: #{_lambda_.10} parent=0 // pred_check_branch
    %17 = sbr.rel (0) target = $region9
  $region8: #{_lambda_.10} parent=0 // pred_region
    _
  $region9: #{_lambda_.10} parent=0 // pred_fallthru
    _
  // Predicated region
  $region10: #{_lambda_.10} parent=0 // pred_check
    _
  $region11: #{_lambda_.10} parent=0 // pred_check_branch
    %19 = sbr.rel (0) target = $region13
  $region12: #{_lambda_.10} parent=0 // pred_region
    _
  $region13: #{_lambda_.10} parent=0 // pred_fallthru
    _
  // Predicated region
  $region14: #{_lambda_.10} parent=0 // pred_check
    _
  $region15: #{_lambda_.10} parent=0 // pred_check_branch
    %21 = sbr.rel (0) target = $region17
  $region16: #{_lambda_.10} parent=0 // pred_region
    _
  $region17: #{_lambda_.10} parent=0 // pred_fallthru
    _
  // Predicated region
  $region18: #{_lambda_.10} parent=0 // pred_check
    _
  $region19: #{_lambda_.10} parent=0 // pred_check_branch
    %23 = sbr.rel (0) target = $region21
  $region20: #{_lambda_.10} parent=0 // pred_region
    _
  $region21: #{_lambda_.10} parent=0 // pred_fallthru
    _
  // Predicated region
  $region22: #{_lambda_.10} parent=0 // pred_check
    _
  $region23: #{_lambda_.10} parent=0 // pred_check_branch
    %25 = sbr.rel (0) target = $region25
  $region24: #{_lambda_.10} parent=0 // pred_region
    _
  $region25: #{_lambda_.10} parent=0 // pred_fallthru
    _
  // Predicated region
  $region26: #{_lambda_.10} parent=0 // pred_check
    _
  $region27: #{_lambda_.10} parent=0 // pred_check_branch
    %27 = sbr.rel (0) target = $region29
  $region28: #{_lambda_.10} parent=0 // pred_region
    _
  $region29: #{_lambda_.10} parent=0 // pred_fallthru
    _
  // Predicated region
  $region30: #{_lambda_.10} parent=0 // pred_check
    _
  $region31: #{_lambda_.10} parent=0 // pred_check_branch
    %29 = sbr.rel (0) target = $region33
  $region32: #{_lambda_.10} parent=0 // pred_region
    _
  $region33: #{_lambda_.10} parent=0 // pred_fallthru
    _
  // Predicated region
  $region34: #{_lambda_.10} parent=0 // pred_check
    _
  $region35: #{_lambda_.10} parent=0 // pred_check_branch
    %31 = sbr.rel (0) target = $region37
  $region36: #{_lambda_.10} parent=0 // pred_region
    _
  $region37: #{_lambda_.10} parent=0 // pred_fallthru
    _
  %v32 = vld [vmem:[%s0] sm:$0xff]
  %v33 = vld [vmem:[%s0 + $0x8] sm:$0xff]
  %v34 = vld [vmem:[%s1] sm:$0x1]
  %v36 = vlaneseq
  %v37 = vshrl.u32 %v36, 7
  %v38 = vsub.s32 0, %v37
  %v39 = vrot.slane %v34, %v38
  %v41 = vmul.f32 %v32, %v39
  %v42 = vmul.f32 %v33, %v39
  %v43 = vld [vmem:[%s2] sm:$0x1]
  %v45 = vlaneseq
  %v46 = vshrl.u32 %v45, 7
  %v47 = vsub.s32 0, %v46
  %v48 = vrot.slane %v43, %v47
  %v50 = vadd.f32 %v41, %v48
  %v51 = vadd.f32 %v42, %v48
  %v52 = vmax.f32 %v50, 0.0
  %v53 = vmax.f32 %v51, 0.0
  %vm54 = vcmask 64512
  %55 = vst.msk [vmem:[#allocation2] sm:$0xff] %vm54, 0.0
  %vm56 = vcmask 58368
  %57 = vst.msk [vmem:[#allocation2 + $0x8] sm:$0x3] %vm56, 0.0
  %58 = vst.msk [vmem:[#allocation2 + $0x10] sm:$0xff] %vm54, 0.0
  %59 = vst.msk [vmem:[#allocation2 + $0x18] sm:$0x3] %vm56, 0.0
  %60 = vst.msk [vmem:[#allocation2 + $0x1] sm:$0xff] %vm54, %v52
  %61 = vst.msk [vmem:[#allocation2 + $0x11] sm:$0xff] %vm54, %v53
  %v62 = vld [vmem:[#allocation2] sm:$0xff]
  %v63 = vld [vmem:[#allocation2 + $0x10] sm:$0xff]
  %v64 = vld [vmem:[%s3] sm:$0xff]
  %v65 = vld [vmem:[#allocation2 + $0x1] sm:$0xff]
  %v66 = vld [vmem:[#allocation2 + $0x11] sm:$0xff]
  %s67 = scalar_lea.vmem %s3, 8
  %v68 = vld [vmem:[%s67] sm:$0xff]
  %v70 = vsel %vm54, %v65, 0
  %v73 = vsel %vm54, %v66, 0
  %75 = vmatprep.subr.mxu0 0.0
  %76 = vmatpush1.msra.mxu0 0.0
  %77 = vmatprep.subr.mxu0 0.0
  %78 = vmatpush1.msra.mxu0 0.0
  %79 = vmatprep.subr.mxu0 0.0
  %80 = vmatpush1.msra.mxu0 0.0
  %81 = vmatprep.subr.mxu0 0.0
  %82 = vmatpush1.msra.mxu0 0.0
  %83 = vmatprep.subr.mxu0 0.0
  %84 = vmatpush1.msra.mxu0 0.0
  %85 = vmatprep.subr.mxu0 0.0
  %86 = vmatpush1.msra.mxu0 0.0
  %87 = vmatprep.subr.mxu0 0.0
  %88 = vmatpush1.msra.mxu0 0.0
  %89 = vmatprep.subr.mxu0 0.0
  %90 = vmatpush1.msra.mxu0 0.0
  %91 = vmatprep.subr.mxu0 0.0
  %92 = vmatpush1.msra.mxu0 0.0
  %93 = vmatprep.subr.mxu0 0.0
  %94 = vmatpush1.msra.mxu0 0.0
  %95 = vmatprep.subr.mxu0 0.0
  %96 = vmatpush1.msra.mxu0 0.0
  %97 = vmatprep.subr.mxu0 0.0
  %98 = vmatpush1.msra.mxu0 0.0
  %99 = vmatprep.subr.mxu0 0.0
  %100 = vmatpush1.msra.mxu0 0.0
  %101 = vmatprep.subr.mxu0 0.0
  %102 = vmatpush1.msra.mxu0 0.0
  %103 = vmatprep.subr.mxu0 0.0
  %104 = vmatpush1.msra.mxu0 0.0
  %105 = vmatprep.subr.mxu0 0.0
  %106 = vmatpush1.msra.mxu0 %v68
  %107 = vmatprep.subr.mxu0 0.0
  %108 = vmatpush2.msra.mxu0 0.0
  %109 = vmatprep.subr.mxu0 0.0
  %110 = vmatpush2.msra.mxu0 0.0
  %111 = vmatprep.subr.mxu0 0.0
  %112 = vmatpush2.msra.mxu0 0.0
  %113 = vmatprep.subr.mxu0 0.0
  %114 = vmatpush2.msra.mxu0 0.0
  %115 = vmatprep.subr.mxu0 0.0
  %116 = vmatpush2.msra.mxu0 0.0
  %117 = vmatprep.subr.mxu0 0.0
  %118 = vmatpush2.msra.mxu0 0.0
  %119 = vmatprep.subr.mxu0 0.0
  %120 = vmatpush2.msra.mxu0 0.0
  %121 = vmatprep.subr.mxu0 0.0
  %122 = vmatpush2.msra.mxu0 0.0
  %123 = vmatprep.subr.mxu0 0.0
  %124 = vmatpush2.msra.mxu0 0.0
  %125 = vmatprep.subr.mxu0 0.0
  %126 = vmatpush2.msra.mxu0 0.0
  %127 = vmatprep.subr.mxu0 0.0
  %128 = vmatpush2.msra.mxu0 0.0
  %129 = vmatprep.subr.mxu0 0.0
  %130 = vmatpush2.msra.mxu0 0.0
  %131 = vmatprep.subr.mxu0 0.0
  %132 = vmatpush2.msra.mxu0 0.0
  %133 = vmatprep.subr.mxu0 0.0
  %134 = vmatpush2.msra.mxu0 0.0
  %135 = vmatprep.subr.mxu0 0.0
  %136 = vmatpush2.msra.mxu0 0.0
  %137 = vmatprep.subr.mxu0 0.0
  %138 = vmatpush2.msra.mxu0 0.0
  %139 = vmatprep.mubr.f32.mxu0 0.0
  %140 = vmatmul.mubr.f32.gmra.mxu0 %v70
  %v141 = vpop.f32.mrf.mxu0
  %v142 = vadd.f32 0.0, %v141
  %v143 = vpop.f32.mrf.mxu0
  %144 = vmatprep.mubr.f32.mxu0 0.0
  %145 = vmatmul.mubr.f32.gmra.mxu0 %v73
  %v146 = vpop.f32.mrf.mxu0
  %v147 = vadd.f32 0.0, %v146
  %v148 = vpop.f32.mrf.mxu0
  %149 = vdwg.mxu0
  %v151 = vsel %vm54, %v62, 0
  %v154 = vsel %vm54, %v63, 0
  %156 = vmatprep.subr.mxu0 0.0
  %157 = vmatpush1.msra.mxu0 0.0
  %158 = vmatprep.subr.mxu0 0.0
  %159 = vmatpush1.msra.mxu0 0.0
  %160 = vmatprep.subr.mxu0 0.0
  %161 = vmatpush1.msra.mxu0 0.0
  %162 = vmatprep.subr.mxu0 0.0
  %163 = vmatpush1.msra.mxu0 0.0
  %164 = vmatprep.subr.mxu0 0.0
  %165 = vmatpush1.msra.mxu0 0.0
  %166 = vmatprep.subr.mxu0 0.0
  %167 = vmatpush1.msra.mxu0 0.0
  %168 = vmatprep.subr.mxu0 0.0
  %169 = vmatpush1.msra.mxu0 0.0
  %170 = vmatprep.subr.mxu0 0.0
  %171 = vmatpush1.msra.mxu0 0.0
  %172 = vmatprep.subr.mxu0 0.0
  %173 = vmatpush1.msra.mxu0 0.0
  %174 = vmatprep.subr.mxu0 0.0
  %175 = vmatpush1.msra.mxu0 0.0
  %176 = vmatprep.subr.mxu0 0.0
  %177 = vmatpush1.msra.mxu0 0.0
  %178 = vmatprep.subr.mxu0 0.0
  %179 = vmatpush1.msra.mxu0 0.0
  %180 = vmatprep.subr.mxu0 0.0
  %181 = vmatpush1.msra.mxu0 0.0
  %182 = vmatprep.subr.mxu0 0.0
  %183 = vmatpush1.msra.mxu0 0.0
  %184 = vmatprep.subr.mxu0 0.0
  %185 = vmatpush1.msra.mxu0 0.0
  %186 = vmatprep.subr.mxu0 0.0
  %187 = vmatpush1.msra.mxu0 %v64
  %188 = vmatprep.subr.mxu0 0.0
  %189 = vmatpush2.msra.mxu0 0.0
  %190 = vmatprep.subr.mxu0 0.0
  %191 = vmatpush2.msra.mxu0 0.0
  %192 = vmatprep.subr.mxu0 0.0
  %193 = vmatpush2.msra.mxu0 0.0
  %194 = vmatprep.subr.mxu0 0.0
  %195 = vmatpush2.msra.mxu0 0.0
  %196 = vmatprep.subr.mxu0 0.0
  %197 = vmatpush2.msra.mxu0 0.0
  %198 = vmatprep.subr.mxu0 0.0
  %199 = vmatpush2.msra.mxu0 0.0
  %200 = vmatprep.subr.mxu0 0.0
  %201 = vmatpush2.msra.mxu0 0.0
  %202 = vmatprep.subr.mxu0 0.0
  %203 = vmatpush2.msra.mxu0 0.0
  %204 = vmatprep.subr.mxu0 0.0
  %205 = vmatpush2.msra.mxu0 0.0
  %206 = vmatprep.subr.mxu0 0.0
  %207 = vmatpush2.msra.mxu0 0.0
  %208 = vmatprep.subr.mxu0 0.0
  %209 = vmatpush2.msra.mxu0 0.0
  %210 = vmatprep.subr.mxu0 0.0
  %211 = vmatpush2.msra.mxu0 0.0
  %212 = vmatprep.subr.mxu0 0.0
  %213 = vmatpush2.msra.mxu0 0.0
  %214 = vmatprep.subr.mxu0 0.0
  %215 = vmatpush2.msra.mxu0 0.0
  %216 = vmatprep.subr.mxu0 0.0
  %217 = vmatpush2.msra.mxu0 0.0
  %218 = vmatprep.subr.mxu0 0.0
  %219 = vmatpush2.msra.mxu0 0.0
  %220 = vmatprep.mubr.f32.mxu0 0.0
  %221 = vmatmul.mubr.f32.gmra.mxu0 %v151
  %v222 = vpop.f32.mrf.mxu0
  %v223 = vadd.f32 %v142, %v222
  %v224 = vpop.f32.mrf.mxu0
  %225 = vmatprep.mubr.f32.mxu0 0.0
  %226 = vmatmul.mubr.f32.gmra.mxu0 %v154
  %v227 = vpop.f32.mrf.mxu0
  %v228 = vadd.f32 %v147, %v227
  %v229 = vpop.f32.mrf.mxu0
  %230 = vdwg.mxu0
  %v231 = vld [vmem:[#allocation2 + $0x2] sm:$0xff]
  %v232 = vld [vmem:[#allocation2 + $0x12] sm:$0xff]
  %s233 = scalar_lea.vmem %s3, 16
  %v234 = vld [vmem:[%s233] sm:$0xff]
  %v236 = vsel %vm54, %v231, 0
  %v239 = vsel %vm54, %v232, 0
  %241 = vmatprep.subr.mxu0 0.0
  %242 = vmatpush1.msra.mxu0 0.0
  %243 = vmatprep.subr.mxu0 0.0
  %244 = vmatpush1.msra.mxu0 0.0
  %245 = vmatprep.subr.mxu0 0.0
  %246 = vmatpush1.msra.mxu0 0.0
  %247 = vmatprep.subr.mxu0 0.0
  %248 = vmatpush1.msra.mxu0 0.0
  %249 = vmatprep.subr.mxu0 0.0
  %250 = vmatpush1.msra.mxu0 0.0
  %251 = vmatprep.subr.mxu0 0.0
  %252 = vmatpush1.msra.mxu0 0.0
  %253 = vmatprep.subr.mxu0 0.0
  %254 = vmatpush1.msra.mxu0 0.0
  %255 = vmatprep.subr.mxu0 0.0
  %256 = vmatpush1.msra.mxu0 0.0
  %257 = vmatprep.subr.mxu0 0.0
  %258 = vmatpush1.msra.mxu0 0.0
  %259 = vmatprep.subr.mxu0 0.0
  %260 = vmatpush1.msra.mxu0 0.0
  %261 = vmatprep.subr.mxu0 0.0
  %262 = vmatpush1.msra.mxu0 0.0
  %263 = vmatprep.subr.mxu0 0.0
  %264 = vmatpush1.msra.mxu0 0.0
  %265 = vmatprep.subr.mxu0 0.0
  %266 = vmatpush1.msra.mxu0 0.0
  %267 = vmatprep.subr.mxu0 0.0
  %268 = vmatpush1.msra.mxu0 0.0
  %269 = vmatprep.subr.mxu0 0.0
  %270 = vmatpush1.msra.mxu0 0.0
  %271 = vmatprep.subr.mxu0 0.0
  %272 = vmatpush1.msra.mxu0 %v234
  %273 = vmatprep.subr.mxu0 0.0
  %274 = vmatpush2.msra.mxu0 0.0
  %275 = vmatprep.subr.mxu0 0.0
  %276 = vmatpush2.msra.mxu0 0.0
  %277 = vmatprep.subr.mxu0 0.0
  %278 = vmatpush2.msra.mxu0 0.0
  %279 = vmatprep.subr.mxu0 0.0
  %280 = vmatpush2.msra.mxu0 0.0
  %281 = vmatprep.subr.mxu0 0.0
  %282 = vmatpush2.msra.mxu0 0.0
  %283 = vmatprep.subr.mxu0 0.0
  %284 = vmatpush2.msra.mxu0 0.0
  %285 = vmatprep.subr.mxu0 0.0
  %286 = vmatpush2.msra.mxu0 0.0
  %287 = vmatprep.subr.mxu0 0.0
  %288 = vmatpush2.msra.mxu0 0.0
  %289 = vmatprep.subr.mxu0 0.0
  %290 = vmatpush2.msra.mxu0 0.0
  %291 = vmatprep.subr.mxu0 0.0
  %292 = vmatpush2.msra.mxu0 0.0
  %293 = vmatprep.subr.mxu0 0.0
  %294 = vmatpush2.msra.mxu0 0.0
  %295 = vmatprep.subr.mxu0 0.0
  %296 = vmatpush2.msra.mxu0 0.0
  %297 = vmatprep.subr.mxu0 0.0
  %298 = vmatpush2.msra.mxu0 0.0
  %299 = vmatprep.subr.mxu0 0.0
  %300 = vmatpush2.msra.mxu0 0.0
  %301 = vmatprep.subr.mxu0 0.0
  %302 = vmatpush2.msra.mxu0 0.0
  %303 = vmatprep.subr.mxu0 0.0
  %304 = vmatpush2.msra.mxu0 0.0
  %305 = vmatprep.mubr.f32.mxu0 0.0
  %306 = vmatmul.mubr.f32.gmra.mxu0 %v236
  %v307 = vpop.f32.mrf.mxu0
  %v308 = vadd.f32 0.0, %v307
  %v309 = vpop.f32.mrf.mxu0
  %310 = vmatprep.mubr.f32.mxu0 0.0
  %311 = vmatmul.mubr.f32.gmra.mxu0 %v239
  %v312 = vpop.f32.mrf.mxu0
  %v313 = vadd.f32 0.0, %v312
  %v314 = vpop.f32.mrf.mxu0
  %315 = vdwg.mxu0
  %v316 = vadd.f32 %v223, %v308
  %v317 = vadd.f32 %v228, %v313
  %v318 = vld [vmem:[%s4] sm:$0x1]
  %v320 = vlaneseq
  %v321 = vshrl.u32 %v320, 7
  %v322 = vsub.s32 0, %v321
  %v323 = vrot.slane %v318, %v322
  %v325 = vadd.f32 %v316, %v323
  %v326 = vadd.f32 %v317, %v323
  %v327 = vld [vmem:[%s5] sm:$0x1]
  %v329 = vlaneseq
  %v330 = vshrl.u32 %v329, 7
  %v331 = vsub.s32 0, %v330
  %v332 = vrot.slane %v327, %v331
  %v334 = vmul.f32 %v325, %v332
  %v335 = vmul.f32 %v326, %v332
  %v336 = vld [vmem:[%s6] sm:$0x1]
  %v338 = vlaneseq
  %v339 = vshrl.u32 %v338, 7
  %v340 = vsub.s32 0, %v339
  %v341 = vrot.slane %v336, %v340
  %v343 = vadd.f32 %v334, %v341
  %v344 = vadd.f32 %v335, %v341
  %v345 = vmax.f32 %v343, 0.0
  %v346 = vmax.f32 %v344, 0.0
  %347 = vst.msk [vmem:[#allocation3] sm:$0xff] %vm54, 0.0
  %348 = vst.msk [vmem:[#allocation3 + $0x8] sm:$0x3] %vm56, 0.0
  %349 = vst.msk [vmem:[#allocation3 + $0x10] sm:$0xff] %vm54, 0.0
  %350 = vst.msk [vmem:[#allocation3 + $0x18] sm:$0x3] %vm56, 0.0
  %351 = vst.msk [vmem:[#allocation3 + $0x1] sm:$0xff] %vm54, %v345
  %352 = vst.msk [vmem:[#allocation3 + $0x11] sm:$0xff] %vm54, %v346
  %v353 = vld [vmem:[#allocation3] sm:$0xff]
  %v354 = vld [vmem:[#allocation3 + $0x10] sm:$0xff]
  %v355 = vld [vmem:[%s7] sm:$0xff]
  %v356 = vld [vmem:[#allocation3 + $0x1] sm:$0xff]
  %v357 = vld [vmem:[#allocation3 + $0x11] sm:$0xff]
  %s358 = scalar_lea.vmem %s7, 8
  %v359 = vld [vmem:[%s358] sm:$0xff]
  %v361 = vsel %vm54, %v356, 0
  %v364 = vsel %vm54, %v357, 0
  %366 = vmatprep.subr.mxu0 0.0
  %367 = vmatpush1.msra.mxu0 0.0
  %368 = vmatprep.subr.mxu0 0.0
  %369 = vmatpush1.msra.mxu0 0.0
  %370 = vmatprep.subr.mxu0 0.0
  %371 = vmatpush1.msra.mxu0 0.0
  %372 = vmatprep.subr.mxu0 0.0
  %373 = vmatpush1.msra.mxu0 0.0
  %374 = vmatprep.subr.mxu0 0.0
  %375 = vmatpush1.msra.mxu0 0.0
  %376 = vmatprep.subr.mxu0 0.0
  %377 = vmatpush1.msra.mxu0 0.0
  %378 = vmatprep.subr.mxu0 0.0
  %379 = vmatpush1.msra.mxu0 0.0
  %380 = vmatprep.subr.mxu0 0.0
  %381 = vmatpush1.msra.mxu0 0.0
  %382 = vmatprep.subr.mxu0 0.0
  %383 = vmatpush1.msra.mxu0 0.0
  %384 = vmatprep.subr.mxu0 0.0
  %385 = vmatpush1.msra.mxu0 0.0
  %386 = vmatprep.subr.mxu0 0.0
  %387 = vmatpush1.msra.mxu0 0.0
  %388 = vmatprep.subr.mxu0 0.0
  %389 = vmatpush1.msra.mxu0 0.0
  %390 = vmatprep.subr.mxu0 0.0
  %391 = vmatpush1.msra.mxu0 0.0
  %392 = vmatprep.subr.mxu0 0.0
  %393 = vmatpush1.msra.mxu0 0.0
  %394 = vmatprep.subr.mxu0 0.0
  %395 = vmatpush1.msra.mxu0 0.0
  %396 = vmatprep.subr.mxu0 0.0
  %397 = vmatpush1.msra.mxu0 %v359
  %398 = vmatprep.subr.mxu0 0.0
  %399 = vmatpush2.msra.mxu0 0.0
  %400 = vmatprep.subr.mxu0 0.0
  %401 = vmatpush2.msra.mxu0 0.0
  %402 = vmatprep.subr.mxu0 0.0
  %403 = vmatpush2.msra.mxu0 0.0
  %404 = vmatprep.subr.mxu0 0.0
  %405 = vmatpush2.msra.mxu0 0.0
  %406 = vmatprep.subr.mxu0 0.0
  %407 = vmatpush2.msra.mxu0 0.0
  %408 = vmatprep.subr.mxu0 0.0
  %409 = vmatpush2.msra.mxu0 0.0
  %410 = vmatprep.subr.mxu0 0.0
  %411 = vmatpush2.msra.mxu0 0.0
  %412 = vmatprep.subr.mxu0 0.0
  %413 = vmatpush2.msra.mxu0 0.0
  %414 = vmatprep.subr.mxu0 0.0
  %415 = vmatpush2.msra.mxu0 0.0
  %416 = vmatprep.subr.mxu0 0.0
  %417 = vmatpush2.msra.mxu0 0.0
  %418 = vmatprep.subr.mxu0 0.0
  %419 = vmatpush2.msra.mxu0 0.0
  %420 = vmatprep.subr.mxu0 0.0
  %421 = vmatpush2.msra.mxu0 0.0
  %422 = vmatprep.subr.mxu0 0.0
  %423 = vmatpush2.msra.mxu0 0.0
  %424 = vmatprep.subr.mxu0 0.0
  %425 = vmatpush2.msra.mxu0 0.0
  %426 = vmatprep.subr.mxu0 0.0
  %427 = vmatpush2.msra.mxu0 0.0
  %428 = vmatprep.subr.mxu0 0.0
  %429 = vmatpush2.msra.mxu0 0.0
  %430 = vmatprep.mubr.f32.mxu0 0.0
  %431 = vmatmul.mubr.f32.gmra.mxu0 %v361
  %v432 = vpop.f32.mrf.mxu0
  %v433 = vadd.f32 0.0, %v432
  %v434 = vpop.f32.mrf.mxu0
  %435 = vmatprep.mubr.f32.mxu0 0.0
  %436 = vmatmul.mubr.f32.gmra.mxu0 %v364
  %v437 = vpop.f32.mrf.mxu0
  %v438 = vadd.f32 0.0, %v437
  %v439 = vpop.f32.mrf.mxu0
  %440 = vdwg.mxu0
  %v442 = vsel %vm54, %v353, 0
  %v445 = vsel %vm54, %v354, 0
  %447 = vmatprep.subr.mxu0 0.0
  %448 = vmatpush1.msra.mxu0 0.0
  %449 = vmatprep.subr.mxu0 0.0
  %450 = vmatpush1.msra.mxu0 0.0
  %451 = vmatprep.subr.mxu0 0.0
  %452 = vmatpush1.msra.mxu0 0.0
  %453 = vmatprep.subr.mxu0 0.0
  %454 = vmatpush1.msra.mxu0 0.0
  %455 = vmatprep.subr.mxu0 0.0
  %456 = vmatpush1.msra.mxu0 0.0
  %457 = vmatprep.subr.mxu0 0.0
  %458 = vmatpush1.msra.mxu0 0.0
  %459 = vmatprep.subr.mxu0 0.0
  %460 = vmatpush1.msra.mxu0 0.0
  %461 = vmatprep.subr.mxu0 0.0
  %462 = vmatpush1.msra.mxu0 0.0
  %463 = vmatprep.subr.mxu0 0.0
  %464 = vmatpush1.msra.mxu0 0.0
  %465 = vmatprep.subr.mxu0 0.0
  %466 = vmatpush1.msra.mxu0 0.0
  %467 = vmatprep.subr.mxu0 0.0
  %468 = vmatpush1.msra.mxu0 0.0
  %469 = vmatprep.subr.mxu0 0.0
  %470 = vmatpush1.msra.mxu0 0.0
  %471 = vmatprep.subr.mxu0 0.0
  %472 = vmatpush1.msra.mxu0 0.0
  %473 = vmatprep.subr.mxu0 0.0
  %474 = vmatpush1.msra.mxu0 0.0
  %475 = vmatprep.subr.mxu0 0.0
  %476 = vmatpush1.msra.mxu0 0.0
  %477 = vmatprep.subr.mxu0 0.0
  %478 = vmatpush1.msra.mxu0 %v355
  %479 = vmatprep.subr.mxu0 0.0
  %480 = vmatpush2.msra.mxu0 0.0
  %481 = vmatprep.subr.mxu0 0.0
  %482 = vmatpush2.msra.mxu0 0.0
  %483 = vmatprep.subr.mxu0 0.0
  %484 = vmatpush2.msra.mxu0 0.0
  %485 = vmatprep.subr.mxu0 0.0
  %486 = vmatpush2.msra.mxu0 0.0
  %487 = vmatprep.subr.mxu0 0.0
  %488 = vmatpush2.msra.mxu0 0.0
  %489 = vmatprep.subr.mxu0 0.0
  %490 = vmatpush2.msra.mxu0 0.0
  %491 = vmatprep.subr.mxu0 0.0
  %492 = vmatpush2.msra.mxu0 0.0
  %493 = vmatprep.subr.mxu0 0.0
  %494 = vmatpush2.msra.mxu0 0.0
  %495 = vmatprep.subr.mxu0 0.0
  %496 = vmatpush2.msra.mxu0 0.0
  %497 = vmatprep.subr.mxu0 0.0
  %498 = vmatpush2.msra.mxu0 0.0
  %499 = vmatprep.subr.mxu0 0.0
  %500 = vmatpush2.msra.mxu0 0.0
  %501 = vmatprep.subr.mxu0 0.0
  %502 = vmatpush2.msra.mxu0 0.0
  %503 = vmatprep.subr.mxu0 0.0
  %504 = vmatpush2.msra.mxu0 0.0
  %505 = vmatprep.subr.mxu0 0.0
  %506 = vmatpush2.msra.mxu0 0.0
  %507 = vmatprep.subr.mxu0 0.0
  %508 = vmatpush2.msra.mxu0 0.0
  %509 = vmatprep.subr.mxu0 0.0
  %510 = vmatpush2.msra.mxu0 0.0
  %511 = vmatprep.mubr.f32.mxu0 0.0
  %512 = vmatmul.mubr.f32.gmra.mxu0 %v442
  %v513 = vpop.f32.mrf.mxu0
  %v514 = vadd.f32 %v433, %v513
  %v515 = vpop.f32.mrf.mxu0
  %516 = vmatprep.mubr.f32.mxu0 0.0
  %517 = vmatmul.mubr.f32.gmra.mxu0 %v445
  %v518 = vpop.f32.mrf.mxu0
  %v519 = vadd.f32 %v438, %v518
  %v520 = vpop.f32.mrf.mxu0
  %521 = vdwg.mxu0
  %v522 = vld [vmem:[#allocation3 + $0x2] sm:$0xff]
  %v523 = vld [vmem:[#allocation3 + $0x12] sm:$0xff]
  %s524 = scalar_lea.vmem %s7, 16
  %v525 = vld [vmem:[%s524] sm:$0xff]
  %v527 = vsel %vm54, %v522, 0
  %v530 = vsel %vm54, %v523, 0
  %532 = vmatprep.subr.mxu0 0.0
  %533 = vmatpush1.msra.mxu0 0.0
  %534 = vmatprep.subr.mxu0 0.0
  %535 = vmatpush1.msra.mxu0 0.0
  %536 = vmatprep.subr.mxu0 0.0
  %537 = vmatpush1.msra.mxu0 0.0
  %538 = vmatprep.subr.mxu0 0.0
  %539 = vmatpush1.msra.mxu0 0.0
  %540 = vmatprep.subr.mxu0 0.0
  %541 = vmatpush1.msra.mxu0 0.0
  %542 = vmatprep.subr.mxu0 0.0
  %543 = vmatpush1.msra.mxu0 0.0
  %544 = vmatprep.subr.mxu0 0.0
  %545 = vmatpush1.msra.mxu0 0.0
  %546 = vmatprep.subr.mxu0 0.0
  %547 = vmatpush1.msra.mxu0 0.0
  %548 = vmatprep.subr.mxu0 0.0
  %549 = vmatpush1.msra.mxu0 0.0
  %550 = vmatprep.subr.mxu0 0.0
  %551 = vmatpush1.msra.mxu0 0.0
  %552 = vmatprep.subr.mxu0 0.0
  %553 = vmatpush1.msra.mxu0 0.0
  %554 = vmatprep.subr.mxu0 0.0
  %555 = vmatpush1.msra.mxu0 0.0
  %556 = vmatprep.subr.mxu0 0.0
  %557 = vmatpush1.msra.mxu0 0.0
  %558 = vmatprep.subr.mxu0 0.0
  %559 = vmatpush1.msra.mxu0 0.0
  %560 = vmatprep.subr.mxu0 0.0
  %561 = vmatpush1.msra.mxu0 0.0
  %562 = vmatprep.subr.mxu0 0.0
  %563 = vmatpush1.msra.mxu0 %v525
  %564 = vmatprep.subr.mxu0 0.0
  %565 = vmatpush2.msra.mxu0 0.0
  %566 = vmatprep.subr.mxu0 0.0
  %567 = vmatpush2.msra.mxu0 0.0
  %568 = vmatprep.subr.mxu0 0.0
  %569 = vmatpush2.msra.mxu0 0.0
  %570 = vmatprep.subr.mxu0 0.0
  %571 = vmatpush2.msra.mxu0 0.0
  %572 = vmatprep.subr.mxu0 0.0
  %573 = vmatpush2.msra.mxu0 0.0
  %574 = vmatprep.subr.mxu0 0.0
  %575 = vmatpush2.msra.mxu0 0.0
  %576 = vmatprep.subr.mxu0 0.0
  %577 = vmatpush2.msra.mxu0 0.0
  %578 = vmatprep.subr.mxu0 0.0
  %579 = vmatpush2.msra.mxu0 0.0
  %580 = vmatprep.subr.mxu0 0.0
  %581 = vmatpush2.msra.mxu0 0.0
  %582 = vmatprep.subr.mxu0 0.0
  %583 = vmatpush2.msra.mxu0 0.0
  %584 = vmatprep.subr.mxu0 0.0
  %585 = vmatpush2.msra.mxu0 0.0
  %586 = vmatprep.subr.mxu0 0.0
  %587 = vmatpush2.msra.mxu0 0.0
  %588 = vmatprep.subr.mxu0 0.0
  %589 = vmatpush2.msra.mxu0 0.0
  %590 = vmatprep.subr.mxu0 0.0
  %591 = vmatpush2.msra.mxu0 0.0
  %592 = vmatprep.subr.mxu0 0.0
  %593 = vmatpush2.msra.mxu0 0.0
  %594 = vmatprep.subr.mxu0 0.0
  %595 = vmatpush2.msra.mxu0 0.0
  %596 = vmatprep.mubr.f32.mxu0 0.0
  %597 = vmatmul.mubr.f32.gmra.mxu0 %v527
  %v598 = vpop.f32.mrf.mxu0
  %v599 = vadd.f32 0.0, %v598
  %v600 = vpop.f32.mrf.mxu0
  %601 = vmatprep.mubr.f32.mxu0 0.0
  %602 = vmatmul.mubr.f32.gmra.mxu0 %v530
  %v603 = vpop.f32.mrf.mxu0
  %v604 = vadd.f32 0.0, %v603
  %v605 = vpop.f32.mrf.mxu0
  %606 = vdwg.mxu0
  %v607 = vadd.f32 %v514, %v599
  %v608 = vadd.f32 %v519, %v604
  %v609 = vld [vmem:[%s8] sm:$0x1]
  %v611 = vlaneseq
  %v612 = vshrl.u32 %v611, 7
  %v613 = vsub.s32 0, %v612
  %v614 = vrot.slane %v609, %v613
  %v616 = vadd.f32 %v607, %v614
  %v617 = vadd.f32 %v608, %v614
  %v618 = vadd.f32 %v616, %v32
  %v619 = vadd.f32 %v617, %v33
  %620 = vst.msk [vmem:[%s9] sm:$0xff] %vm54, %v618
  %621 = vst.msk [vmem:[%s9 + $0x8] sm:$0xff] %vm54, %v619
  // Predicated region
  $region38: #{_lambda_.10} parent=0 // pred_check
    _
  $region39: #{_lambda_.10} parent=0 // pred_check_branch
    %623 = sbr.rel (0) target = $region41
  $region40: #{_lambda_.10} parent=0 // pred_region
    _
  $region41: #{_lambda_.10} parent=0 // pred_fallthru
    _
  // Predicated region
  $region42: #{_lambda_.10} parent=0 // pred_check
    _
  $region43: #{_lambda_.10} parent=0 // pred_check_branch
    %625 = sbr.rel (0) target = $region45
  $region44: #{_lambda_.10} parent=0 // pred_region
    _
  $region45: #{_lambda_.10} parent=0 // pred_fallthru
    _

// kernel: _lambda_.13
$region0: #{_lambda_.13}
  #allocation0 [shape = 'u32[]', space=smem, size = 0x4, offset = 0x4, fixed_abs, tag = 'smem constant byte address 0x4 - core index']
  #allocation1 [shape = 'u32[144,128]{1,0:T(1,128)}', space=vmem, size = 0x12000, scoped, tag = 'internal scratch']
  %s0 = inlined_call_operand.vmem [shape: f32[2,4,16], index: 0, kind: input, shape index: {}]
  %s1 = inlined_call_operand.vmem [shape: f32[1,16], index: 1, kind: input, shape index: {}]
  %s2 = inlined_call_operand.vmem [shape: f32[1,16], index: 2, kind: input, shape index: {}]
  %s3 = inlined_call_operand.vmem [shape: f32[16,5], index: 3, kind: input, shape index: {}]
  %s4 = inlined_call_operand.vmem [shape: f32[1,5], index: 4, kind: input, shape index: {}]
  %s5 = inlined_call_operand.hbm [shape: f32[2,5], index: 5, kind: output, shape index: {}]
  %s6 = sld [smem:[#allocation0]]
  $region30: #{_lambda_.13} parent=0
    _
  %s8 = ssub.s32 1, %s6
  %s9 = scalar_select 0, %s8, %s6
  $region1: #{_lambda_.13} parent=0
    #allocation2 [shape = 'u8[1024]{0}', space=vmem, size = 0x400, scoped, tag = 'output window, operand 0, single buffered']
    #allocation3 [shape = 's32[1]{0}', space=sflag, size = 0x4, scoped, tag = 'scoped memory for _lambda_.13']
    %10 = vsyncpa [#allocation3], 0
    // Predicated region
    $region2: #{_lambda_.13} parent=1 // pred_check
      _
    $region3: #{_lambda_.13} parent=1 // pred_check_branch
      %12 = sbr.rel (0) target = $region5
    $region4: #{_lambda_.13} parent=1 // pred_region
      _
    $region5: #{_lambda_.13} parent=1 // pred_fallthru
      _
    // Predicated region
    $region6: #{_lambda_.13} parent=1 // pred_check
      _
    $region7: #{_lambda_.13} parent=1 // pred_check_branch
      %14 = sbr.rel (0) target = $region9
    $region8: #{_lambda_.13} parent=1 // pred_region
      _
    $region9: #{_lambda_.13} parent=1 // pred_fallthru
      _
    // Predicated region
    $region10: #{_lambda_.13} parent=1 // pred_check
      _
    $region11: #{_lambda_.13} parent=1 // pred_check_branch
      %16 = sbr.rel (0) target = $region13
    $region12: #{_lambda_.13} parent=1 // pred_region
      _
    $region13: #{_lambda_.13} parent=1 // pred_fallthru
      _
    // Predicated region
    $region14: #{_lambda_.13} parent=1 // pred_check
      _
    $region15: #{_lambda_.13} parent=1 // pred_check_branch
      %18 = sbr.rel (0) target = $region17
    $region16: #{_lambda_.13} parent=1 // pred_region
      _
    $region17: #{_lambda_.13} parent=1 // pred_fallthru
      _
    // Predicated region
    $region18: #{_lambda_.13} parent=1 // pred_check
      _
    $region19: #{_lambda_.13} parent=1 // pred_check_branch
      %20 = sbr.rel (0) target = $region21
    $region20: #{_lambda_.13} parent=1 // pred_region
      _
    $region21: #{_lambda_.13} parent=1 // pred_fallthru
      _
    %v21 = vld [vmem:[%s0] sm:$0xf]
    %v22 = vld [vmem:[%s0 + $0x4] sm:$0xf]
    %v23 = vld [vmem:[%s1] sm:$0x1]
    %v25 = vlaneseq
    %v26 = vshrl.u32 %v25, 7
    %v27 = vsub.s32 0, %v26
    %v28 = vrot.slane %v23, %v27
    %v30 = vcombine.high %v28, %v28
    %v32 = vmul.f32 %v21, %v28
    %v33 = vmul.f32 %v22, %v30
    %v34 = vld [vmem:[%s2] sm:$0x1]
    %v36 = vlaneseq
    %v37 = vshrl.u32 %v36, 7
    %v38 = vsub.s32 0, %v37
    %v39 = vrot.slane %v34, %v38
    %v41 = vcombine.high %v39, %v39
    %v43 = vadd.f32 %v32, %v39
    %v44 = vadd.f32 %v33, %v41
    %v45 = vmax.f32 %v43, 0.0
    %v46 = vmax.f32 %v44, 0.0
    %vm47 = vcmask 125952
    %v48 = vsel %vm47, %v45, 0.0
    %v49 = vrot.slane %v48, 4
    %v50 = vadd.f32 %v48, %v49
    %v51 = vrot.slane %v50, 2
    %v52 = vadd.f32 %v50, %v51
    %v53 = vrot.slane %v52, 1
    %v54 = vadd.f32 %v52, %v53
    %v55 = vmul.f32 %v54, 0.25
    %v56 = vld [vmem:[%s3] sm:$0xff]
    %v57 = vld [vmem:[%s3 + $0x8] sm:$0xff]
    %v58 = vld [vmem:[%s4] sm:$0x1]
    %vm59 = vcmask 130048
    %v61 = vsel %vm59, %v55, 0
    %63 = vmatprep.subr.mxu0 0.0
    %64 = vmatpush1.msra.mxu0 0.0
    %65 = vmatprep.subr.mxu0 0.0
    %66 = vmatpush1.msra.mxu0 0.0
    %67 = vmatprep.subr.mxu0 0.0
    %68 = vmatpush1.msra.mxu0 0.0
    %69 = vmatprep.subr.mxu0 0.0
    %70 = vmatpush1.msra.mxu0 0.0
    %71 = vmatprep.subr.mxu0 0.0
    %72 = vmatpush1.msra.mxu0 0.0
    %73 = vmatprep.subr.mxu0 0.0
    %74 = vmatpush1.msra.mxu0 0.0
    %75 = vmatprep.subr.mxu0 0.0
    %76 = vmatpush1.msra.mxu0 0.0
    %77 = vmatprep.subr.mxu0 0.0
    %78 = vmatpush1.msra.mxu0 0.0
    %79 = vmatprep.subr.mxu0 0.0
    %80 = vmatpush1.msra.mxu0 0.0
    %81 = vmatprep.subr.mxu0 0.0
    %82 = vmatpush1.msra.mxu0 0.0
    %83 = vmatprep.subr.mxu0 0.0
    %84 = vmatpush1.msra.mxu0 0.0
    %85 = vmatprep.subr.mxu0 0.0
    %86 = vmatpush1.msra.mxu0 0.0
    %87 = vmatprep.subr.mxu0 0.0
    %88 = vmatpush1.msra.mxu0 0.0
    %89 = vmatprep.subr.mxu0 0.0
    %90 = vmatpush1.msra.mxu0 0.0
    %91 = vmatprep.subr.mxu0 0.0
    %92 = vmatpush1.msra.mxu0 %v57
    %93 = vmatprep.subr.mxu0 0.0
    %94 = vmatpush1.msra.mxu0 %v56
    %95 = vmatprep.subr.mxu0 0.0
    %96 = vmatpush2.msra.mxu0 0.0
    %97 = vmatprep.subr.mxu0 0.0
    %98 = vmatpush2.msra.mxu0 0.0
    %99 = vmatprep.subr.mxu0 0.0
    %100 = vmatpush2.msra.mxu0 0.0
    %101 = vmatprep.subr.mxu0 0.0
    %102 = vmatpush2.msra.mxu0 0.0
    %103 = vmatprep.subr.mxu0 0.0
    %104 = vmatpush2.msra.mxu0 0.0
    %105 = vmatprep.subr.mxu0 0.0
    %106 = vmatpush2.msra.mxu0 0.0
    %107 = vmatprep.subr.mxu0 0.0
    %108 = vmatpush2.msra.mxu0 0.0
    %109 = vmatprep.subr.mxu0 0.0
    %110 = vmatpush2.msra.mxu0 0.0
    %111 = vmatprep.subr.mxu0 0.0
    %112 = vmatpush2.msra.mxu0 0.0
    %113 = vmatprep.subr.mxu0 0.0
    %114 = vmatpush2.msra.mxu0 0.0
    %115 = vmatprep.subr.mxu0 0.0
    %116 = vmatpush2.msra.mxu0 0.0
    %117 = vmatprep.subr.mxu0 0.0
    %118 = vmatpush2.msra.mxu0 0.0
    %119 = vmatprep.subr.mxu0 0.0
    %120 = vmatpush2.msra.mxu0 0.0
    %121 = vmatprep.subr.mxu0 0.0
    %122 = vmatpush2.msra.mxu0 0.0
    %123 = vmatprep.subr.mxu0 0.0
    %124 = vmatpush2.msra.mxu0 0.0
    %125 = vmatprep.subr.mxu0 0.0
    %126 = vmatpush2.msra.mxu0 0.0
    %127 = vmatprep.mubr.f32.mxu0 0.0
    %128 = vmatmul.mubr.f32.gmra.mxu0 %v61
    %v129 = vpop.f32.mrf.mxu0
    %v130 = vadd.f32 %v58, %v129
    %v131 = vpop.f32.mrf.mxu0
    %132 = vdwg.mxu0
    %vm133 = vcmask 32768
    %134 = vst.msk [vmem:[#allocation2] sm:$0x1] %vm133, %v130
    %v135 = vsel %vm47, %v46, 0.0
    %v136 = vrot.slane %v135, 4
    %v137 = vadd.f32 %v135, %v136
    %v138 = vrot.slane %v137, 2
    %v139 = vadd.f32 %v137, %v138
    %v140 = vrot.slane %v139, 1
    %v141 = vadd.f32 %v139, %v140
    %v142 = vmul.f32 %v141, 0.25
    %v143 = vld [vmem:[%s3] sm:$0xff]
    %v144 = vld [vmem:[%s3 + $0x8] sm:$0xff]
    %v145 = vld [vmem:[%s4] sm:$0x1]
    %v147 = vsel %vm59, %v142, 0
    %149 = vmatprep.subr.mxu0 0.0
    %150 = vmatpush1.msra.mxu0 0.0
    %151 = vmatprep.subr.mxu0 0.0
    %152 = vmatpush1.msra.mxu0 0.0
    %153 = vmatprep.subr.mxu0 0.0
    %154 = vmatpush1.msra.mxu0 0.0
    %155 = vmatprep.subr.mxu0 0.0
    %156 = vmatpush1.msra.mxu0 0.0
    %157 = vmatprep.subr.mxu0 0.0
    %158 = vmatpush1.msra.mxu0 0.0
    %159 = vmatprep.subr.mxu0 0.0
    %160 = vmatpush1.msra.mxu0 0.0
    %161 = vmatprep.subr.mxu0 0.0
    %162 = vmatpush1.msra.mxu0 0.0
    %163 = vmatprep.subr.mxu0 0.0
    %164 = vmatpush1.msra.mxu0 0.0
    %165 = vmatprep.subr.mxu0 0.0
    %166 = vmatpush1.msra.mxu0 0.0
    %167 = vmatprep.subr.mxu0 0.0
    %168 = vmatpush1.msra.mxu0 0.0
    %169 = vmatprep.subr.mxu0 0.0
    %170 = vmatpush1.msra.mxu0 0.0
    %171 = vmatprep.subr.mxu0 0.0
    %172 = vmatpush1.msra.mxu0 0.0
    %173 = vmatprep.subr.mxu0 0.0
    %174 = vmatpush1.msra.mxu0 0.0
    %175 = vmatprep.subr.mxu0 0.0
    %176 = vmatpush1.msra.mxu0 0.0
    %177 = vmatprep.subr.mxu0 0.0
    %178 = vmatpush1.msra.mxu0 %v144
    %179 = vmatprep.subr.mxu0 0.0
    %180 = vmatpush1.msra.mxu0 %v143
    %181 = vmatprep.subr.mxu0 0.0
    %182 = vmatpush2.msra.mxu0 0.0
    %183 = vmatprep.subr.mxu0 0.0
    %184 = vmatpush2.msra.mxu0 0.0
    %185 = vmatprep.subr.mxu0 0.0
    %186 = vmatpush2.msra.mxu0 0.0
    %187 = vmatprep.subr.mxu0 0.0
    %188 = vmatpush2.msra.mxu0 0.0
    %189 = vmatprep.subr.mxu0 0.0
    %190 = vmatpush2.msra.mxu0 0.0
    %191 = vmatprep.subr.mxu0 0.0
    %192 = vmatpush2.msra.mxu0 0.0
    %193 = vmatprep.subr.mxu0 0.0
    %194 = vmatpush2.msra.mxu0 0.0
    %195 = vmatprep.subr.mxu0 0.0
    %196 = vmatpush2.msra.mxu0 0.0
    %197 = vmatprep.subr.mxu0 0.0
    %198 = vmatpush2.msra.mxu0 0.0
    %199 = vmatprep.subr.mxu0 0.0
    %200 = vmatpush2.msra.mxu0 0.0
    %201 = vmatprep.subr.mxu0 0.0
    %202 = vmatpush2.msra.mxu0 0.0
    %203 = vmatprep.subr.mxu0 0.0
    %204 = vmatpush2.msra.mxu0 0.0
    %205 = vmatprep.subr.mxu0 0.0
    %206 = vmatpush2.msra.mxu0 0.0
    %207 = vmatprep.subr.mxu0 0.0
    %208 = vmatpush2.msra.mxu0 0.0
    %209 = vmatprep.subr.mxu0 0.0
    %210 = vmatpush2.msra.mxu0 0.0
    %211 = vmatprep.subr.mxu0 0.0
    %212 = vmatpush2.msra.mxu0 0.0
    %213 = vmatprep.mubr.f32.mxu0 0.0
    %214 = vmatmul.mubr.f32.gmra.mxu0 %v147
    %v215 = vpop.f32.mrf.mxu0
    %v216 = vadd.f32 %v145, %v215
    %v217 = vpop.f32.mrf.mxu0
    %218 = vdwg.mxu0
    %219 = vst.msk [vmem:[#allocation2 + $0x1] sm:$0x1] %vm133, %v216
    // Predicated region
    $region22: #{_lambda_.13} parent=1 // pred_check
      _
    $region23: #{_lambda_.13} parent=1 // pred_check_branch
      %221 = sbr.rel (0) target = $region25
    $region24: #{_lambda_.13} parent=1 // pred_region
      %s223 = ssub.s32 32, 32
      %224 = vsyncadd [#allocation3], %s223
      %s226 = sshll.u32 [#allocation2], 4
      %s227 = int_to_ptr.vmem [resolvable:$true] %s226
      %229 = dma.vmem_to_hbm [thread:$0]  %s227, 32, %s5, [#allocation3]
    $region25: #{_lambda_.13} parent=1 // pred_fallthru
      _
    // Predicated region
    $region26: #{_lambda_.13} parent=1 // pred_check
      _
    $region27: #{_lambda_.13} parent=1 // pred_check_branch
      %231 = sbr.rel (0) target = $region29
    $region28: #{_lambda_.13} parent=1 // pred_region
      %232 = dma.done [#allocation3], 32
    $region29: #{_lambda_.13} parent=1 // pred_fallthru
      _
    %233 = vsyncpa [#allocation3], 1

// kernel: _lambda_.11
$region0: #{_lambda_.11}
  #allocation0 [shape = 'u32[]', space=smem, size = 0x4, offset = 0x4, fixed_abs, tag = 'smem constant byte address 0x4 - core index']
  #allocation1 [shape = 'u32[144,128]{1,0:T(1,128)}', space=vmem, size = 0x12000, scoped, tag = 'internal scratch']
  #allocation2 [shape = 'f32[2,9,8]{2,1,0:T(8,128)}', space=vmem, size = 0x4000, scoped, tag = 'scratch operand']
  #allocation3 [shape = 'f32[2,6,8]{2,1,0:T(8,128)}', space=vmem, size = 0x2000, scoped, tag = 'scratch operand']
  #allocation4 [shape = 'f32[2,9,8]{2,1,0:T(8,128)}', space=vmem, size = 0x4000, scoped, tag = 'scratch operand']
  %s0 = inlined_call_operand.vmem [shape: f32[2,8,8], index: 0, kind: input, shape index: {}]
  %s1 = inlined_call_operand.vmem [shape: f32[1,8], index: 1, kind: input, shape index: {}]
  %s2 = inlined_call_operand.vmem [shape: f32[1,8], index: 2, kind: input, shape index: {}]
  %s3 = inlined_call_operand.vmem [shape: f32[3,8,8], index: 3, kind: input, shape index: {}]
  %s4 = inlined_call_operand.vmem [shape: f32[1,8], index: 4, kind: input, shape index: {}]
  %s5 = inlined_call_operand.vmem [shape: f32[1,8], index: 5, kind: input, shape index: {}]
  %s6 = inlined_call_operand.vmem [shape: f32[1,8], index: 6, kind: input, shape index: {}]
  %s7 = inlined_call_operand.vmem [shape: f32[3,8,8], index: 7, kind: input, shape index: {}]
  %s8 = inlined_call_operand.vmem [shape: f32[1,8], index: 8, kind: input, shape index: {}]
  %s9 = inlined_call_operand.vmem [shape: f32[2,4,8], index: 9, kind: output, shape index: {}]
  %s10 = sld [smem:[#allocation0]]
  $region46: #{_lambda_.11} parent=0
    _
  %s12 = ssub.s32 1, %s10
  %s13 = scalar_select 0, %s12, %s10
  // Predicated region
  $region2: #{_lambda_.11} parent=0 // pred_check
    _
  $region3: #{_lambda_.11} parent=0 // pred_check_branch
    %15 = sbr.rel (0) target = $region5
  $region4: #{_lambda_.11} parent=0 // pred_region
    _
  $region5: #{_lambda_.11} parent=0 // pred_fallthru
    _
  // Predicated region
  $region6: #{_lambda_.11} parent=0 // pred_check
    _
  $region7: #{_lambda_.11} parent=0 // pred_check_branch
    %17 = sbr.rel (0) target = $region9
  $region8: #{_lambda_.11} parent=0 // pred_region
    _
  $region9: #{_lambda_.11} parent=0 // pred_fallthru
    _
  // Predicated region
  $region10: #{_lambda_.11} parent=0 // pred_check
    _
  $region11: #{_lambda_.11} parent=0 // pred_check_branch
    %19 = sbr.rel (0) target = $region13
  $region12: #{_lambda_.11} parent=0 // pred_region
    _
  $region13: #{_lambda_.11} parent=0 // pred_fallthru
    _
  // Predicated region
  $region14: #{_lambda_.11} parent=0 // pred_check
    _
  $region15: #{_lambda_.11} parent=0 // pred_check_branch
    %21 = sbr.rel (0) target = $region17
  $region16: #{_lambda_.11} parent=0 // pred_region
    _
  $region17: #{_lambda_.11} parent=0 // pred_fallthru
    _
  // Predicated region
  $region18: #{_lambda_.11} parent=0 // pred_check
    _
  $region19: #{_lambda_.11} parent=0 // pred_check_branch
    %23 = sbr.rel (0) target = $region21
  $region20: #{_lambda_.11} parent=0 // pred_region
    _
  $region21: #{_lambda_.11} parent=0 // pred_fallthru
    _
  // Predicated region
  $region22: #{_lambda_.11} parent=0 // pred_check
    _
  $region23: #{_lambda_.11} parent=0 // pred_check_branch
    %25 = sbr.rel (0) target = $region25
  $region24: #{_lambda_.11} parent=0 // pred_region
    _
  $region25: #{_lambda_.11} parent=0 // pred_fallthru
    _
  // Predicated region
  $region26: #{_lambda_.11} parent=0 // pred_check
    _
  $region27: #{_lambda_.11} parent=0 // pred_check_branch
    %27 = sbr.rel (0) target = $region29
  $region28: #{_lambda_.11} parent=0 // pred_region
    _
  $region29: #{_lambda_.11} parent=0 // pred_fallthru
    _
  // Predicated region
  $region30: #{_lambda_.11} parent=0 // pred_check
    _
  $region31: #{_lambda_.11} parent=0 // pred_check_branch
    %29 = sbr.rel (0) target = $region33
  $region32: #{_lambda_.11} parent=0 // pred_region
    _
  $region33: #{_lambda_.11} parent=0 // pred_fallthru
    _
  // Predicated region
  $region34: #{_lambda_.11} parent=0 // pred_check
    _
  $region35: #{_lambda_.11} parent=0 // pred_check_branch
    %31 = sbr.rel (0) target = $region37
  $region36: #{_lambda_.11} parent=0 // pred_region
    _
  $region37: #{_lambda_.11} parent=0 // pred_fallthru
    _
  %v32 = vld [vmem:[%s0] sm:$0xff]
  %v33 = vld [vmem:[%s0 + $0x8] sm:$0xff]
  %v34 = vld [vmem:[%s1] sm:$0x1]
  %v36 = vlaneseq
  %v37 = vshrl.u32 %v36, 7
  %v38 = vsub.s32 0, %v37
  %v39 = vrot.slane %v34, %v38
  %v41 = vmul.f32 %v32, %v39
  %v42 = vmul.f32 %v33, %v39
  %v43 = vld [vmem:[%s2] sm:$0x1]
  %v45 = vlaneseq
  %v46 = vshrl.u32 %v45, 7
  %v47 = vsub.s32 0, %v46
  %v48 = vrot.slane %v43, %v47
  %v50 = vadd.f32 %v41, %v48
  %v51 = vadd.f32 %v42, %v48
  %v52 = vmax.f32 %v50, 0.0
  %v53 = vmax.f32 %v51, 0.0
  %vm54 = vcmask 64512
  %55 = vst.msk [vmem:[#allocation2] sm:$0xff] %vm54, 0.0
  %vm56 = vcmask 57344
  %57 = vst.msk [vmem:[#allocation2 + $0x8] sm:$0x1] %vm56, 0.0
  %58 = vst.msk [vmem:[#allocation2 + $0x10] sm:$0xff] %vm54, 0.0
  %59 = vst.msk [vmem:[#allocation2 + $0x18] sm:$0x1] %vm56, 0.0
  %60 = vst.msk [vmem:[#allocation2] sm:$0xff] %vm54, %v52
  %61 = vst.msk [vmem:[#allocation2 + $0x10] sm:$0xff] %vm54, %v53
  %v62 = vld [vmem:[#allocation2] ss:$2 sm:$0xf]
  %s63 = scalar_lea.vmem [#allocation2], 16
  %v64 = vld [vmem:[%s63] ss:$2 sm:$0xf]
  %v65 = vld [vmem:[%s3] sm:$0xff]
  %s66 = scalar_lea.vmem [#allocation2], 1
  %v67 = vld [vmem:[%s66] ss:$2 sm:$0xf]
  %s68 = scalar_lea.vmem [#allocation2], 17
  %v69 = vld [vmem:[%s68] ss:$2 sm:$0xf]
  %s70 = scalar_lea.vmem %s3, 8
  %v71 = vld [vmem:[%s70] sm:$0xff]
  %v74 = vcombine.low %v67, %v69
  %v75 = vsel %vm54, %v74, 0
  %77 = vmatprep.subr.mxu0 0.0
  %78 = vmatpush1.msra.mxu0 0.0
  %79 = vmatprep.subr.mxu0 0.0
  %80 = vmatpush1.msra.mxu0 0.0
  %81 = vmatprep.subr.mxu0 0.0
  %82 = vmatpush1.msra.mxu0 0.0
  %83 = vmatprep.subr.mxu0 0.0
  %84 = vmatpush1.msra.mxu0 0.0
  %85 = vmatprep.subr.mxu0 0.0
  %86 = vmatpush1.msra.mxu0 0.0
  %87 = vmatprep.subr.mxu0 0.0
  %88 = vmatpush1.msra.mxu0 0.0
  %89 = vmatprep.subr.mxu0 0.0
  %90 = vmatpush1.msra.mxu0 0.0
  %91 = vmatprep.subr.mxu0 0.0
  %92 = vmatpush1.msra.mxu0 0.0
  %93 = vmatprep.subr.mxu0 0.0
  %94 = vmatpush1.msra.mxu0 0.0
  %95 = vmatprep.subr.mxu0 0.0
  %96 = vmatpush1.msra.mxu0 0.0
  %97 = vmatprep.subr.mxu0 0.0
  %98 = vmatpush1.msra.mxu0 0.0
  %99 = vmatprep.subr.mxu0 0.0
  %100 = vmatpush1.msra.mxu0 0.0
  %101 = vmatprep.subr.mxu0 0.0
  %102 = vmatpush1.msra.mxu0 0.0
  %103 = vmatprep.subr.mxu0 0.0
  %104 = vmatpush1.msra.mxu0 0.0
  %105 = vmatprep.subr.mxu0 0.0
  %106 = vmatpush1.msra.mxu0 0.0
  %107 = vmatprep.subr.mxu0 0.0
  %108 = vmatpush1.msra.mxu0 %v71
  %109 = vmatprep.subr.mxu0 0.0
  %110 = vmatpush2.msra.mxu0 0.0
  %111 = vmatprep.subr.mxu0 0.0
  %112 = vmatpush2.msra.mxu0 0.0
  %113 = vmatprep.subr.mxu0 0.0
  %114 = vmatpush2.msra.mxu0 0.0
  %115 = vmatprep.subr.mxu0 0.0
  %116 = vmatpush2.msra.mxu0 0.0
  %117 = vmatprep.subr.mxu0 0.0
  %118 = vmatpush2.msra.mxu0 0.0
  %119 = vmatprep.subr.mxu0 0.0
  %120 = vmatpush2.msra.mxu0 0.0
  %121 = vmatprep.subr.mxu0 0.0
  %122 = vmatpush2.msra.mxu0 0.0
  %123 = vmatprep.subr.mxu0 0.0
  %124 = vmatpush2.msra.mxu0 0.0
  %125 = vmatprep.subr.mxu0 0.0
  %126 = vmatpush2.msra.mxu0 0.0
  %127 = vmatprep.subr.mxu0 0.0
  %128 = vmatpush2.msra.mxu0 0.0
  %129 = vmatprep.subr.mxu0 0.0
  %130 = vmatpush2.msra.mxu0 0.0
  %131 = vmatprep.subr.mxu0 0.0
  %132 = vmatpush2.msra.mxu0 0.0
  %133 = vmatprep.subr.mxu0 0.0
  %134 = vmatpush2.msra.mxu0 0.0
  %135 = vmatprep.subr.mxu0 0.0
  %136 = vmatpush2.msra.mxu0 0.0
  %137 = vmatprep.subr.mxu0 0.0
  %138 = vmatpush2.msra.mxu0 0.0
  %139 = vmatprep.subr.mxu0 0.0
  %140 = vmatpush2.msra.mxu0 0.0
  %141 = vmatprep.mubr.f32.mxu0 0.0
  %142 = vmatmul.mubr.f32.gmra.mxu0 %v75
  %v143 = vpop.f32.mrf.mxu0
  %v144 = vadd.f32 0.0, %v143
  %v145 = vpop.f32.mrf.mxu0
  %146 = vdwg.mxu0
  %v149 = vcombine.low %v62, %v64
  %v150 = vsel %vm54, %v149, 0
  %152 = vmatprep.subr.mxu0 0.0
  %153 = vmatpush1.msra.mxu0 0.0
  %154 = vmatprep.subr.mxu0 0.0
  %155 = vmatpush1.msra.mxu0 0.0
  %156 = vmatprep.subr.mxu0 0.0
  %157 = vmatpush1.msra.mxu0 0.0
  %158 = vmatprep.subr.mxu0 0.0
  %159 = vmatpush1.msra.mxu0 0.0
  %160 = vmatprep.subr.mxu0 0.0
  %161 = vmatpush1.msra.mxu0 0.0
  %162 = vmatprep.subr.mxu0 0.0
  %163 = vmatpush1.msra.mxu0 0.0
  %164 = vmatprep.subr.mxu0 0.0
  %165 = vmatpush1.msra.mxu0 0.0
  %166 = vmatprep.subr.mxu0 0.0
  %167 = vmatpush1.msra.mxu0 0.0
  %168 = vmatprep.subr.mxu0 0.0
  %169 = vmatpush1.msra.mxu0 0.0
  %170 = vmatprep.subr.mxu0 0.0
  %171 = vmatpush1.msra.mxu0 0.0
  %172 = vmatprep.subr.mxu0 0.0
  %173 = vmatpush1.msra.mxu0 0.0
  %174 = vmatprep.subr.mxu0 0.0
  %175 = vmatpush1.msra.mxu0 0.0
  %176 = vmatprep.subr.mxu0 0.0
  %177 = vmatpush1.msra.mxu0 0.0
  %178 = vmatprep.subr.mxu0 0.0
  %179 = vmatpush1.msra.mxu0 0.0
  %180 = vmatprep.subr.mxu0 0.0
  %181 = vmatpush1.msra.mxu0 0.0
  %182 = vmatprep.subr.mxu0 0.0
  %183 = vmatpush1.msra.mxu0 %v65
  %184 = vmatprep.subr.mxu0 0.0
  %185 = vmatpush2.msra.mxu0 0.0
  %186 = vmatprep.subr.mxu0 0.0
  %187 = vmatpush2.msra.mxu0 0.0
  %188 = vmatprep.subr.mxu0 0.0
  %189 = vmatpush2.msra.mxu0 0.0
  %190 = vmatprep.subr.mxu0 0.0
  %191 = vmatpush2.msra.mxu0 0.0
  %192 = vmatprep.subr.mxu0 0.0
  %193 = vmatpush2.msra.mxu0 0.0
  %194 = vmatprep.subr.mxu0 0.0
  %195 = vmatpush2.msra.mxu0 0.0
  %196 = vmatprep.subr.mxu0 0.0
  %197 = vmatpush2.msra.mxu0 0.0
  %198 = vmatprep.subr.mxu0 0.0
  %199 = vmatpush2.msra.mxu0 0.0
  %200 = vmatprep.subr.mxu0 0.0
  %201 = vmatpush2.msra.mxu0 0.0
  %202 = vmatprep.subr.mxu0 0.0
  %203 = vmatpush2.msra.mxu0 0.0
  %204 = vmatprep.subr.mxu0 0.0
  %205 = vmatpush2.msra.mxu0 0.0
  %206 = vmatprep.subr.mxu0 0.0
  %207 = vmatpush2.msra.mxu0 0.0
  %208 = vmatprep.subr.mxu0 0.0
  %209 = vmatpush2.msra.mxu0 0.0
  %210 = vmatprep.subr.mxu0 0.0
  %211 = vmatpush2.msra.mxu0 0.0
  %212 = vmatprep.subr.mxu0 0.0
  %213 = vmatpush2.msra.mxu0 0.0
  %214 = vmatprep.subr.mxu0 0.0
  %215 = vmatpush2.msra.mxu0 0.0
  %216 = vmatprep.mubr.f32.mxu0 0.0
  %217 = vmatmul.mubr.f32.gmra.mxu0 %v150
  %v218 = vpop.f32.mrf.mxu0
  %v219 = vadd.f32 %v144, %v218
  %v220 = vpop.f32.mrf.mxu0
  %221 = vdwg.mxu0
  %s222 = scalar_lea.vmem [#allocation2], 2
  %v223 = vld [vmem:[%s222] ss:$2 sm:$0xf]
  %s224 = scalar_lea.vmem [#allocation2], 18
  %v225 = vld [vmem:[%s224] ss:$2 sm:$0xf]
  %s226 = scalar_lea.vmem %s3, 16
  %v227 = vld [vmem:[%s226] sm:$0xff]
  %v230 = vcombine.low %v223, %v225
  %v231 = vsel %vm54, %v230, 0
  %233 = vmatprep.subr.mxu0 0.0
  %234 = vmatpush1.msra.mxu0 0.0
  %235 = vmatprep.subr.mxu0 0.0
  %236 = vmatpush1.msra.mxu0 0.0
  %237 = vmatprep.subr.mxu0 0.0
  %238 = vmatpush1.msra.mxu0 0.0
  %239 = vmatprep.subr.mxu0 0.0
  %240 = vmatpush1.msra.mxu0 0.0
  %241 = vmatprep.subr.mxu0 0.0
  %242 = vmatpush1.msra.mxu0 0.0
  %243 = vmatprep.subr.mxu0 0.0
  %244 = vmatpush1.msra.mxu0 0.0
  %245 = vmatprep.subr.mxu0 0.0
  %246 = vmatpush1.msra.mxu0 0.0
  %247 = vmatprep.subr.mxu0 0.0
  %248 = vmatpush1.msra.mxu0 0.0
  %249 = vmatprep.subr.mxu0 0.0
  %250 = vmatpush1.msra.mxu0 0.0
  %251 = vmatprep.subr.mxu0 0.0
  %252 = vmatpush1.msra.mxu0 0.0
  %253 = vmatprep.subr.mxu0 0.0
  %254 = vmatpush1.msra.mxu0 0.0
  %255 = vmatprep.subr.mxu0 0.0
  %256 = vmatpush1.msra.mxu0 0.0
  %257 = vmatprep.subr.mxu0 0.0
  %258 = vmatpush1.msra.mxu0 0.0
  %259 = vmatprep.subr.mxu0 0.0
  %260 = vmatpush1.msra.mxu0 0.0
  %261 = vmatprep.subr.mxu0 0.0
  %262 = vmatpush1.msra.mxu0 0.0
  %263 = vmatprep.subr.mxu0 0.0
  %264 = vmatpush1.msra.mxu0 %v227
  %265 = vmatprep.subr.mxu0 0.0
  %266 = vmatpush2.msra.mxu0 0.0
  %267 = vmatprep.subr.mxu0 0.0
  %268 = vmatpush2.msra.mxu0 0.0
  %269 = vmatprep.subr.mxu0 0.0
  %270 = vmatpush2.msra.mxu0 0.0
  %271 = vmatprep.subr.mxu0 0.0
  %272 = vmatpush2.msra.mxu0 0.0
  %273 = vmatprep.subr.mxu0 0.0
  %274 = vmatpush2.msra.mxu0 0.0
  %275 = vmatprep.subr.mxu0 0.0
  %276 = vmatpush2.msra.mxu0 0.0
  %277 = vmatprep.subr.mxu0 0.0
  %278 = vmatpush2.msra.mxu0 0.0
  %279 = vmatprep.subr.mxu0 0.0
  %280 = vmatpush2.msra.mxu0 0.0
  %281 = vmatprep.subr.mxu0 0.0
  %282 = vmatpush2.msra.mxu0 0.0
  %283 = vmatprep.subr.mxu0 0.0
  %284 = vmatpush2.msra.mxu0 0.0
  %285 = vmatprep.subr.mxu0 0.0
  %286 = vmatpush2.msra.mxu0 0.0
  %287 = vmatprep.subr.mxu0 0.0
  %288 = vmatpush2.msra.mxu0 0.0
  %289 = vmatprep.subr.mxu0 0.0
  %290 = vmatpush2.msra.mxu0 0.0
  %291 = vmatprep.subr.mxu0 0.0
  %292 = vmatpush2.msra.mxu0 0.0
  %293 = vmatprep.subr.mxu0 0.0
  %294 = vmatpush2.msra.mxu0 0.0
  %295 = vmatprep.subr.mxu0 0.0
  %296 = vmatpush2.msra.mxu0 0.0
  %297 = vmatprep.mubr.f32.mxu0 0.0
  %298 = vmatmul.mubr.f32.gmra.mxu0 %v231
  %v299 = vpop.f32.mrf.mxu0
  %v300 = vadd.f32 0.0, %v299
  %v301 = vpop.f32.mrf.mxu0
  %302 = vdwg.mxu0
  %v303 = vadd.f32 %v219, %v300
  %v304 = vld [vmem:[%s4] sm:$0x1]
  %v306 = vlaneseq
  %v307 = vshrl.u32 %v306, 7
  %v308 = vsub.s32 0, %v307
  %v309 = vrot.slane %v304, %v308
  %v311 = vadd.f32 %v303, %v309
  %v312 = vld [vmem:[%s5] sm:$0x1]
  %v314 = vlaneseq
  %v315 = vshrl.u32 %v314, 7
  %v316 = vsub.s32 0, %v315
  %v317 = vrot.slane %v312, %v316
  %v319 = vmul.f32 %v311, %v317
  %v320 = vld [vmem:[%s6] sm:$0x1]
  %v322 = vlaneseq
  %v323 = vshrl.u32 %v322, 7
  %v324 = vsub.s32 0, %v323
  %v325 = vrot.slane %v320, %v324
  %v327 = vadd.f32 %v319, %v325
  %v328 = vmax.f32 %v327, 0.0
  %v330 = vcombine.high %v328, %v328
  %vm332 = vcmask 62464
  %333 = vst.msk [vmem:[#allocation3] sm:$0x3f] %vm332, 0.0
  %334 = vst.msk [vmem:[#allocation3 + $0x8] sm:$0x3f] %vm332, 0.0
  %vm335 = vcmask 60416
  %336 = vst.msk [vmem:[#allocation3 + $0x1] sm:$0xf] %vm335, %v328
  %337 = vst.msk [vmem:[#allocation3 + $0x9] sm:$0xf] %vm335, %v330
  %v338 = vld [vmem:[#allocation3] sm:$0xf]
  %v339 = vld [vmem:[#allocation3 + $0x8] sm:$0xf]
  %v340 = vld [vmem:[%s7] sm:$0xff]
  %v341 = vld [vmem:[#allocation3 + $0x1] sm:$0xf]
  %v342 = vld [vmem:[#allocation3 + $0x9] sm:$0xf]
  %s343 = scalar_lea.vmem %s7, 8
  %v344 = vld [vmem:[%s343] sm:$0xff]
  %v347 = vcombine.low %v341, %v342
  %v348 = vsel %vm54, %v347, 0
  %350 = vmatprep.subr.mxu0 0.0
  %351 = vmatpush1.msra.mxu0 0.0
  %352 = vmatprep.subr.mxu0 0.0
  %353 = vmatpush1.msra.mxu0 0.0
  %354 = vmatprep.subr.mxu0 0.0
  %355 = vmatpush1.msra.mxu0 0.0
  %356 = vmatprep.subr.mxu0 0.0
  %357 = vmatpush1.msra.mxu0 0.0
  %358 = vmatprep.subr.mxu0 0.0
  %359 = vmatpush1.msra.mxu0 0.0
  %360 = vmatprep.subr.mxu0 0.0
  %361 = vmatpush1.msra.mxu0 0.0
  %362 = vmatprep.subr.mxu0 0.0
  %363 = vmatpush1.msra.mxu0 0.0
  %364 = vmatprep.subr.mxu0 0.0
  %365 = vmatpush1.msra.mxu0 0.0
  %366 = vmatprep.subr.mxu0 0.0
  %367 = vmatpush1.msra.mxu0 0.0
  %368 = vmatprep.subr.mxu0 0.0
  %369 = vmatpush1.msra.mxu0 0.0
  %370 = vmatprep.subr.mxu0 0.0
  %371 = vmatpush1.msra.mxu0 0.0
  %372 = vmatprep.subr.mxu0 0.0
  %373 = vmatpush1.msra.mxu0 0.0
  %374 = vmatprep.subr.mxu0 0.0
  %375 = vmatpush1.msra.mxu0 0.0
  %376 = vmatprep.subr.mxu0 0.0
  %377 = vmatpush1.msra.mxu0 0.0
  %378 = vmatprep.subr.mxu0 0.0
  %379 = vmatpush1.msra.mxu0 0.0
  %380 = vmatprep.subr.mxu0 0.0
  %381 = vmatpush1.msra.mxu0 %v344
  %382 = vmatprep.subr.mxu0 0.0
  %383 = vmatpush2.msra.mxu0 0.0
  %384 = vmatprep.subr.mxu0 0.0
  %385 = vmatpush2.msra.mxu0 0.0
  %386 = vmatprep.subr.mxu0 0.0
  %387 = vmatpush2.msra.mxu0 0.0
  %388 = vmatprep.subr.mxu0 0.0
  %389 = vmatpush2.msra.mxu0 0.0
  %390 = vmatprep.subr.mxu0 0.0
  %391 = vmatpush2.msra.mxu0 0.0
  %392 = vmatprep.subr.mxu0 0.0
  %393 = vmatpush2.msra.mxu0 0.0
  %394 = vmatprep.subr.mxu0 0.0
  %395 = vmatpush2.msra.mxu0 0.0
  %396 = vmatprep.subr.mxu0 0.0
  %397 = vmatpush2.msra.mxu0 0.0
  %398 = vmatprep.subr.mxu0 0.0
  %399 = vmatpush2.msra.mxu0 0.0
  %400 = vmatprep.subr.mxu0 0.0
  %401 = vmatpush2.msra.mxu0 0.0
  %402 = vmatprep.subr.mxu0 0.0
  %403 = vmatpush2.msra.mxu0 0.0
  %404 = vmatprep.subr.mxu0 0.0
  %405 = vmatpush2.msra.mxu0 0.0
  %406 = vmatprep.subr.mxu0 0.0
  %407 = vmatpush2.msra.mxu0 0.0
  %408 = vmatprep.subr.mxu0 0.0
  %409 = vmatpush2.msra.mxu0 0.0
  %410 = vmatprep.subr.mxu0 0.0
  %411 = vmatpush2.msra.mxu0 0.0
  %412 = vmatprep.subr.mxu0 0.0
  %413 = vmatpush2.msra.mxu0 0.0
  %414 = vmatprep.mubr.f32.mxu0 0.0
  %415 = vmatmul.mubr.f32.gmra.mxu0 %v348
  %v416 = vpop.f32.mrf.mxu0
  %v417 = vadd.f32 0.0, %v416
  %v418 = vpop.f32.mrf.mxu0
  %419 = vdwg.mxu0
  %v422 = vcombine.low %v338, %v339
  %v423 = vsel %vm54, %v422, 0
  %425 = vmatprep.subr.mxu0 0.0
  %426 = vmatpush1.msra.mxu0 0.0
  %427 = vmatprep.subr.mxu0 0.0
  %428 = vmatpush1.msra.mxu0 0.0
  %429 = vmatprep.subr.mxu0 0.0
  %430 = vmatpush1.msra.mxu0 0.0
  %431 = vmatprep.subr.mxu0 0.0
  %432 = vmatpush1.msra.mxu0 0.0
  %433 = vmatprep.subr.mxu0 0.0
  %434 = vmatpush1.msra.mxu0 0.0
  %435 = vmatprep.subr.mxu0 0.0
  %436 = vmatpush1.msra.mxu0 0.0
  %437 = vmatprep.subr.mxu0 0.0
  %438 = vmatpush1.msra.mxu0 0.0
  %439 = vmatprep.subr.mxu0 0.0
  %440 = vmatpush1.msra.mxu0 0.0
  %441 = vmatprep.subr.mxu0 0.0
  %442 = vmatpush1.msra.mxu0 0.0
  %443 = vmatprep.subr.mxu0 0.0
  %444 = vmatpush1.msra.mxu0 0.0
  %445 = vmatprep.subr.mxu0 0.0
  %446 = vmatpush1.msra.mxu0 0.0
  %447 = vmatprep.subr.mxu0 0.0
  %448 = vmatpush1.msra.mxu0 0.0
  %449 = vmatprep.subr.mxu0 0.0
  %450 = vmatpush1.msra.mxu0 0.0
  %451 = vmatprep.subr.mxu0 0.0
  %452 = vmatpush1.msra.mxu0 0.0
  %453 = vmatprep.subr.mxu0 0.0
  %454 = vmatpush1.msra.mxu0 0.0
  %455 = vmatprep.subr.mxu0 0.0
  %456 = vmatpush1.msra.mxu0 %v340
  %457 = vmatprep.subr.mxu0 0.0
  %458 = vmatpush2.msra.mxu0 0.0
  %459 = vmatprep.subr.mxu0 0.0
  %460 = vmatpush2.msra.mxu0 0.0
  %461 = vmatprep.subr.mxu0 0.0
  %462 = vmatpush2.msra.mxu0 0.0
  %463 = vmatprep.subr.mxu0 0.0
  %464 = vmatpush2.msra.mxu0 0.0
  %465 = vmatprep.subr.mxu0 0.0
  %466 = vmatpush2.msra.mxu0 0.0
  %467 = vmatprep.subr.mxu0 0.0
  %468 = vmatpush2.msra.mxu0 0.0
  %469 = vmatprep.subr.mxu0 0.0
  %470 = vmatpush2.msra.mxu0 0.0
  %471 = vmatprep.subr.mxu0 0.0
  %472 = vmatpush2.msra.mxu0 0.0
  %473 = vmatprep.subr.mxu0 0.0
  %474 = vmatpush2.msra.mxu0 0.0
  %475 = vmatprep.subr.mxu0 0.0
  %476 = vmatpush2.msra.mxu0 0.0
  %477 = vmatprep.subr.mxu0 0.0
  %478 = vmatpush2.msra.mxu0 0.0
  %479 = vmatprep.subr.mxu0 0.0
  %480 = vmatpush2.msra.mxu0 0.0
  %481 = vmatprep.subr.mxu0 0.0
  %482 = vmatpush2.msra.mxu0 0.0
  %483 = vmatprep.subr.mxu0 0.0
  %484 = vmatpush2.msra.mxu0 0.0
  %485 = vmatprep.subr.mxu0 0.0
  %486 = vmatpush2.msra.mxu0 0.0
  %487 = vmatprep.subr.mxu0 0.0
  %488 = vmatpush2.msra.mxu0 0.0
  %489 = vmatprep.mubr.f32.mxu0 0.0
  %490 = vmatmul.mubr.f32.gmra.mxu0 %v423
  %v491 = vpop.f32.mrf.mxu0
  %v492 = vadd.f32 %v417, %v491
  %v493 = vpop.f32.mrf.mxu0
  %494 = vdwg.mxu0
  %v495 = vld [vmem:[#allocation3 + $0x2] sm:$0xf]
  %v496 = vld [vmem:[#allocation3 + $0xa] sm:$0xf]
  %s497 = scalar_lea.vmem %s7, 16
  %v498 = vld [vmem:[%s497] sm:$0xff]
  %v501 = vcombine.low %v495, %v496
  %v502 = vsel %vm54, %v501, 0
  %504 = vmatprep.subr.mxu0 0.0
  %505 = vmatpush1.msra.mxu0 0.0
  %506 = vmatprep.subr.mxu0 0.0
  %507 = vmatpush1.msra.mxu0 0.0
  %508 = vmatprep.subr.mxu0 0.0
  %509 = vmatpush1.msra.mxu0 0.0
  %510 = vmatprep.subr.mxu0 0.0
  %511 = vmatpush1.msra.mxu0 0.0
  %512 = vmatprep.subr.mxu0 0.0
  %513 = vmatpush1.msra.mxu0 0.0
  %514 = vmatprep.subr.mxu0 0.0
  %515 = vmatpush1.msra.mxu0 0.0
  %516 = vmatprep.subr.mxu0 0.0
  %517 = vmatpush1.msra.mxu0 0.0
  %518 = vmatprep.subr.mxu0 0.0
  %519 = vmatpush1.msra.mxu0 0.0
  %520 = vmatprep.subr.mxu0 0.0
  %521 = vmatpush1.msra.mxu0 0.0
  %522 = vmatprep.subr.mxu0 0.0
  %523 = vmatpush1.msra.mxu0 0.0
  %524 = vmatprep.subr.mxu0 0.0
  %525 = vmatpush1.msra.mxu0 0.0
  %526 = vmatprep.subr.mxu0 0.0
  %527 = vmatpush1.msra.mxu0 0.0
  %528 = vmatprep.subr.mxu0 0.0
  %529 = vmatpush1.msra.mxu0 0.0
  %530 = vmatprep.subr.mxu0 0.0
  %531 = vmatpush1.msra.mxu0 0.0
  %532 = vmatprep.subr.mxu0 0.0
  %533 = vmatpush1.msra.mxu0 0.0
  %534 = vmatprep.subr.mxu0 0.0
  %535 = vmatpush1.msra.mxu0 %v498
  %536 = vmatprep.subr.mxu0 0.0
  %537 = vmatpush2.msra.mxu0 0.0
  %538 = vmatprep.subr.mxu0 0.0
  %539 = vmatpush2.msra.mxu0 0.0
  %540 = vmatprep.subr.mxu0 0.0
  %541 = vmatpush2.msra.mxu0 0.0
  %542 = vmatprep.subr.mxu0 0.0
  %543 = vmatpush2.msra.mxu0 0.0
  %544 = vmatprep.subr.mxu0 0.0
  %545 = vmatpush2.msra.mxu0 0.0
  %546 = vmatprep.subr.mxu0 0.0
  %547 = vmatpush2.msra.mxu0 0.0
  %548 = vmatprep.subr.mxu0 0.0
  %549 = vmatpush2.msra.mxu0 0.0
  %550 = vmatprep.subr.mxu0 0.0
  %551 = vmatpush2.msra.mxu0 0.0
  %552 = vmatprep.subr.mxu0 0.0
  %553 = vmatpush2.msra.mxu0 0.0
  %554 = vmatprep.subr.mxu0 0.0
  %555 = vmatpush2.msra.mxu0 0.0
  %556 = vmatprep.subr.mxu0 0.0
  %557 = vmatpush2.msra.mxu0 0.0
  %558 = vmatprep.subr.mxu0 0.0
  %559 = vmatpush2.msra.mxu0 0.0
  %560 = vmatprep.subr.mxu0 0.0
  %561 = vmatpush2.msra.mxu0 0.0
  %562 = vmatprep.subr.mxu0 0.0
  %563 = vmatpush2.msra.mxu0 0.0
  %564 = vmatprep.subr.mxu0 0.0
  %565 = vmatpush2.msra.mxu0 0.0
  %566 = vmatprep.subr.mxu0 0.0
  %567 = vmatpush2.msra.mxu0 0.0
  %568 = vmatprep.mubr.f32.mxu0 0.0
  %569 = vmatmul.mubr.f32.gmra.mxu0 %v502
  %v570 = vpop.f32.mrf.mxu0
  %v571 = vadd.f32 0.0, %v570
  %v572 = vpop.f32.mrf.mxu0
  %573 = vdwg.mxu0
  %v574 = vadd.f32 %v492, %v571
  %v575 = vld [vmem:[%s8] sm:$0x1]
  %v577 = vlaneseq
  %v578 = vshrl.u32 %v577, 7
  %v579 = vsub.s32 0, %v578
  %v580 = vrot.slane %v575, %v579
  %v582 = vadd.f32 %v574, %v580
  %583 = vst.msk [vmem:[#allocation4] sm:$0xff] %vm54, 0.0
  %584 = vst.msk [vmem:[#allocation4 + $0x8] sm:$0x1] %vm56, 0.0
  %585 = vst.msk [vmem:[#allocation4 + $0x10] sm:$0xff] %vm54, 0.0
  %586 = vst.msk [vmem:[#allocation4 + $0x18] sm:$0x1] %vm56, 0.0
  %587 = vst.msk [vmem:[#allocation4] sm:$0xff] %vm54, %v32
  %588 = vst.msk [vmem:[#allocation4 + $0x10] sm:$0xff] %vm54, %v33
  %v589 = vld [vmem:[#allocation4] ss:$2 sm:$0xf]
  %s590 = scalar_lea.vmem [#allocation4], 16
  %v591 = vld [vmem:[%s590] ss:$2 sm:$0xf]
  %s592 = scalar_lea.vmem [#allocation4], 1
  %v593 = vld [vmem:[%s592] ss:$2 sm:$0xf]
  %s594 = scalar_lea.vmem [#allocation4], 17
  %v595 = vld [vmem:[%s594] ss:$2 sm:$0xf]
  %v596 = vmax.f32 %v589, %v593
  %v597 = vmax.f32 %v591, %v595
  %v600 = vcombine.low %v596, %v597
  %v602 = vadd.f32 %v582, %v600
  %v604 = vcombine.high %v602, %v602
  %606 = vst.msk [vmem:[%s9] sm:$0xf] %vm335, %v602
  %607 = vst.msk [vmem:[%s9 + $0x4] sm:$0xf] %vm335, %v604
  // Predicated region
  $region38: #{_lambda_.11} parent=0 // pred_check
    _
  $region39: #{_lambda_.11} parent=0 // pred_check_branch
    %609 = sbr.rel (0) target = $region41
  $region40: #{_lambda_.11} parent=0 // pred_region
    _
  $region41: #{_lambda_.11} parent=0 // pred_fallthru
    _
  // Predicated region
  $region42: #{_lambda_.11} parent=0 // pred_check
    _
  $region43: #{_lambda_.11} parent=0 // pred_check_branch
    %611 = sbr.rel (0) target = $region45
  $region44: #{_lambda_.11} parent=0 // pred_region
    _
  $region45: #{_lambda_.11} parent=0 // pred_fallthru
    _

// kernel: _lambda_.12
$region0: #{_lambda_.12}
  #allocation0 [shape = 'u32[]', space=smem, size = 0x4, offset = 0x4, fixed_abs, tag = 'smem constant byte address 0x4 - core index']
  #allocation1 [shape = 'u32[144,128]{1,0:T(1,128)}', space=vmem, size = 0x12000, scoped, tag = 'internal scratch']
  #allocation2 [shape = 'f32[2,6,8]{2,1,0:T(8,128)}', space=vmem, size = 0x2000, scoped, tag = 'scratch operand']
  #allocation3 [shape = 'f32[2,6,16]{2,1,0:T(8,128)}', space=vmem, size = 0x2000, scoped, tag = 'scratch operand']
  %s0 = inlined_call_operand.vmem [shape: f32[2,4,8], index: 0, kind: input, shape index: {}]
  %s1 = inlined_call_operand.vmem [shape: f32[1,8], index: 1, kind: input, shape index: {}]
  %s2 = inlined_call_operand.vmem [shape: f32[1,8], index: 2, kind: input, shape index: {}]
  %s3 = inlined_call_operand.vmem [shape: f32[3,8,16], index: 3, kind: input, shape index: {}]
  %s4 = inlined_call_operand.vmem [shape: f32[1,16], index: 4, kind: input, shape index: {}]
  %s5 = inlined_call_operand.vmem [shape: f32[1,16], index: 5, kind: input, shape index: {}]
  %s6 = inlined_call_operand.vmem [shape: f32[1,16], index: 6, kind: input, shape index: {}]
  %s7 = inlined_call_operand.vmem [shape: f32[3,16,16], index: 7, kind: input, shape index: {}]
  %s8 = inlined_call_operand.vmem [shape: f32[1,16], index: 8, kind: input, shape index: {}]
  %s9 = inlined_call_operand.vmem [shape: f32[2,4,16], index: 9, kind: output, shape index: {}]
  %s10 = sld [smem:[#allocation0]]
  $region46: #{_lambda_.12} parent=0
    _
  %s12 = ssub.s32 1, %s10
  %s13 = scalar_select 0, %s12, %s10
  // Predicated region
  $region2: #{_lambda_.12} parent=0 // pred_check
    _
  $region3: #{_lambda_.12} parent=0 // pred_check_branch
    %15 = sbr.rel (0) target = $region5
  $region4: #{_lambda_.12} parent=0 // pred_region
    _
  $region5: #{_lambda_.12} parent=0 // pred_fallthru
    _
  // Predicated region
  $region6: #{_lambda_.12} parent=0 // pred_check
    _
  $region7: #{_lambda_.12} parent=0 // pred_check_branch
    %17 = sbr.rel (0) target = $region9
  $region8: #{_lambda_.12} parent=0 // pred_region
    _
  $region9: #{_lambda_.12} parent=0 // pred_fallthru
    _
  // Predicated region
  $region10: #{_lambda_.12} parent=0 // pred_check
    _
  $region11: #{_lambda_.12} parent=0 // pred_check_branch
    %19 = sbr.rel (0) target = $region13
  $region12: #{_lambda_.12} parent=0 // pred_region
    _
  $region13: #{_lambda_.12} parent=0 // pred_fallthru
    _
  // Predicated region
  $region14: #{_lambda_.12} parent=0 // pred_check
    _
  $region15: #{_lambda_.12} parent=0 // pred_check_branch
    %21 = sbr.rel (0) target = $region17
  $region16: #{_lambda_.12} parent=0 // pred_region
    _
  $region17: #{_lambda_.12} parent=0 // pred_fallthru
    _
  // Predicated region
  $region18: #{_lambda_.12} parent=0 // pred_check
    _
  $region19: #{_lambda_.12} parent=0 // pred_check_branch
    %23 = sbr.rel (0) target = $region21
  $region20: #{_lambda_.12} parent=0 // pred_region
    _
  $region21: #{_lambda_.12} parent=0 // pred_fallthru
    _
  // Predicated region
  $region22: #{_lambda_.12} parent=0 // pred_check
    _
  $region23: #{_lambda_.12} parent=0 // pred_check_branch
    %25 = sbr.rel (0) target = $region25
  $region24: #{_lambda_.12} parent=0 // pred_region
    _
  $region25: #{_lambda_.12} parent=0 // pred_fallthru
    _
  // Predicated region
  $region26: #{_lambda_.12} parent=0 // pred_check
    _
  $region27: #{_lambda_.12} parent=0 // pred_check_branch
    %27 = sbr.rel (0) target = $region29
  $region28: #{_lambda_.12} parent=0 // pred_region
    _
  $region29: #{_lambda_.12} parent=0 // pred_fallthru
    _
  // Predicated region
  $region30: #{_lambda_.12} parent=0 // pred_check
    _
  $region31: #{_lambda_.12} parent=0 // pred_check_branch
    %29 = sbr.rel (0) target = $region33
  $region32: #{_lambda_.12} parent=0 // pred_region
    _
  $region33: #{_lambda_.12} parent=0 // pred_fallthru
    _
  // Predicated region
  $region34: #{_lambda_.12} parent=0 // pred_check
    _
  $region35: #{_lambda_.12} parent=0 // pred_check_branch
    %31 = sbr.rel (0) target = $region37
  $region36: #{_lambda_.12} parent=0 // pred_region
    _
  $region37: #{_lambda_.12} parent=0 // pred_fallthru
    _
  %v32 = vld [vmem:[%s0] sm:$0xf]
  %v33 = vld [vmem:[%s0 + $0x4] sm:$0xf]
  %v34 = vld [vmem:[%s1] sm:$0x1]
  %v36 = vlaneseq
  %v37 = vshrl.u32 %v36, 7
  %v38 = vsub.s32 0, %v37
  %v39 = vrot.slane %v34, %v38
  %v41 = vcombine.high %v39, %v39
  %v43 = vmul.f32 %v32, %v39
  %v44 = vmul.f32 %v33, %v41
  %v45 = vld [vmem:[%s2] sm:$0x1]
  %v47 = vlaneseq
  %v48 = vshrl.u32 %v47, 7
  %v49 = vsub.s32 0, %v48
  %v50 = vrot.slane %v45, %v49
  %v52 = vcombine.high %v50, %v50
  %v54 = vadd.f32 %v43, %v50
  %v55 = vadd.f32 %v44, %v52
  %v56 = vmax.f32 %v54, 0.0
  %v57 = vmax.f32 %v55, 0.0
  %vm58 = vcmask 62464
  %59 = vst.msk [vmem:[#allocation2] sm:$0x3f] %vm58, 0.0
  %60 = vst.msk [vmem:[#allocation2 + $0x8] sm:$0x3f] %vm58, 0.0
  %vm61 = vcmask 60416
  %62 = vst.msk [vmem:[#allocation2 + $0x1] sm:$0xf] %vm61, %v56
  %63 = vst.msk [vmem:[#allocation2 + $0x9] sm:$0xf] %vm61, %v57
  %v64 = vld [vmem:[#allocation2] sm:$0xf]
  %v65 = vld [vmem:[#allocation2 + $0x8] sm:$0xf]
  %v66 = vld [vmem:[%s3] sm:$0xff]
  %v67 = vld [vmem:[#allocation2 + $0x1] sm:$0xf]
  %v68 = vld [vmem:[#allocation2 + $0x9] sm:$0xf]
  %s69 = scalar_lea.vmem %s3, 8
  %v70 = vld [vmem:[%s69] sm:$0xff]
  %v73 = vcombine.low %v67, %v68
  %vm74 = vcmask 64512
  %v75 = vsel %vm74, %v73, 0
  %77 = vmatprep.subr.mxu0 0.0
  %78 = vmatpush1.msra.mxu0 0.0
  %79 = vmatprep.subr.mxu0 0.0
  %80 = vmatpush1.msra.mxu0 0.0
  %81 = vmatprep.subr.mxu0 0.0
  %82 = vmatpush1.msra.mxu0 0.0
  %83 = vmatprep.subr.mxu0 0.0
  %84 = vmatpush1.msra.mxu0 0.0
  %85 = vmatprep.subr.mxu0 0.0
  %86 = vmatpush1.msra.mxu0 0.0
  %87 = vmatprep.subr.mxu0 0.0
  %88 = vmatpush1.msra.mxu0 0.0
  %89 = vmatprep.subr.mxu0 0.0
  %90 = vmatpush1.msra.mxu0 0.0
  %91 = vmatprep.subr.mxu0 0.0
  %92 = vmatpush1.msra.mxu0 0.0
  %93 = vmatprep.subr.mxu0 0.0
  %94 = vmatpush1.msra.mxu0 0.0
  %95 = vmatprep.subr.mxu0 0.0
  %96 = vmatpush1.msra.mxu0 0.0
  %97 = vmatprep.subr.mxu0 0.0
  %98 = vmatpush1.msra.mxu0 0.0
  %99 = vmatprep.subr.mxu0 0.0
  %100 = vmatpush1.msra.mxu0 0.0
  %101 = vmatprep.subr.mxu0 0.0
  %102 = vmatpush1.msra.mxu0 0.0
  %103 = vmatprep.subr.mxu0 0.0
  %104 = vmatpush1.msra.mxu0 0.0
  %105 = vmatprep.subr.mxu0 0.0
  %106 = vmatpush1.msra.mxu0 0.0
  %107 = vmatprep.subr.mxu0 0.0
  %108 = vmatpush1.msra.mxu0 %v70
  %109 = vmatprep.subr.mxu0 0.0
  %110 = vmatpush2.msra.mxu0 0.0
  %111 = vmatprep.subr.mxu0 0.0
  %112 = vmatpush2.msra.mxu0 0.0
  %113 = vmatprep.subr.mxu0 0.0
  %114 = vmatpush2.msra.mxu0 0.0
  %115 = vmatprep.subr.mxu0 0.0
  %116 = vmatpush2.msra.mxu0 0.0
  %117 = vmatprep.subr.mxu0 0.0
  %118 = vmatpush2.msra.mxu0 0.0
  %119 = vmatprep.subr.mxu0 0.0
  %120 = vmatpush2.msra.mxu0 0.0
  %121 = vmatprep.subr.mxu0 0.0
  %122 = vmatpush2.msra.mxu0 0.0
  %123 = vmatprep.subr.mxu0 0.0
  %124 = vmatpush2.msra.mxu0 0.0
  %125 = vmatprep.subr.mxu0 0.0
  %126 = vmatpush2.msra.mxu0 0.0
  %127 = vmatprep.subr.mxu0 0.0
  %128 = vmatpush2.msra.mxu0 0.0
  %129 = vmatprep.subr.mxu0 0.0
  %130 = vmatpush2.msra.mxu0 0.0
  %131 = vmatprep.subr.mxu0 0.0
  %132 = vmatpush2.msra.mxu0 0.0
  %133 = vmatprep.subr.mxu0 0.0
  %134 = vmatpush2.msra.mxu0 0.0
  %135 = vmatprep.subr.mxu0 0.0
  %136 = vmatpush2.msra.mxu0 0.0
  %137 = vmatprep.subr.mxu0 0.0
  %138 = vmatpush2.msra.mxu0 0.0
  %139 = vmatprep.subr.mxu0 0.0
  %140 = vmatpush2.msra.mxu0 0.0
  %141 = vmatprep.mubr.f32.mxu0 0.0
  %142 = vmatmul.mubr.f32.gmra.mxu0 %v75
  %v143 = vpop.f32.mrf.mxu0
  %v144 = vadd.f32 0.0, %v143
  %v145 = vpop.f32.mrf.mxu0
  %146 = vdwg.mxu0
  %v149 = vcombine.low %v64, %v65
  %v150 = vsel %vm74, %v149, 0
  %152 = vmatprep.subr.mxu0 0.0
  %153 = vmatpush1.msra.mxu0 0.0
  %154 = vmatprep.subr.mxu0 0.0
  %155 = vmatpush1.msra.mxu0 0.0
  %156 = vmatprep.subr.mxu0 0.0
  %157 = vmatpush1.msra.mxu0 0.0
  %158 = vmatprep.subr.mxu0 0.0
  %159 = vmatpush1.msra.mxu0 0.0
  %160 = vmatprep.subr.mxu0 0.0
  %161 = vmatpush1.msra.mxu0 0.0
  %162 = vmatprep.subr.mxu0 0.0
  %163 = vmatpush1.msra.mxu0 0.0
  %164 = vmatprep.subr.mxu0 0.0
  %165 = vmatpush1.msra.mxu0 0.0
  %166 = vmatprep.subr.mxu0 0.0
  %167 = vmatpush1.msra.mxu0 0.0
  %168 = vmatprep.subr.mxu0 0.0
  %169 = vmatpush1.msra.mxu0 0.0
  %170 = vmatprep.subr.mxu0 0.0
  %171 = vmatpush1.msra.mxu0 0.0
  %172 = vmatprep.subr.mxu0 0.0
  %173 = vmatpush1.msra.mxu0 0.0
  %174 = vmatprep.subr.mxu0 0.0
  %175 = vmatpush1.msra.mxu0 0.0
  %176 = vmatprep.subr.mxu0 0.0
  %177 = vmatpush1.msra.mxu0 0.0
  %178 = vmatprep.subr.mxu0 0.0
  %179 = vmatpush1.msra.mxu0 0.0
  %180 = vmatprep.subr.mxu0 0.0
  %181 = vmatpush1.msra.mxu0 0.0
  %182 = vmatprep.subr.mxu0 0.0
  %183 = vmatpush1.msra.mxu0 %v66
  %184 = vmatprep.subr.mxu0 0.0
  %185 = vmatpush2.msra.mxu0 0.0
  %186 = vmatprep.subr.mxu0 0.0
  %187 = vmatpush2.msra.mxu0 0.0
  %188 = vmatprep.subr.mxu0 0.0
  %189 = vmatpush2.msra.mxu0 0.0
  %190 = vmatprep.subr.mxu0 0.0
  %191 = vmatpush2.msra.mxu0 0.0
  %192 = vmatprep.subr.mxu0 0.0
  %193 = vmatpush2.msra.mxu0 0.0
  %194 = vmatprep.subr.mxu0 0.0
  %195 = vmatpush2.msra.mxu0 0.0
  %196 = vmatprep.subr.mxu0 0.0
  %197 = vmatpush2.msra.mxu0 0.0
  %198 = vmatprep.subr.mxu0 0.0
  %199 = vmatpush2.msra.mxu0 0.0
  %200 = vmatprep.subr.mxu0 0.0
  %201 = vmatpush2.msra.mxu0 0.0
  %202 = vmatprep.subr.mxu0 0.0
  %203 = vmatpush2.msra.mxu0 0.0
  %204 = vmatprep.subr.mxu0 0.0
  %205 = vmatpush2.msra.mxu0 0.0
  %206 = vmatprep.subr.mxu0 0.0
  %207 = vmatpush2.msra.mxu0 0.0
  %208 = vmatprep.subr.mxu0 0.0
  %209 = vmatpush2.msra.mxu0 0.0
  %210 = vmatprep.subr.mxu0 0.0
  %211 = vmatpush2.msra.mxu0 0.0
  %212 = vmatprep.subr.mxu0 0.0
  %213 = vmatpush2.msra.mxu0 0.0
  %214 = vmatprep.subr.mxu0 0.0
  %215 = vmatpush2.msra.mxu0 0.0
  %216 = vmatprep.mubr.f32.mxu0 0.0
  %217 = vmatmul.mubr.f32.gmra.mxu0 %v150
  %v218 = vpop.f32.mrf.mxu0
  %v219 = vadd.f32 %v144, %v218
  %v220 = vpop.f32.mrf.mxu0
  %221 = vdwg.mxu0
  %v222 = vld [vmem:[#allocation2 + $0x2] sm:$0xf]
  %v223 = vld [vmem:[#allocation2 + $0xa] sm:$0xf]
  %s224 = scalar_lea.vmem %s3, 16
  %v225 = vld [vmem:[%s224] sm:$0xff]
  %v228 = vcombine.low %v222, %v223
  %v229 = vsel %vm74, %v228, 0
  %231 = vmatprep.subr.mxu0 0.0
  %232 = vmatpush1.msra.mxu0 0.0
  %233 = vmatprep.subr.mxu0 0.0
  %234 = vmatpush1.msra.mxu0 0.0
  %235 = vmatprep.subr.mxu0 0.0
  %236 = vmatpush1.msra.mxu0 0.0
  %237 = vmatprep.subr.mxu0 0.0
  %238 = vmatpush1.msra.mxu0 0.0
  %239 = vmatprep.subr.mxu0 0.0
  %240 = vmatpush1.msra.mxu0 0.0
  %241 = vmatprep.subr.mxu0 0.0
  %242 = vmatpush1.msra.mxu0 0.0
  %243 = vmatprep.subr.mxu0 0.0
  %244 = vmatpush1.msra.mxu0 0.0
  %245 = vmatprep.subr.mxu0 0.0
  %246 = vmatpush1.msra.mxu0 0.0
  %247 = vmatprep.subr.mxu0 0.0
  %248 = vmatpush1.msra.mxu0 0.0
  %249 = vmatprep.subr.mxu0 0.0
  %250 = vmatpush1.msra.mxu0 0.0
  %251 = vmatprep.subr.mxu0 0.0
  %252 = vmatpush1.msra.mxu0 0.0
  %253 = vmatprep.subr.mxu0 0.0
  %254 = vmatpush1.msra.mxu0 0.0
  %255 = vmatprep.subr.mxu0 0.0
  %256 = vmatpush1.msra.mxu0 0.0
  %257 = vmatprep.subr.mxu0 0.0
  %258 = vmatpush1.msra.mxu0 0.0
  %259 = vmatprep.subr.mxu0 0.0
  %260 = vmatpush1.msra.mxu0 0.0
  %261 = vmatprep.subr.mxu0 0.0
  %262 = vmatpush1.msra.mxu0 %v225
  %263 = vmatprep.subr.mxu0 0.0
  %264 = vmatpush2.msra.mxu0 0.0
  %265 = vmatprep.subr.mxu0 0.0
  %266 = vmatpush2.msra.mxu0 0.0
  %267 = vmatprep.subr.mxu0 0.0
  %268 = vmatpush2.msra.mxu0 0.0
  %269 = vmatprep.subr.mxu0 0.0
  %270 = vmatpush2.msra.mxu0 0.0
  %271 = vmatprep.subr.mxu0 0.0
  %272 = vmatpush2.msra.mxu0 0.0
  %273 = vmatprep.subr.mxu0 0.0
  %274 = vmatpush2.msra.mxu0 0.0
  %275 = vmatprep.subr.mxu0 0.0
  %276 = vmatpush2.msra.mxu0 0.0
  %277 = vmatprep.subr.mxu0 0.0
  %278 = vmatpush2.msra.mxu0 0.0
  %279 = vmatprep.subr.mxu0 0.0
  %280 = vmatpush2.msra.mxu0 0.0
  %281 = vmatprep.subr.mxu0 0.0
  %282 = vmatpush2.msra.mxu0 0.0
  %283 = vmatprep.subr.mxu0 0.0
  %284 = vmatpush2.msra.mxu0 0.0
  %285 = vmatprep.subr.mxu0 0.0
  %286 = vmatpush2.msra.mxu0 0.0
  %287 = vmatprep.subr.mxu0 0.0
  %288 = vmatpush2.msra.mxu0 0.0
  %289 = vmatprep.subr.mxu0 0.0
  %290 = vmatpush2.msra.mxu0 0.0
  %291 = vmatprep.subr.mxu0 0.0
  %292 = vmatpush2.msra.mxu0 0.0
  %293 = vmatprep.subr.mxu0 0.0
  %294 = vmatpush2.msra.mxu0 0.0
  %295 = vmatprep.mubr.f32.mxu0 0.0
  %296 = vmatmul.mubr.f32.gmra.mxu0 %v229
  %v297 = vpop.f32.mrf.mxu0
  %v298 = vadd.f32 0.0, %v297
  %v299 = vpop.f32.mrf.mxu0
  %300 = vdwg.mxu0
  %v301 = vadd.f32 %v219, %v298
  %v302 = vld [vmem:[%s4] sm:$0x1]
  %v304 = vlaneseq
  %v305 = vshrl.u32 %v304, 7
  %v306 = vsub.s32 0, %v305
  %v307 = vrot.slane %v302, %v306
  %v309 = vadd.f32 %v301, %v307
  %v310 = vld [vmem:[%s5] sm:$0x1]
  %v312 = vlaneseq
  %v313 = vshrl.u32 %v312, 7
  %v314 = vsub.s32 0, %v313
  %v315 = vrot.slane %v310, %v314
  %v317 = vmul.f32 %v309, %v315
  %v318 = vld [vmem:[%s6] sm:$0x1]
  %v320 = vlaneseq
  %v321 = vshrl.u32 %v320, 7
  %v322 = vsub.s32 0, %v321
  %v323 = vrot.slane %v318, %v322
  %v325 = vadd.f32 %v317, %v323
  %v326 = vmax.f32 %v325, 0.0
  %v328 = vcombine.high %v326, %v326
  %vm330 = vcmask 128000
  %331 = vst.msk [vmem:[#allocation3] sm:$0x3f] %vm330, 0.0
  %332 = vst.msk [vmem:[#allocation3 + $0x8] sm:$0x3f] %vm330, 0.0
  %vm333 = vcmask 125952
  %334 = vst.msk [vmem:[#allocation3 + $0x1] sm:$0xf] %vm333, %v326
  %335 = vst.msk [vmem:[#allocation3 + $0x9] sm:$0xf] %vm333, %v328
  %v336 = vld [vmem:[#allocation3] sm:$0xf]
  %v337 = vld [vmem:[#allocation3 + $0x8] sm:$0xf]
  %v338 = vld [vmem:[%s7] sm:$0xff]
  %v339 = vld [vmem:[%s7 + $0x8] sm:$0xff]
  %v340 = vld [vmem:[#allocation3 + $0x1] sm:$0xf]
  %v341 = vld [vmem:[#allocation3 + $0x9] sm:$0xf]
  %s342 = scalar_lea.vmem %s7, 16
  %v343 = vld [vmem:[%s342] sm:$0xff]
  %v344 = vld [vmem:[%s342 + $0x8] sm:$0xff]
  %v347 = vcombine.low %v340, %v341
  %vm348 = vcmask 130048
  %v349 = vsel %vm348, %v347, 0
  %351 = vmatprep.subr.mxu0 0.0
  %352 = vmatpush1.msra.mxu0 0.0
  %353 = vmatprep.subr.mxu0 0.0
  %354 = vmatpush1.msra.mxu0 0.0
  %355 = vmatprep.subr.mxu0 0.0
  %356 = vmatpush1.msra.mxu0 0.0
  %357 = vmatprep.subr.mxu0 0.0
  %358 = vmatpush1.msra.mxu0 0.0
  %359 = vmatprep.subr.mxu0 0.0
  %360 = vmatpush1.msra.mxu0 0.0
  %361 = vmatprep.subr.mxu0 0.0
  %362 = vmatpush1.msra.mxu0 0.0
  %363 = vmatprep.subr.mxu0 0.0
  %364 = vmatpush1.msra.mxu0 0.0
  %365 = vmatprep.subr.mxu0 0.0
  %366 = vmatpush1.msra.mxu0 0.0
  %367 = vmatprep.subr.mxu0 0.0
  %368 = vmatpush1.msra.mxu0 0.0
  %369 = vmatprep.subr.mxu0 0.0
  %370 = vmatpush1.msra.mxu0 0.0
  %371 = vmatprep.subr.mxu0 0.0
  %372 = vmatpush1.msra.mxu0 0.0
  %373 = vmatprep.subr.mxu0 0.0
  %374 = vmatpush1.msra.mxu0 0.0
  %375 = vmatprep.subr.mxu0 0.0
  %376 = vmatpush1.msra.mxu0 0.0
  %377 = vmatprep.subr.mxu0 0.0
  %378 = vmatpush1.msra.mxu0 0.0
  %379 = vmatprep.subr.mxu0 0.0
  %380 = vmatpush1.msra.mxu0 %v344
  %381 = vmatprep.subr.mxu0 0.0
  %382 = vmatpush1.msra.mxu0 %v343
  %383 = vmatprep.subr.mxu0 0.0
  %384 = vmatpush2.msra.mxu0 0.0
  %385 = vmatprep.subr.mxu0 0.0
  %386 = vmatpush2.msra.mxu0 0.0
  %387 = vmatprep.subr.mxu0 0.0
  %388 = vmatpush2.msra.mxu0 0.0
  %389 = vmatprep.subr.mxu0 0.0
  %390 = vmatpush2.msra.mxu0 0.0
  %391 = vmatprep.subr.mxu0 0.0
  %392 = vmatpush2.msra.mxu0 0.0
  %393 = vmatprep.subr.mxu0 0.0
  %394 = vmatpush2.msra.mxu0 0.0
  %395 = vmatprep.subr.mxu0 0.0
  %396 = vmatpush2.msra.mxu0 0.0
  %397 = vmatprep.subr.mxu0 0.0
  %398 = vmatpush2.msra.mxu0 0.0
  %399 = vmatprep.subr.mxu0 0.0
  %400 = vmatpush2.msra.mxu0 0.0
  %401 = vmatprep.subr.mxu0 0.0
  %402 = vmatpush2.msra.mxu0 0.0
  %403 = vmatprep.subr.mxu0 0.0
  %404 = vmatpush2.msra.mxu0 0.0
  %405 = vmatprep.subr.mxu0 0.0
  %406 = vmatpush2.msra.mxu0 0.0
  %407 = vmatprep.subr.mxu0 0.0
  %408 = vmatpush2.msra.mxu0 0.0
  %409 = vmatprep.subr.mxu0 0.0
  %410 = vmatpush2.msra.mxu0 0.0
  %411 = vmatprep.subr.mxu0 0.0
  %412 = vmatpush2.msra.mxu0 0.0
  %413 = vmatprep.subr.mxu0 0.0
  %414 = vmatpush2.msra.mxu0 0.0
  %415 = vmatprep.mubr.f32.mxu0 0.0
  %416 = vmatmul.mubr.f32.gmra.mxu0 %v349
  %v417 = vpop.f32.mrf.mxu0
  %v418 = vadd.f32 0.0, %v417
  %v419 = vpop.f32.mrf.mxu0
  %420 = vdwg.mxu0
  %v423 = vcombine.low %v336, %v337
  %v424 = vsel %vm348, %v423, 0
  %426 = vmatprep.subr.mxu0 0.0
  %427 = vmatpush1.msra.mxu0 0.0
  %428 = vmatprep.subr.mxu0 0.0
  %429 = vmatpush1.msra.mxu0 0.0
  %430 = vmatprep.subr.mxu0 0.0
  %431 = vmatpush1.msra.mxu0 0.0
  %432 = vmatprep.subr.mxu0 0.0
  %433 = vmatpush1.msra.mxu0 0.0
  %434 = vmatprep.subr.mxu0 0.0
  %435 = vmatpush1.msra.mxu0 0.0
  %436 = vmatprep.subr.mxu0 0.0
  %437 = vmatpush1.msra.mxu0 0.0
  %438 = vmatprep.subr.mxu0 0.0
  %439 = vmatpush1.msra.mxu0 0.0
  %440 = vmatprep.subr.mxu0 0.0
  %441 = vmatpush1.msra.mxu0 0.0
  %442 = vmatprep.subr.mxu0 0.0
  %443 = vmatpush1.msra.mxu0 0.0
  %444 = vmatprep.subr.mxu0 0.0
  %445 = vmatpush1.msra.mxu0 0.0
  %446 = vmatprep.subr.mxu0 0.0
  %447 = vmatpush1.msra.mxu0 0.0
  %448 = vmatprep.subr.mxu0 0.0
  %449 = vmatpush1.msra.mxu0 0.0
  %450 = vmatprep.subr.mxu0 0.0
  %451 = vmatpush1.msra.mxu0 0.0
  %452 = vmatprep.subr.mxu0 0.0
  %453 = vmatpush1.msra.mxu0 0.0
  %454 = vmatprep.subr.mxu0 0.0
  %455 = vmatpush1.msra.mxu0 %v339
  %456 = vmatprep.subr.mxu0 0.0
  %457 = vmatpush1.msra.mxu0 %v338
  %458 = vmatprep.subr.mxu0 0.0
  %459 = vmatpush2.msra.mxu0 0.0
  %460 = vmatprep.subr.mxu0 0.0
  %461 = vmatpush2.msra.mxu0 0.0
  %462 = vmatprep.subr.mxu0 0.0
  %463 = vmatpush2.msra.mxu0 0.0
  %464 = vmatprep.subr.mxu0 0.0
  %465 = vmatpush2.msra.mxu0 0.0
  %466 = vmatprep.subr.mxu0 0.0
  %467 = vmatpush2.msra.mxu0 0.0
  %468 = vmatprep.subr.mxu0 0.0
  %469 = vmatpush2.msra.mxu0 0.0
  %470 = vmatprep.subr.mxu0 0.0
  %471 = vmatpush2.msra.mxu0 0.0
  %472 = vmatprep.subr.mxu0 0.0
  %473 = vmatpush2.msra.mxu0 0.0
  %474 = vmatprep.subr.mxu0 0.0
  %475 = vmatpush2.msra.mxu0 0.0
  %476 = vmatprep.subr.mxu0 0.0
  %477 = vmatpush2.msra.mxu0 0.0
  %478 = vmatprep.subr.mxu0 0.0
  %479 = vmatpush2.msra.mxu0 0.0
  %480 = vmatprep.subr.mxu0 0.0
  %481 = vmatpush2.msra.mxu0 0.0
  %482 = vmatprep.subr.mxu0 0.0
  %483 = vmatpush2.msra.mxu0 0.0
  %484 = vmatprep.subr.mxu0 0.0
  %485 = vmatpush2.msra.mxu0 0.0
  %486 = vmatprep.subr.mxu0 0.0
  %487 = vmatpush2.msra.mxu0 0.0
  %488 = vmatprep.subr.mxu0 0.0
  %489 = vmatpush2.msra.mxu0 0.0
  %490 = vmatprep.mubr.f32.mxu0 0.0
  %491 = vmatmul.mubr.f32.gmra.mxu0 %v424
  %v492 = vpop.f32.mrf.mxu0
  %v493 = vadd.f32 %v418, %v492
  %v494 = vpop.f32.mrf.mxu0
  %495 = vdwg.mxu0
  %v496 = vld [vmem:[#allocation3 + $0x2] sm:$0xf]
  %v497 = vld [vmem:[#allocation3 + $0xa] sm:$0xf]
  %s498 = scalar_lea.vmem %s7, 32
  %v499 = vld [vmem:[%s498] sm:$0xff]
  %v500 = vld [vmem:[%s498 + $0x8] sm:$0xff]
  %v503 = vcombine.low %v496, %v497
  %v504 = vsel %vm348, %v503, 0
  %506 = vmatprep.subr.mxu0 0.0
  %507 = vmatpush1.msra.mxu0 0.0
  %508 = vmatprep.subr.mxu0 0.0
  %509 = vmatpush1.msra.mxu0 0.0
  %510 = vmatprep.subr.mxu0 0.0
  %511 = vmatpush1.msra.mxu0 0.0
  %512 = vmatprep.subr.mxu0 0.0
  %513 = vmatpush1.msra.mxu0 0.0
  %514 = vmatprep.subr.mxu0 0.0
  %515 = vmatpush1.msra.mxu0 0.0
  %516 = vmatprep.subr.mxu0 0.0
  %517 = vmatpush1.msra.mxu0 0.0
  %518 = vmatprep.subr.mxu0 0.0
  %519 = vmatpush1.msra.mxu0 0.0
  %520 = vmatprep.subr.mxu0 0.0
  %521 = vmatpush1.msra.mxu0 0.0
  %522 = vmatprep.subr.mxu0 0.0
  %523 = vmatpush1.msra.mxu0 0.0
  %524 = vmatprep.subr.mxu0 0.0
  %525 = vmatpush1.msra.mxu0 0.0
  %526 = vmatprep.subr.mxu0 0.0
  %527 = vmatpush1.msra.mxu0 0.0
  %528 = vmatprep.subr.mxu0 0.0
  %529 = vmatpush1.msra.mxu0 0.0
  %530 = vmatprep.subr.mxu0 0.0
  %531 = vmatpush1.msra.mxu0 0.0
  %532 = vmatprep.subr.mxu0 0.0
  %533 = vmatpush1.msra.mxu0 0.0
  %534 = vmatprep.subr.mxu0 0.0
  %535 = vmatpush1.msra.mxu0 %v500
  %536 = vmatprep.subr.mxu0 0.0
  %537 = vmatpush1.msra.mxu0 %v499
  %538 = vmatprep.subr.mxu0 0.0
  %539 = vmatpush2.msra.mxu0 0.0
  %540 = vmatprep.subr.mxu0 0.0
  %541 = vmatpush2.msra.mxu0 0.0
  %542 = vmatprep.subr.mxu0 0.0
  %543 = vmatpush2.msra.mxu0 0.0
  %544 = vmatprep.subr.mxu0 0.0
  %545 = vmatpush2.msra.mxu0 0.0
  %546 = vmatprep.subr.mxu0 0.0
  %547 = vmatpush2.msra.mxu0 0.0
  %548 = vmatprep.subr.mxu0 0.0
  %549 = vmatpush2.msra.mxu0 0.0
  %550 = vmatprep.subr.mxu0 0.0
  %551 = vmatpush2.msra.mxu0 0.0
  %552 = vmatprep.subr.mxu0 0.0
  %553 = vmatpush2.msra.mxu0 0.0
  %554 = vmatprep.subr.mxu0 0.0
  %555 = vmatpush2.msra.mxu0 0.0
  %556 = vmatprep.subr.mxu0 0.0
  %557 = vmatpush2.msra.mxu0 0.0
  %558 = vmatprep.subr.mxu0 0.0
  %559 = vmatpush2.msra.mxu0 0.0
  %560 = vmatprep.subr.mxu0 0.0
  %561 = vmatpush2.msra.mxu0 0.0
  %562 = vmatprep.subr.mxu0 0.0
  %563 = vmatpush2.msra.mxu0 0.0
  %564 = vmatprep.subr.mxu0 0.0
  %565 = vmatpush2.msra.mxu0 0.0
  %566 = vmatprep.subr.mxu0 0.0
  %567 = vmatpush2.msra.mxu0 0.0
  %568 = vmatprep.subr.mxu0 0.0
  %569 = vmatpush2.msra.mxu0 0.0
  %570 = vmatprep.mubr.f32.mxu0 0.0
  %571 = vmatmul.mubr.f32.gmra.mxu0 %v504
  %v572 = vpop.f32.mrf.mxu0
  %v573 = vadd.f32 0.0, %v572
  %v574 = vpop.f32.mrf.mxu0
  %575 = vdwg.mxu0
  %v576 = vadd.f32 %v493, %v573
  %v577 = vld [vmem:[%s8] sm:$0x1]
  %v579 = vlaneseq
  %v580 = vshrl.u32 %v579, 7
  %v581 = vsub.s32 0, %v580
  %v582 = vrot.slane %v577, %v581
  %v584 = vadd.f32 %v576, %v582
  %v585 = vlaneseq
  %v586 = vshrl.u32 %v585, 7
  %v587 = vlaneseq
  %v588 = vand.u32 %v587, 127
  %v589 = vadd.s32 %v586, 4
  %vm590 = vcmp.eq.s32.totalorder %v588, %v589
  %v591 = vsel %vm590, 1, 0
  %v592 = vcvt.s32.f32 %v591
  %v595 = vcombine.low %v32, %v33
  %v596 = vsel %vm74, %v595, 0
  %598 = vmatprep.subr.mxu0 0.0
  %599 = vmatpush1.msra.mxu0 0.0
  %600 = vmatprep.subr.mxu0 0.0
  %601 = vmatpush1.msra.mxu0 0.0
  %602 = vmatprep.subr.mxu0 0.0
  %603 = vmatpush1.msra.mxu0 0.0
  %604 = vmatprep.subr.mxu0 0.0
  %605 = vmatpush1.msra.mxu0 0.0
  %606 = vmatprep.subr.mxu0 0.0
  %607 = vmatpush1.msra.mxu0 0.0
  %608 = vmatprep.subr.mxu0 0.0
  %609 = vmatpush1.msra.mxu0 0.0
  %610 = vmatprep.subr.mxu0 0.0
  %611 = vmatpush1.msra.mxu0 0.0
  %612 = vmatprep.subr.mxu0 0.0
  %613 = vmatpush1.msra.mxu0 0.0
  %614 = vmatprep.subr.mxu0 0.0
  %615 = vmatpush1.msra.mxu0 0.0
  %616 = vmatprep.subr.mxu0 0.0
  %617 = vmatpush1.msra.mxu0 0.0
  %618 = vmatprep.subr.mxu0 0.0
  %619 = vmatpush1.msra.mxu0 0.0
  %620 = vmatprep.subr.mxu0 0.0
  %621 = vmatpush1.msra.mxu0 0.0
  %622 = vmatprep.subr.mxu0 0.0
  %623 = vmatpush1.msra.mxu0 0.0
  %624 = vmatprep.subr.mxu0 0.0
  %625 = vmatpush1.msra.mxu0 0.0
  %626 = vmatprep.subr.mxu0 0.0
  %627 = vmatpush1.msra.mxu0 0.0
  %628 = vmatprep.subr.mxu0 0.0
  %629 = vmatpush1.msra.mxu0 %v592
  %630 = vmatprep.subr.mxu0 0.0
  %631 = vmatpush2.msra.mxu0 0.0
  %632 = vmatprep.subr.mxu0 0.0
  %633 = vmatpush2.msra.mxu0 0.0
  %634 = vmatprep.subr.mxu0 0.0
  %635 = vmatpush2.msra.mxu0 0.0
  %636 = vmatprep.subr.mxu0 0.0
  %637 = vmatpush2.msra.mxu0 0.0
  %638 = vmatprep.subr.mxu0 0.0
  %639 = vmatpush2.msra.mxu0 0.0
  %640 = vmatprep.subr.mxu0 0.0
  %641 = vmatpush2.msra.mxu0 0.0
  %642 = vmatprep.subr.mxu0 0.0
  %643 = vmatpush2.msra.mxu0 0.0
  %644 = vmatprep.subr.mxu0 0.0
  %645 = vmatpush2.msra.mxu0 0.0
  %646 = vmatprep.subr.mxu0 0.0
  %647 = vmatpush2.msra.mxu0 0.0
  %648 = vmatprep.subr.mxu0 0.0
  %649 = vmatpush2.msra.mxu0 0.0
  %650 = vmatprep.subr.mxu0 0.0
  %651 = vmatpush2.msra.mxu0 0.0
  %652 = vmatprep.subr.mxu0 0.0
  %653 = vmatpush2.msra.mxu0 0.0
  %654 = vmatprep.subr.mxu0 0.0
  %655 = vmatpush2.msra.mxu0 0.0
  %656 = vmatprep.subr.mxu0 0.0
  %657 = vmatpush2.msra.mxu0 0.0
  %658 = vmatprep.subr.mxu0 0.0
  %659 = vmatpush2.msra.mxu0 0.0
  %660 = vmatprep.subr.mxu0 0.0
  %661 = vmatpush2.msra.mxu0 0.0
  %662 = vmatprep.mubr.f32.mxu0 0.0
  %663 = vmatmul.mubr.f32.gmra.mxu0 %v596
  %v664 = vpop.f32.mrf.mxu0
  %v665 = vadd.f32 0.0, %v664
  %v666 = vpop.f32.mrf.mxu0
  %667 = vdwg.mxu0
  %v668 = vadd.f32 %v584, %v665
  %v670 = vcombine.high %v668, %v668
  %672 = vst.msk [vmem:[%s9] sm:$0xf] %vm333, %v668
  %673 = vst.msk [vmem:[%s9 + $0x4] sm:$0xf] %vm333, %v670
  // Predicated region
  $region38: #{_lambda_.12} parent=0 // pred_check
    _
  $region39: #{_lambda_.12} parent=0 // pred_check_branch
    %675 = sbr.rel (0) target = $region41
  $region40: #{_lambda_.12} parent=0 // pred_region
    _
  $region41: #{_lambda_.12} parent=0 // pred_fallthru
    _
  // Predicated region
  $region42: #{_lambda_.12} parent=0 // pred_check
    _
  $region43: #{_lambda_.12} parent=0 // pred_check_branch
    %677 = sbr.rel (0) target = $region45
  $region44: #{_lambda_.12} parent=0 // pred_region
    _
  $region45: #{_lambda_.12} parent=0 // pred_fallthru
    _

</llo_original>
